<compile_context>
chip_gen: v6e
topology: v6e:2x2x1
jax: 0.10.0
libtpu: 0.0.40
codegen_flags: <defaults>
</compile_context>

<pallas_src>
import jax
import jax.numpy as jnp
import numpy as np
from jax.experimental import pallas as pl
from jax.experimental.pallas import tpu as pltpu


def lgcn_kernel(blob_ref,    # (N, T)        f32  input series (node-major)
                w_ih_ref,    # (N, 4H)       f32  per-node LSTM input weights (in_feats=1)
                b_gate_ref,  # (N, 4H)       f32  combined b_ih + b_hh
                w_hh_ref,    # (N, H, 4H)    f32  per-node recurrent weights, [n,k,j]=W_hh[n][j,k]
                a_hat_ref,   # (N, N)        f32  normalized adjacency D^-1/2 (A+I) D^-1/2
                gwb_ref,     # (L, T*H, T*H) f32  hidden GraphConv weights, block-diag over T
                gb_ref,      # (L, T*H)      f32  hidden GraphConv biases, tiled over T
                wfs_ref,     # (T*H, T)      f32  final GraphConv weight as selection matrix
                bf_ref,      # (1, 1)        f32  final GraphConv bias (SMEM scalar)
                out_ref):    # (N, T)        f32  predictions
    N, T = out_ref.shape
    H = w_hh_ref.shape[1]
    L = gwb_ref.shape[0]
    TH = T * H

    # ---------------- phase 1: serial per-node LSTM recurrence ----------------
    # Precompute the gate-input contribution for every timestep (off the serial
    # critical path): pre[t] = x_t * W_ih + (b_ih + b_hh), one (N,4H) vreg each.
    blob = blob_ref[...]
    w_ih = w_ih_ref[...]
    b_gate = b_gate_ref[...]
    pre = [blob[:, t:t + 1] * w_ih + b_gate for t in range(T)]

    # Recurrent weights loaded once (32 vregs at N=8,H=32); 4H(=128) stays on lanes,
    # the contraction runs over sublanes.  (Alternative: block-diag MXU matvec.)
    w_hh = w_hh_ref[...]

    h_st = jnp.zeros((N, H), jnp.float32)
    c_st = jnp.zeros((N, H), jnp.float32)
    hs = []
    for t in range(T):  # static unroll, T small
        # rec[n, j] = sum_k W_hh[n][j, k] * h[n, k]
        rec = jnp.sum(w_hh * h_st[:, :, None], axis=1)                # (N, 4H)
        gates = rec + pre[t]                                          # (N, 4H) = 1 vreg
        sg = jax.nn.sigmoid(gates)   # full-vreg EUP: i, f, o quarters used
        th = jnp.tanh(gates)         # full-vreg EUP: g quarter used
        c_st = sg[:, H:2 * H] * c_st + sg[:, 0:H] * th[:, 2 * H:3 * H]
        h_st = sg[:, 3 * H:4 * H] * jnp.tanh(c_st)
        hs.append(h_st)

    # ------------- phase 2: GraphConv stack batched over all T -------------
    # h_big[:, t*H:(t+1)*H] = h_t.  Hidden layer l (relu(Â h_t W_l + b_l) for all t):
    #   (Â h_big) @ block_diag(W_l, ..., W_l)  + tiled bias
    h_big = jnp.concatenate(hs, axis=1)                               # (N, T*H)
    a_hat = a_hat_ref[...]
    for l in range(L):
        ah = jnp.dot(a_hat, h_big, preferred_element_type=jnp.float32)          # (N, T*H)
        gb_b = jnp.broadcast_to(gb_ref[l][None, :], (N, TH))
        h_big = jnp.maximum(
            jnp.dot(ah, gwb_ref[l], preferred_element_type=jnp.float32) + gb_b, 0.0)

    # Final GraphConv H -> 1 for all T in one matmul:
    #   out[:, t] = (Â h_t) W_f + b_f  ==  ((Â h_big) @ wf_sel)[:, t] + b_f
    ah = jnp.dot(a_hat, h_big, preferred_element_type=jnp.float32)               # (N, T*H)
    out = jnp.dot(ah, wfs_ref[...], preferred_element_type=jnp.float32) + bf_ref[0, 0]
    out_ref[...] = out.astype(out_ref.dtype)                                     # one block store


def lgcn_forward(blob, params):
    """blob: (N, T) float32 -> (N, T) predictions (matches PyTorch LGCN.forward)."""
    N, T = blob.shape
    H = params["w_hh"].shape[1]
    L = params["gw"].shape[0]
    TH = T * H

    # One-time parameter repacking (layout only, done in the wrapper):
    b_gate = params["b_ih"] + params["b_hh"]                           # (N, 4H)
    eye_t = jnp.eye(T, dtype=jnp.float32)
    # gw_block[l, s*H+h, t*H+k] = gw[l, h, k] if s == t else 0
    gw_block = jnp.einsum("st,lhk->lshtk", eye_t, params["gw"]).reshape(L, TH, TH)
    # gb_big[l, t*H+h] = gb[l, h]
    gb_big = jnp.tile(params["gb"], (1, T))                            # (L, T*H)
    # wf_sel[t*H+h, t'] = wf[0, h] if t == t' else 0
    wf_sel = (eye_t[:, None, :] * params["wf"][0][None, :, None]).reshape(TH, T)

    flops = (T * (2 * N * 4 * H                     # gate-input precompute
                  + 2 * N * H * 4 * H               # recurrent matvec
                  + 10 * N * H)                     # gate/state elementwise math
             + L * (2 * N * N * TH + 2 * N * TH * TH + N * TH)   # batched hidden GraphConvs
             + 2 * N * N * TH + 2 * N * TH * T + N * T)          # batched final layer
    transcendentals = T * (2 * N * 4 * H + N * H)   # 2 full-vreg + tanh(c) per step
    operands = (blob, params["w_ih"], b_gate, params["w_hh"], params["a_hat"],
                gw_block, gb_big, wf_sel, params["bf"])
    bytes_accessed = 4 * (sum(int(np.prod(x.shape)) for x in operands) + N * T)

    vmem = pl.BlockSpec(memory_space=pltpu.MemorySpace.VMEM)
    smem = pl.BlockSpec(memory_space=pltpu.MemorySpace.SMEM)
    out = pl.pallas_call(
        lgcn_kernel,
        out_shape=jax.ShapeDtypeStruct((N, T), jnp.float32),
        in_specs=[vmem, vmem, vmem, vmem, vmem, vmem, vmem, vmem, smem],
        out_specs=vmem,
        compiler_params=pltpu.CompilerParams(
            # tiny footprint (<2 MiB) here; for large N tile a_hat from HBM and size
            # row-blocks against v7x's 64 MiB physical VMEM (vs 128 MiB on v5e/v6e).
            vmem_limit_bytes=32 * 1024 * 1024),
        cost_estimate=pl.CostEstimate(flops=flops,
                                      transcendentals=transcendentals,
                                      bytes_accessed=bytes_accessed),
    )(blob.astype(jnp.float32),
      params["w_ih"], b_gate, params["w_hh"], params["a_hat"],
      gw_block, gb_big, wf_sel, params["bf"])
    return out


def make_params(key, n_nodes, n_hidden, n_layers):
    N, H, L = n_nodes, n_hidden, n_layers
    ks = jax.random.split(key, 8)
    scale = 0.1
    # per-node LSTM parameters (in_feats=1, PyTorch gate order i,f,g,o).
    #   w_ih[n, j]    = torch rnns[n].weight_ih_l0[j, 0]
    #   w_hh[n, k, j] = torch rnns[n].weight_hh_l0[j, k]   (transposed: 4H stays on lanes)
    w_ih = scale * jax.random.normal(ks[0], (N, 4 * H), jnp.float32)
    b_ih = scale * jax.random.normal(ks[1], (N, 4 * H), jnp.float32)
    w_hh = scale * jax.random.normal(ks[2], (N, H, 4 * H), jnp.float32)
    b_hh = scale * jax.random.normal(ks[3], (N, 4 * H), jnp.float32)
    # GraphConv parameters: L hidden layers (H->H, relu) + final (H->1, stored as W_f^T)
    gw = scale * jax.random.normal(ks[4], (L, H, H), jnp.float32)
    gb = scale * jax.random.normal(ks[5], (L, H), jnp.float32)
    wf = scale * jax.random.normal(ks[6], (1, H), jnp.float32)   # = torch W_f.T
    bf = scale * jax.random.normal(ks[7], (1, 1), jnp.float32)
    # synthetic graph: ring with self-loops, symmetric normalization D^-1/2 A D^-1/2
    eye = jnp.eye(N, dtype=jnp.float32)
    adj = eye + jnp.roll(eye, 1, axis=1) + jnp.roll(eye, -1, axis=1)
    deg = adj.sum(axis=1)
    a_hat = adj / jnp.sqrt(deg[:, None] * deg[None, :])
    return dict(w_ih=w_ih, b_ih=b_ih, w_hh=w_hh, b_hh=b_hh,
                a_hat=a_hat, gw=gw, gb=gb, wf=wf, bf=bf)


def lgcn_reference(blob, params):
    """Pure-NumPy reference matching the PyTorch forward (eval mode, ReLU)."""
    blob = np.asarray(blob, np.float32)
    w_ih = np.asarray(params["w_ih"]); b_ih = np.asarray(params["b_ih"])
    w_hh = np.asarray(params["w_hh"]); b_hh = np.asarray(params["b_hh"])
    a_hat = np.asarray(params["a_hat"]); gw = np.asarray(params["gw"])
    gb = np.asarray(params["gb"]); wf = np.asarray(params["wf"]); bf = np.asarray(params["bf"])
    N, T = blob.shape
    H = w_hh.shape[1]
    L = gw.shape[0]

    def sig(x):
        return 1.0 / (1.0 + np.exp(-x))

    h = np.zeros((N, H), np.float32)
    c = np.zeros((N, H), np.float32)
    out = np.zeros((N, T), np.float32)
    for t in range(T):
        rec = np.einsum("nkj,nk->nj", w_hh, h)
        gates = blob[:, t:t + 1] * w_ih + b_ih + b_hh + rec
        i_g = sig(gates[:, 0:H]); f_g = sig(gates[:, H:2 * H])
        g_g = np.tanh(gates[:, 2 * H:3 * H]); o_g = sig(gates[:, 3 * H:4 * H])
        c = f_g * c + i_g * g_g
        h = o_g * np.tanh(c)
        x = h
        for l in range(L):
            x = np.maximum(a_hat @ x @ gw[l] + gb[l][None, :], 0.0)
        out[:, t] = (a_hat @ x @ wf.T)[:, 0] + bf[0, 0]
    return out


if __name__ == "__main__":
    N_NODES, T_SEQ, N_HIDDEN, N_LAYERS = 8, 8, 32, 2

    key = jax.random.PRNGKey(0)
    k_param, k_data = jax.random.split(key)
    params = make_params(k_param, N_NODES, N_HIDDEN, N_LAYERS)
    blob = jax.random.normal(k_data, (N_NODES, T_SEQ), jnp.float32)  # (nodes, time)

    out = lgcn_forward(blob, params)
    out = jax.block_until_ready(out)
    assert out.shape == (N_NODES, T_SEQ), out.shape
    assert jnp.all(jnp.isfinite(out))

    ref = lgcn_reference(np.asarray(blob), params)
    np.testing.assert_allclose(np.asarray(out), ref, rtol=2e-2, atol=2e-3)
    print("KERNEL_OK")
</pallas_src>

<mosaic_0001>
module attributes {stable_mosaic.version = 11 : i64} {
  func.func @lgcn_kernel(%arg0: memref<8x8xf32, #tpu.memory_space<vmem>>, %arg1: memref<8x128xf32, #tpu.memory_space<vmem>>, %arg2: memref<8x128xf32, #tpu.memory_space<vmem>>, %arg3: memref<8x32x128xf32, #tpu.memory_space<vmem>>, %arg4: memref<8x8xf32, #tpu.memory_space<vmem>>, %arg5: memref<2x256x256xf32, #tpu.memory_space<vmem>>, %arg6: memref<2x256xf32, #tpu.memory_space<vmem>>, %arg7: memref<256x8xf32, #tpu.memory_space<vmem>>, %arg8: memref<1x1xf32, #tpu.memory_space<smem>>, %arg9: memref<8x8xf32, #tpu.memory_space<vmem>>) attributes {dimension_semantics = [], scalar_prefetch = 0 : i64, scratch_operands = 0 : i64, tpu.core_type = #tpu.core_type<tc>} {
    %c0 = arith.constant 0 : index
    %c0_0 = arith.constant 0 : index
    %0 = vector.load %arg0[%c0, %c0_0] : memref<8x8xf32, #tpu.memory_space<vmem>>, vector<8x8xf32>
    %c0_1 = arith.constant 0 : index
    %c0_2 = arith.constant 0 : index
    %1 = vector.load %arg1[%c0_1, %c0_2] : memref<8x128xf32, #tpu.memory_space<vmem>>, vector<8x128xf32>
    %c0_3 = arith.constant 0 : index
    %c0_4 = arith.constant 0 : index
    %2 = vector.load %arg2[%c0_3, %c0_4] : memref<8x128xf32, #tpu.memory_space<vmem>>, vector<8x128xf32>
    %3 = vector.extract_strided_slice %0 {offsets = [0, 0], sizes = [8, 1], strides = [1, 1]} : vector<8x8xf32> to vector<8x1xf32>
    %4 = vector.broadcast %3 : vector<8x1xf32> to vector<8x128xf32>
    %5 = arith.mulf %4, %1 : vector<8x128xf32>
    %6 = arith.addf %5, %2 : vector<8x128xf32>
    %7 = vector.extract_strided_slice %0 {offsets = [0, 1], sizes = [8, 1], strides = [1, 1]} : vector<8x8xf32> to vector<8x1xf32>
    %8 = vector.broadcast %7 : vector<8x1xf32> to vector<8x128xf32>
    %9 = arith.mulf %8, %1 : vector<8x128xf32>
    %10 = arith.addf %9, %2 : vector<8x128xf32>
    %11 = vector.extract_strided_slice %0 {offsets = [0, 2], sizes = [8, 1], strides = [1, 1]} : vector<8x8xf32> to vector<8x1xf32>
    %12 = vector.broadcast %11 : vector<8x1xf32> to vector<8x128xf32>
    %13 = arith.mulf %12, %1 : vector<8x128xf32>
    %14 = arith.addf %13, %2 : vector<8x128xf32>
    %15 = vector.extract_strided_slice %0 {offsets = [0, 3], sizes = [8, 1], strides = [1, 1]} : vector<8x8xf32> to vector<8x1xf32>
    %16 = vector.broadcast %15 : vector<8x1xf32> to vector<8x128xf32>
    %17 = arith.mulf %16, %1 : vector<8x128xf32>
    %18 = arith.addf %17, %2 : vector<8x128xf32>
    %19 = vector.extract_strided_slice %0 {offsets = [0, 4], sizes = [8, 1], strides = [1, 1]} : vector<8x8xf32> to vector<8x1xf32>
    %20 = vector.broadcast %19 : vector<8x1xf32> to vector<8x128xf32>
    %21 = arith.mulf %20, %1 : vector<8x128xf32>
    %22 = arith.addf %21, %2 : vector<8x128xf32>
    %23 = vector.extract_strided_slice %0 {offsets = [0, 5], sizes = [8, 1], strides = [1, 1]} : vector<8x8xf32> to vector<8x1xf32>
    %24 = vector.broadcast %23 : vector<8x1xf32> to vector<8x128xf32>
    %25 = arith.mulf %24, %1 : vector<8x128xf32>
    %26 = arith.addf %25, %2 : vector<8x128xf32>
    %27 = vector.extract_strided_slice %0 {offsets = [0, 6], sizes = [8, 1], strides = [1, 1]} : vector<8x8xf32> to vector<8x1xf32>
    %28 = vector.broadcast %27 : vector<8x1xf32> to vector<8x128xf32>
    %29 = arith.mulf %28, %1 : vector<8x128xf32>
    %30 = arith.addf %29, %2 : vector<8x128xf32>
    %31 = vector.extract_strided_slice %0 {offsets = [0, 7], sizes = [8, 1], strides = [1, 1]} : vector<8x8xf32> to vector<8x1xf32>
    %32 = vector.broadcast %31 : vector<8x1xf32> to vector<8x128xf32>
    %33 = arith.mulf %32, %1 : vector<8x128xf32>
    %34 = arith.addf %33, %2 : vector<8x128xf32>
    %c0_5 = arith.constant 0 : index
    %c0_6 = arith.constant 0 : index
    %c0_7 = arith.constant 0 : index
    %35 = vector.load %arg3[%c0_5, %c0_6, %c0_7] : memref<8x32x128xf32, #tpu.memory_space<vmem>>, vector<8x32x128xf32>
    %cst = arith.constant 0.000000e+00 : f32
    %36 = vector.broadcast %cst : f32 to vector<8x32xf32>
    %cst_8 = arith.constant 0.000000e+00 : f32
    %37 = vector.broadcast %cst_8 : f32 to vector<8x32xf32>
    %38 = vector.shape_cast %36 : vector<8x32xf32> to vector<8x32x1xf32>
    %39 = vector.broadcast %38 : vector<8x32x1xf32> to vector<8x32x128xf32>
    %40 = arith.mulf %35, %39 : vector<8x32x128xf32>
    %cst_9 = arith.constant dense<0.000000e+00> : vector<8x128xf32>
    %41 = vector.multi_reduction <add>, %40, %cst_9 [1] : vector<8x32x128xf32> to vector<8x128xf32>
    %42 = arith.addf %41, %6 : vector<8x128xf32>
    %43 = arith.negf %42 : vector<8x128xf32>
    %44 = math.exp %43 : vector<8x128xf32>
    %cst_10 = arith.constant 1.000000e+00 : f32
    %45 = vector.broadcast %cst_10 : f32 to vector<8x128xf32>
    %46 = arith.addf %45, %44 : vector<8x128xf32>
    %47 = arith.divf %45, %46 : vector<8x128xf32>
    %48 = math.tanh %42 : vector<8x128xf32>
    %49 = vector.extract_strided_slice %47 {offsets = [0, 32], sizes = [8, 32], strides = [1, 1]} : vector<8x128xf32> to vector<8x32xf32>
    %50 = arith.mulf %49, %37 : vector<8x32xf32>
    %51 = vector.extract_strided_slice %47 {offsets = [0, 0], sizes = [8, 32], strides = [1, 1]} : vector<8x128xf32> to vector<8x32xf32>
    %52 = vector.extract_strided_slice %48 {offsets = [0, 64], sizes = [8, 32], strides = [1, 1]} : vector<8x128xf32> to vector<8x32xf32>
    %53 = arith.mulf %51, %52 : vector<8x32xf32>
    %54 = arith.addf %50, %53 : vector<8x32xf32>
    %55 = vector.extract_strided_slice %47 {offsets = [0, 96], sizes = [8, 32], strides = [1, 1]} : vector<8x128xf32> to vector<8x32xf32>
    %56 = math.tanh %54 : vector<8x32xf32>
    %57 = arith.mulf %55, %56 : vector<8x32xf32>
    %58 = vector.shape_cast %57 : vector<8x32xf32> to vector<8x32x1xf32>
    %59 = vector.broadcast %58 : vector<8x32x1xf32> to vector<8x32x128xf32>
    %60 = arith.mulf %35, %59 : vector<8x32x128xf32>
    %cst_11 = arith.constant dense<0.000000e+00> : vector<8x128xf32>
    %61 = vector.multi_reduction <add>, %60, %cst_11 [1] : vector<8x32x128xf32> to vector<8x128xf32>
    %62 = arith.addf %61, %10 : vector<8x128xf32>
    %63 = arith.negf %62 : vector<8x128xf32>
    %64 = math.exp %63 : vector<8x128xf32>
    %cst_12 = arith.constant 1.000000e+00 : f32
    %65 = vector.broadcast %cst_12 : f32 to vector<8x128xf32>
    %66 = arith.addf %65, %64 : vector<8x128xf32>
    %67 = arith.divf %65, %66 : vector<8x128xf32>
    %68 = math.tanh %62 : vector<8x128xf32>
    %69 = vector.extract_strided_slice %67 {offsets = [0, 32], sizes = [8, 32], strides = [1, 1]} : vector<8x128xf32> to vector<8x32xf32>
    %70 = arith.mulf %69, %54 : vector<8x32xf32>
    %71 = vector.extract_strided_slice %67 {offsets = [0, 0], sizes = [8, 32], strides = [1, 1]} : vector<8x128xf32> to vector<8x32xf32>
    %72 = vector.extract_strided_slice %68 {offsets = [0, 64], sizes = [8, 32], strides = [1, 1]} : vector<8x128xf32> to vector<8x32xf32>
    %73 = arith.mulf %71, %72 : vector<8x32xf32>
    %74 = arith.addf %70, %73 : vector<8x32xf32>
    %75 = vector.extract_strided_slice %67 {offsets = [0, 96], sizes = [8, 32], strides = [1, 1]} : vector<8x128xf32> to vector<8x32xf32>
    %76 = math.tanh %74 : vector<8x32xf32>
    %77 = arith.mulf %75, %76 : vector<8x32xf32>
    %78 = vector.shape_cast %77 : vector<8x32xf32> to vector<8x32x1xf32>
    %79 = vector.broadcast %78 : vector<8x32x1xf32> to vector<8x32x128xf32>
    %80 = arith.mulf %35, %79 : vector<8x32x128xf32>
    %cst_13 = arith.constant dense<0.000000e+00> : vector<8x128xf32>
    %81 = vector.multi_reduction <add>, %80, %cst_13 [1] : vector<8x32x128xf32> to vector<8x128xf32>
    %82 = arith.addf %81, %14 : vector<8x128xf32>
    %83 = arith.negf %82 : vector<8x128xf32>
    %84 = math.exp %83 : vector<8x128xf32>
    %cst_14 = arith.constant 1.000000e+00 : f32
    %85 = vector.broadcast %cst_14 : f32 to vector<8x128xf32>
    %86 = arith.addf %85, %84 : vector<8x128xf32>
    %87 = arith.divf %85, %86 : vector<8x128xf32>
    %88 = math.tanh %82 : vector<8x128xf32>
    %89 = vector.extract_strided_slice %87 {offsets = [0, 32], sizes = [8, 32], strides = [1, 1]} : vector<8x128xf32> to vector<8x32xf32>
    %90 = arith.mulf %89, %74 : vector<8x32xf32>
    %91 = vector.extract_strided_slice %87 {offsets = [0, 0], sizes = [8, 32], strides = [1, 1]} : vector<8x128xf32> to vector<8x32xf32>
    %92 = vector.extract_strided_slice %88 {offsets = [0, 64], sizes = [8, 32], strides = [1, 1]} : vector<8x128xf32> to vector<8x32xf32>
    %93 = arith.mulf %91, %92 : vector<8x32xf32>
    %94 = arith.addf %90, %93 : vector<8x32xf32>
    %95 = vector.extract_strided_slice %87 {offsets = [0, 96], sizes = [8, 32], strides = [1, 1]} : vector<8x128xf32> to vector<8x32xf32>
    %96 = math.tanh %94 : vector<8x32xf32>
    %97 = arith.mulf %95, %96 : vector<8x32xf32>
    %98 = vector.shape_cast %97 : vector<8x32xf32> to vector<8x32x1xf32>
    %99 = vector.broadcast %98 : vector<8x32x1xf32> to vector<8x32x128xf32>
    %100 = arith.mulf %35, %99 : vector<8x32x128xf32>
    %cst_15 = arith.constant dense<0.000000e+00> : vector<8x128xf32>
    %101 = vector.multi_reduction <add>, %100, %cst_15 [1] : vector<8x32x128xf32> to vector<8x128xf32>
    %102 = arith.addf %101, %18 : vector<8x128xf32>
    %103 = arith.negf %102 : vector<8x128xf32>
    %104 = math.exp %103 : vector<8x128xf32>
    %cst_16 = arith.constant 1.000000e+00 : f32
    %105 = vector.broadcast %cst_16 : f32 to vector<8x128xf32>
    %106 = arith.addf %105, %104 : vector<8x128xf32>
    %107 = arith.divf %105, %106 : vector<8x128xf32>
    %108 = math.tanh %102 : vector<8x128xf32>
    %109 = vector.extract_strided_slice %107 {offsets = [0, 32], sizes = [8, 32], strides = [1, 1]} : vector<8x128xf32> to vector<8x32xf32>
    %110 = arith.mulf %109, %94 : vector<8x32xf32>
    %111 = vector.extract_strided_slice %107 {offsets = [0, 0], sizes = [8, 32], strides = [1, 1]} : vector<8x128xf32> to vector<8x32xf32>
    %112 = vector.extract_strided_slice %108 {offsets = [0, 64], sizes = [8, 32], strides = [1, 1]} : vector<8x128xf32> to vector<8x32xf32>
    %113 = arith.mulf %111, %112 : vector<8x32xf32>
    %114 = arith.addf %110, %113 : vector<8x32xf32>
    %115 = vector.extract_strided_slice %107 {offsets = [0, 96], sizes = [8, 32], strides = [1, 1]} : vector<8x128xf32> to vector<8x32xf32>
    %116 = math.tanh %114 : vector<8x32xf32>
    %117 = arith.mulf %115, %116 : vector<8x32xf32>
    %118 = vector.shape_cast %117 : vector<8x32xf32> to vector<8x32x1xf32>
    %119 = vector.broadcast %118 : vector<8x32x1xf32> to vector<8x32x128xf32>
    %120 = arith.mulf %35, %119 : vector<8x32x128xf32>
    %cst_17 = arith.constant dense<0.000000e+00> : vector<8x128xf32>
    %121 = vector.multi_reduction <add>, %120, %cst_17 [1] : vector<8x32x128xf32> to vector<8x128xf32>
    %122 = arith.addf %121, %22 : vector<8x128xf32>
    %123 = arith.negf %122 : vector<8x128xf32>
    %124 = math.exp %123 : vector<8x128xf32>
    %cst_18 = arith.constant 1.000000e+00 : f32
    %125 = vector.broadcast %cst_18 : f32 to vector<8x128xf32>
    %126 = arith.addf %125, %124 : vector<8x128xf32>
    %127 = arith.divf %125, %126 : vector<8x128xf32>
    %128 = math.tanh %122 : vector<8x128xf32>
    %129 = vector.extract_strided_slice %127 {offsets = [0, 32], sizes = [8, 32], strides = [1, 1]} : vector<8x128xf32> to vector<8x32xf32>
    %130 = arith.mulf %129, %114 : vector<8x32xf32>
    %131 = vector.extract_strided_slice %127 {offsets = [0, 0], sizes = [8, 32], strides = [1, 1]} : vector<8x128xf32> to vector<8x32xf32>
    %132 = vector.extract_strided_slice %128 {offsets = [0, 64], sizes = [8, 32], strides = [1, 1]} : vector<8x128xf32> to vector<8x32xf32>
    %133 = arith.mulf %131, %132 : vector<8x32xf32>
    %134 = arith.addf %130, %133 : vector<8x32xf32>
    %135 = vector.extract_strided_slice %127 {offsets = [0, 96], sizes = [8, 32], strides = [1, 1]} : vector<8x128xf32> to vector<8x32xf32>
    %136 = math.tanh %134 : vector<8x32xf32>
    %137 = arith.mulf %135, %136 : vector<8x32xf32>
    %138 = vector.shape_cast %137 : vector<8x32xf32> to vector<8x32x1xf32>
    %139 = vector.broadcast %138 : vector<8x32x1xf32> to vector<8x32x128xf32>
    %140 = arith.mulf %35, %139 : vector<8x32x128xf32>
    %cst_19 = arith.constant dense<0.000000e+00> : vector<8x128xf32>
    %141 = vector.multi_reduction <add>, %140, %cst_19 [1] : vector<8x32x128xf32> to vector<8x128xf32>
    %142 = arith.addf %141, %26 : vector<8x128xf32>
    %143 = arith.negf %142 : vector<8x128xf32>
    %144 = math.exp %143 : vector<8x128xf32>
    %cst_20 = arith.constant 1.000000e+00 : f32
    %145 = vector.broadcast %cst_20 : f32 to vector<8x128xf32>
    %146 = arith.addf %145, %144 : vector<8x128xf32>
    %147 = arith.divf %145, %146 : vector<8x128xf32>
    %148 = math.tanh %142 : vector<8x128xf32>
    %149 = vector.extract_strided_slice %147 {offsets = [0, 32], sizes = [8, 32], strides = [1, 1]} : vector<8x128xf32> to vector<8x32xf32>
    %150 = arith.mulf %149, %134 : vector<8x32xf32>
    %151 = vector.extract_strided_slice %147 {offsets = [0, 0], sizes = [8, 32], strides = [1, 1]} : vector<8x128xf32> to vector<8x32xf32>
    %152 = vector.extract_strided_slice %148 {offsets = [0, 64], sizes = [8, 32], strides = [1, 1]} : vector<8x128xf32> to vector<8x32xf32>
    %153 = arith.mulf %151, %152 : vector<8x32xf32>
    %154 = arith.addf %150, %153 : vector<8x32xf32>
    %155 = vector.extract_strided_slice %147 {offsets = [0, 96], sizes = [8, 32], strides = [1, 1]} : vector<8x128xf32> to vector<8x32xf32>
    %156 = math.tanh %154 : vector<8x32xf32>
    %157 = arith.mulf %155, %156 : vector<8x32xf32>
    %158 = vector.shape_cast %157 : vector<8x32xf32> to vector<8x32x1xf32>
    %159 = vector.broadcast %158 : vector<8x32x1xf32> to vector<8x32x128xf32>
    %160 = arith.mulf %35, %159 : vector<8x32x128xf32>
    %cst_21 = arith.constant dense<0.000000e+00> : vector<8x128xf32>
    %161 = vector.multi_reduction <add>, %160, %cst_21 [1] : vector<8x32x128xf32> to vector<8x128xf32>
    %162 = arith.addf %161, %30 : vector<8x128xf32>
    %163 = arith.negf %162 : vector<8x128xf32>
    %164 = math.exp %163 : vector<8x128xf32>
    %cst_22 = arith.constant 1.000000e+00 : f32
    %165 = vector.broadcast %cst_22 : f32 to vector<8x128xf32>
    %166 = arith.addf %165, %164 : vector<8x128xf32>
    %167 = arith.divf %165, %166 : vector<8x128xf32>
    %168 = math.tanh %162 : vector<8x128xf32>
    %169 = vector.extract_strided_slice %167 {offsets = [0, 32], sizes = [8, 32], strides = [1, 1]} : vector<8x128xf32> to vector<8x32xf32>
    %170 = arith.mulf %169, %154 : vector<8x32xf32>
    %171 = vector.extract_strided_slice %167 {offsets = [0, 0], sizes = [8, 32], strides = [1, 1]} : vector<8x128xf32> to vector<8x32xf32>
    %172 = vector.extract_strided_slice %168 {offsets = [0, 64], sizes = [8, 32], strides = [1, 1]} : vector<8x128xf32> to vector<8x32xf32>
    %173 = arith.mulf %171, %172 : vector<8x32xf32>
    %174 = arith.addf %170, %173 : vector<8x32xf32>
    %175 = vector.extract_strided_slice %167 {offsets = [0, 96], sizes = [8, 32], strides = [1, 1]} : vector<8x128xf32> to vector<8x32xf32>
    %176 = math.tanh %174 : vector<8x32xf32>
    %177 = arith.mulf %175, %176 : vector<8x32xf32>
    %178 = vector.shape_cast %177 : vector<8x32xf32> to vector<8x32x1xf32>
    %179 = vector.broadcast %178 : vector<8x32x1xf32> to vector<8x32x128xf32>
    %180 = arith.mulf %35, %179 : vector<8x32x128xf32>
    %cst_23 = arith.constant dense<0.000000e+00> : vector<8x128xf32>
    %181 = vector.multi_reduction <add>, %180, %cst_23 [1] : vector<8x32x128xf32> to vector<8x128xf32>
    %182 = arith.addf %181, %34 : vector<8x128xf32>
    %183 = arith.negf %182 : vector<8x128xf32>
    %184 = math.exp %183 : vector<8x128xf32>
    %cst_24 = arith.constant 1.000000e+00 : f32
    %185 = vector.broadcast %cst_24 : f32 to vector<8x128xf32>
    %186 = arith.addf %185, %184 : vector<8x128xf32>
    %187 = arith.divf %185, %186 : vector<8x128xf32>
    %188 = math.tanh %182 : vector<8x128xf32>
    %189 = vector.extract_strided_slice %187 {offsets = [0, 32], sizes = [8, 32], strides = [1, 1]} : vector<8x128xf32> to vector<8x32xf32>
    %190 = arith.mulf %189, %174 : vector<8x32xf32>
    %191 = vector.extract_strided_slice %187 {offsets = [0, 0], sizes = [8, 32], strides = [1, 1]} : vector<8x128xf32> to vector<8x32xf32>
    %192 = vector.extract_strided_slice %188 {offsets = [0, 64], sizes = [8, 32], strides = [1, 1]} : vector<8x128xf32> to vector<8x32xf32>
    %193 = arith.mulf %191, %192 : vector<8x32xf32>
    %194 = arith.addf %190, %193 : vector<8x32xf32>
    %195 = vector.extract_strided_slice %187 {offsets = [0, 96], sizes = [8, 32], strides = [1, 1]} : vector<8x128xf32> to vector<8x32xf32>
    %196 = math.tanh %194 : vector<8x32xf32>
    %197 = arith.mulf %195, %196 : vector<8x32xf32>
    %198 = tpu.concatenate %57, %77, %97, %117, %137, %157, %177, %197 in 1 : vector<8x32xf32>, vector<8x32xf32>, vector<8x32xf32>, vector<8x32xf32>, vector<8x32xf32>, vector<8x32xf32>, vector<8x32xf32>, vector<8x32xf32> -> vector<8x256xf32>
    %c0_25 = arith.constant 0 : index
    %c0_26 = arith.constant 0 : index
    %199 = vector.load %arg4[%c0_25, %c0_26] : memref<8x8xf32, #tpu.memory_space<vmem>>, vector<8x8xf32>
    %cst_27 = arith.constant dense<0.000000e+00> : vector<8x256xf32>
    %200 = tpu.matmul %199, %198, %cst_27 {dimension_numbers = #tpu.dot_dimension_numbers<[1], [0], [0], [1], [0, 0, 1, 1], [], []>} : vector<8x8xf32>, vector<8x256xf32>, vector<8x256xf32> -> vector<8x256xf32>
    %c0_28 = arith.constant 0 : index
    %c0_29 = arith.constant 0 : index
    %201 = vector.load %arg6[%c0_28, %c0_29] : memref<2x256xf32, #tpu.memory_space<vmem>>, vector<1x256xf32>
    %202 = vector.shape_cast %201 : vector<1x256xf32> to vector<256xf32>
    %203 = vector.shape_cast %202 : vector<256xf32> to vector<1x256xf32>
    %204 = vector.shape_cast %203 : vector<1x256xf32> to vector<1x256xf32>
    %205 = vector.broadcast %204 : vector<1x256xf32> to vector<8x256xf32>
    %c0_30 = arith.constant 0 : index
    %c0_31 = arith.constant 0 : index
    %c0_32 = arith.constant 0 : index
    %206 = vector.load %arg5[%c0_30, %c0_31, %c0_32] : memref<2x256x256xf32, #tpu.memory_space<vmem>>, vector<1x256x256xf32>
    %207 = vector.shape_cast %206 : vector<1x256x256xf32> to vector<256x256xf32>
    %cst_33 = arith.constant dense<0.000000e+00> : vector<8x256xf32>
    %208 = tpu.matmul %200, %207, %cst_33 {dimension_numbers = #tpu.dot_dimension_numbers<[1], [0], [0], [1], [0, 0, 1, 1], [], []>} : vector<8x256xf32>, vector<256x256xf32>, vector<8x256xf32> -> vector<8x256xf32>
    %209 = arith.addf %208, %205 : vector<8x256xf32>
    %cst_34 = arith.constant 0.000000e+00 : f32
    %210 = vector.broadcast %cst_34 : f32 to vector<8x256xf32>
    %211 = arith.maximumf %209, %210 : vector<8x256xf32>
    %cst_35 = arith.constant dense<0.000000e+00> : vector<8x256xf32>
    %212 = tpu.matmul %199, %211, %cst_35 {dimension_numbers = #tpu.dot_dimension_numbers<[1], [0], [0], [1], [0, 0, 1, 1], [], []>} : vector<8x8xf32>, vector<8x256xf32>, vector<8x256xf32> -> vector<8x256xf32>
    %c1 = arith.constant 1 : index
    %c0_36 = arith.constant 0 : index
    %213 = vector.load %arg6[%c1, %c0_36] : memref<2x256xf32, #tpu.memory_space<vmem>>, vector<1x256xf32>
    %214 = vector.shape_cast %213 : vector<1x256xf32> to vector<256xf32>
    %215 = vector.shape_cast %214 : vector<256xf32> to vector<1x256xf32>
    %216 = vector.shape_cast %215 : vector<1x256xf32> to vector<1x256xf32>
    %217 = vector.broadcast %216 : vector<1x256xf32> to vector<8x256xf32>
    %c1_37 = arith.constant 1 : index
    %c0_38 = arith.constant 0 : index
    %c0_39 = arith.constant 0 : index
    %218 = vector.load %arg5[%c1_37, %c0_38, %c0_39] : memref<2x256x256xf32, #tpu.memory_space<vmem>>, vector<1x256x256xf32>
    %219 = vector.shape_cast %218 : vector<1x256x256xf32> to vector<256x256xf32>
    %cst_40 = arith.constant dense<0.000000e+00> : vector<8x256xf32>
    %220 = tpu.matmul %212, %219, %cst_40 {dimension_numbers = #tpu.dot_dimension_numbers<[1], [0], [0], [1], [0, 0, 1, 1], [], []>} : vector<8x256xf32>, vector<256x256xf32>, vector<8x256xf32> -> vector<8x256xf32>
    %221 = arith.addf %220, %217 : vector<8x256xf32>
    %cst_41 = arith.constant 0.000000e+00 : f32
    %222 = vector.broadcast %cst_41 : f32 to vector<8x256xf32>
    %223 = arith.maximumf %221, %222 : vector<8x256xf32>
    %cst_42 = arith.constant dense<0.000000e+00> : vector<8x256xf32>
    %224 = tpu.matmul %199, %223, %cst_42 {dimension_numbers = #tpu.dot_dimension_numbers<[1], [0], [0], [1], [0, 0, 1, 1], [], []>} : vector<8x8xf32>, vector<8x256xf32>, vector<8x256xf32> -> vector<8x256xf32>
    %c0_43 = arith.constant 0 : index
    %c0_44 = arith.constant 0 : index
    %225 = vector.load %arg7[%c0_43, %c0_44] : memref<256x8xf32, #tpu.memory_space<vmem>>, vector<256x8xf32>
    %cst_45 = arith.constant dense<0.000000e+00> : vector<8x8xf32>
    %226 = tpu.matmul %224, %225, %cst_45 {dimension_numbers = #tpu.dot_dimension_numbers<[1], [0], [0], [1], [0, 0, 1, 1], [], []>} : vector<8x256xf32>, vector<256x8xf32>, vector<8x8xf32> -> vector<8x8xf32>
    %c0_46 = arith.constant 0 : index
    %c0_47 = arith.constant 0 : index
    %227 = memref.load %arg8[%c0_46, %c0_47] : memref<1x1xf32, #tpu.memory_space<smem>>
    %228 = vector.broadcast %227 : f32 to vector<8x8xf32>
    %229 = arith.addf %226, %228 : vector<8x8xf32>
    %c0_48 = arith.constant 0 : index
    %c0_49 = arith.constant 0 : index
    %230 = vector.load %arg9[%c0_48, %c0_49] : memref<8x8xf32, #tpu.memory_space<vmem>>, vector<8x8xf32>
    tpu.vector_store %arg9[%c0_48, %c0_49], %229 {strides = array<i32>} : memref<8x8xf32, #tpu.memory_space<vmem>>, vector<8x8xf32>,
    return
  }
}

</mosaic_0001>

<llo_original>
// kernel: tpu_custom_call.1
$region0: #{tpu_custom_call.1}
  #allocation0 [shape = 'u32[]', space=smem, size = 0x4, offset = 0x4, fixed_abs, tag = 'smem constant byte address 0x4 - core index']
  #allocation1 [shape = 'u32[144,128]{1,0:T(1,128)}', space=vmem, size = 0x12000, scoped, tag = 'internal scratch']
  #allocation2 [shape = 'f32[1,1]{1,0:T(1,128)S(6)}', space=smem, size = 0x200, scoped, tag = 'scoped memory for tpu_custom_call.1']
  %s0 = inlined_call_operand.vmem [shape: f32[8,8], index: 0, kind: input, shape index: {}]
  %s1 = inlined_call_operand.vmem [shape: f32[8,128], index: 1, kind: input, shape index: {}]
  %s2 = inlined_call_operand.hbm [shape: f32[8,128], index: 2, kind: input, shape index: {}]
  %s3 = inlined_call_operand.vmem [shape: f32[8,32,128], index: 3, kind: input, shape index: {}]
  %s4 = inlined_call_operand.hbm [shape: f32[8,8], index: 4, kind: input, shape index: {}]
  %s5 = inlined_call_operand.hbm [shape: f32[2,256,256], index: 5, kind: input, shape index: {}]
  %s6 = inlined_call_operand.vmem [shape: f32[2,256], index: 6, kind: input, shape index: {}]
  %s7 = inlined_call_operand.vmem [shape: f32[256,8], index: 7, kind: input, shape index: {}]
  %s8 = inlined_call_operand.<no memory space> [shape: f32[1,1], index: 8, kind: input, shape index: {}]
  %s9 = inlined_call_operand.hbm [shape: f32[8,8], index: 9, kind: output, shape index: {}]
  %s10 = sld [smem:[#allocation0]]
  $region58: #{tpu_custom_call.1} parent=0
    _
  %s12 = ssub.s32 1, %s10
  %s13 = scalar_select 0, %s12, %s10
  %14 = sst [smem:[#allocation2]] %s8
  $region1: #{tpu_custom_call.1} parent=0
    #allocation3 [shape = 'u8[4096]{0}', space=vmem, size = 0x1000, scoped, tag = 'input window, operand 2, single buffered']
    #allocation4 [shape = 's32[1]{0}', space=sflag, size = 0x4, scoped, tag = 'scoped memory for tpu_custom_call.1']
    #allocation5 [shape = 's32[1]{0}', space=sflag, size = 0x4, scoped, tag = 'scoped memory for tpu_custom_call.1']
    #allocation6 [shape = 'u8[4096]{0}', space=vmem, size = 0x1000, scoped, tag = 'input window, operand 4, single buffered']
    #allocation7 [shape = 's32[1]{0}', space=sflag, size = 0x4, scoped, tag = 'scoped memory for tpu_custom_call.1']
    #allocation8 [shape = 'u8[524288]{0}', space=vmem, size = 0x80000, scoped, tag = 'input window, operand 5, single buffered']
    #allocation9 [shape = 'u8[4096]{0}', space=vmem, size = 0x1000, scoped, tag = 'output window, operand 0, single buffered']
    %15 = vsyncpa [#allocation4], 0
    %16 = vsyncpa [#allocation7], 0
    %17 = vsyncpa [#allocation5], 0
    // Predicated region
    $region2: #{tpu_custom_call.1} parent=1 // pred_check
      _
    $region3: #{tpu_custom_call.1} parent=1 // pred_check_branch
      %19 = sbr.rel (0) target = $region5
    $region4: #{tpu_custom_call.1} parent=1 // pred_region
      _
    $region5: #{tpu_custom_call.1} parent=1 // pred_fallthru
      _
    // Predicated region
    $region6: #{tpu_custom_call.1} parent=1 // pred_check
      _
    $region7: #{tpu_custom_call.1} parent=1 // pred_check_branch
      %21 = sbr.rel (0) target = $region9
    $region8: #{tpu_custom_call.1} parent=1 // pred_region
      _
    $region9: #{tpu_custom_call.1} parent=1 // pred_fallthru
      _
    // Predicated region
    $region10: #{tpu_custom_call.1} parent=1 // pred_check
      _
    $region11: #{tpu_custom_call.1} parent=1 // pred_check_branch
      %23 = sbr.rel (0) target = $region13
    $region12: #{tpu_custom_call.1} parent=1 // pred_region
      %s25 = ssub.s32 128, 128
      %26 = vsyncadd [#allocation4], %s25
      %s28 = sshll.u32 [#allocation3], 4
      %s29 = int_to_ptr.vmem [resolvable:$true] %s28
      %31 = dma.hbm_to_vmem [thread:$0]  %s2, 128, %s29, [#allocation4]
    $region13: #{tpu_custom_call.1} parent=1 // pred_fallthru
      _
    // Predicated region
    $region14: #{tpu_custom_call.1} parent=1 // pred_check
      _
    $region15: #{tpu_custom_call.1} parent=1 // pred_check_branch
      %33 = sbr.rel (0) target = $region17
    $region16: #{tpu_custom_call.1} parent=1 // pred_region
      _
    $region17: #{tpu_custom_call.1} parent=1 // pred_fallthru
      _
    // Predicated region
    $region18: #{tpu_custom_call.1} parent=1 // pred_check
      _
    $region19: #{tpu_custom_call.1} parent=1 // pred_check_branch
      %35 = sbr.rel (0) target = $region21
    $region20: #{tpu_custom_call.1} parent=1 // pred_region
      %s37 = ssub.s32 128, 128
      %38 = vsyncadd [#allocation7], %s37
      %s40 = sshll.u32 [#allocation6], 4
      %s41 = int_to_ptr.vmem [resolvable:$true] %s40
      %43 = dma.hbm_to_vmem [thread:$0]  %s4, 128, %s41, [#allocation7]
    $region21: #{tpu_custom_call.1} parent=1 // pred_fallthru
      _
    // Predicated region
    $region22: #{tpu_custom_call.1} parent=1 // pred_check
      _
    $region23: #{tpu_custom_call.1} parent=1 // pred_check_branch
      %45 = sbr.rel (0) target = $region25
    $region24: #{tpu_custom_call.1} parent=1 // pred_region
      %s47 = ssub.s32 16384, 16384
      %48 = vsyncadd [#allocation7], %s47
      %s49 = sshll.u32 [#allocation8], 4
      %s50 = int_to_ptr.vmem [resolvable:$true] %s49
      %55 = dma.hbm_to_vmem [thread:$0]  %s5, 16384, %s50, [#allocation7], 256, 256, 16
    $region25: #{tpu_custom_call.1} parent=1 // pred_fallthru
      _
    // Predicated region
    $region26: #{tpu_custom_call.1} parent=1 // pred_check
      _
    $region27: #{tpu_custom_call.1} parent=1 // pred_check_branch
      %57 = sbr.rel (0) target = $region29
    $region28: #{tpu_custom_call.1} parent=1 // pred_region
      _
    $region29: #{tpu_custom_call.1} parent=1 // pred_fallthru
      _
    // Predicated region
    $region30: #{tpu_custom_call.1} parent=1 // pred_check
      _
    $region31: #{tpu_custom_call.1} parent=1 // pred_check_branch
      %59 = sbr.rel (0) target = $region33
    $region32: #{tpu_custom_call.1} parent=1 // pred_region
      _
    $region33: #{tpu_custom_call.1} parent=1 // pred_fallthru
      _
    // Predicated region
    $region34: #{tpu_custom_call.1} parent=1 // pred_check
      _
    $region35: #{tpu_custom_call.1} parent=1 // pred_check_branch
      %61 = sbr.rel (0) target = $region37
    $region36: #{tpu_custom_call.1} parent=1 // pred_region
      _
    $region37: #{tpu_custom_call.1} parent=1 // pred_fallthru
      _
    // Predicated region
    $region38: #{tpu_custom_call.1} parent=1 // pred_check
      _
    $region39: #{tpu_custom_call.1} parent=1 // pred_check_branch
      %63 = sbr.rel (0) target = $region41
    $region40: #{tpu_custom_call.1} parent=1 // pred_region
      %64 = dma.done [#allocation4], 128
    $region41: #{tpu_custom_call.1} parent=1 // pred_fallthru
      _
    // Predicated region
    $region42: #{tpu_custom_call.1} parent=1 // pred_check
      _
    $region43: #{tpu_custom_call.1} parent=1 // pred_check_branch
      %66 = sbr.rel (0) target = $region45
    $region44: #{tpu_custom_call.1} parent=1 // pred_region
      %67 = dma.done [#allocation7], 128
    $region45: #{tpu_custom_call.1} parent=1 // pred_fallthru
      _
    // Predicated region
    $region46: #{tpu_custom_call.1} parent=1 // pred_check
      _
    $region47: #{tpu_custom_call.1} parent=1 // pred_check_branch
      %69 = sbr.rel (0) target = $region49
    $region48: #{tpu_custom_call.1} parent=1 // pred_region
      %70 = dma.done [#allocation7], 16384
    $region49: #{tpu_custom_call.1} parent=1 // pred_fallthru
      _
    %v71 = vld [vmem:[%s0] sm:$0xff]
    %v72 = vld [vmem:[%s1] sm:$0xff]
    %v73 = vld [vmem:[#allocation3] sm:$0xff]
    %75 = vset.pattern.permute.xlu0 0
    %76 = vperm.xlu0 %75, %v71
    %v77 = vpop.permute.xlu0 %76
    %v79 = vmul.f32 %v77, %v72
    %v80 = vadd.f32 %v79, %v73
    %81 = vset.pattern.permute.xlu0 1
    %82 = vperm.xlu0 %81, %v71
    %v83 = vpop.permute.xlu0 %82
    %v85 = vmul.f32 %v83, %v72
    %v86 = vadd.f32 %v85, %v73
    %87 = vset.pattern.permute.xlu0 2
    %88 = vperm.xlu0 %87, %v71
    %v89 = vpop.permute.xlu0 %88
    %v91 = vmul.f32 %v89, %v72
    %v92 = vadd.f32 %v91, %v73
    %93 = vset.pattern.permute.xlu0 3
    %94 = vperm.xlu0 %93, %v71
    %v95 = vpop.permute.xlu0 %94
    %v97 = vmul.f32 %v95, %v72
    %v98 = vadd.f32 %v97, %v73
    %99 = vset.pattern.permute.xlu0 4
    %100 = vperm.xlu0 %99, %v71
    %v101 = vpop.permute.xlu0 %100
    %v103 = vmul.f32 %v101, %v72
    %v104 = vadd.f32 %v103, %v73
    %105 = vset.pattern.permute.xlu0 5
    %106 = vperm.xlu0 %105, %v71
    %v107 = vpop.permute.xlu0 %106
    %v109 = vmul.f32 %v107, %v72
    %v110 = vadd.f32 %v109, %v73
    %111 = vset.pattern.permute.xlu0 6
    %112 = vperm.xlu0 %111, %v71
    %v113 = vpop.permute.xlu0 %112
    %v115 = vmul.f32 %v113, %v72
    %v116 = vadd.f32 %v115, %v73
    %117 = vset.pattern.permute.xlu0 7
    %118 = vperm.xlu0 %117, %v71
    %v119 = vpop.permute.xlu0 %118
    %v121 = vmul.f32 %v119, %v72
    %v122 = vadd.f32 %v121, %v73
    %v123 = vld [vmem:[%s3] sm:$0xff]
    %v124 = vld [vmem:[%s3 + $0x8] sm:$0xff]
    %v125 = vld [vmem:[%s3 + $0x10] sm:$0xff]
    %v126 = vld [vmem:[%s3 + $0x18] sm:$0xff]
    %v127 = vld [vmem:[%s3 + $0x20] sm:$0xff]
    %v128 = vld [vmem:[%s3 + $0x28] sm:$0xff]
    %v129 = vld [vmem:[%s3 + $0x30] sm:$0xff]
    %v130 = vld [vmem:[%s3 + $0x38] sm:$0xff]
    %v131 = vld [vmem:[%s3 + $0x40] sm:$0xff]
    %v132 = vld [vmem:[%s3 + $0x48] sm:$0xff]
    %v133 = vld [vmem:[%s3 + $0x50] sm:$0xff]
    %v134 = vld [vmem:[%s3 + $0x58] sm:$0xff]
    %v135 = vld [vmem:[%s3 + $0x60] sm:$0xff]
    %v136 = vld [vmem:[%s3 + $0x68] sm:$0xff]
    %v137 = vld [vmem:[%s3 + $0x70] sm:$0xff]
    %v138 = vld [vmem:[%s3 + $0x78] sm:$0xff]
    %v139 = vld [vmem:[%s3 + $0x80] sm:$0xff]
    %v140 = vld [vmem:[%s3 + $0x88] sm:$0xff]
    %v141 = vld [vmem:[%s3 + $0x90] sm:$0xff]
    %v142 = vld [vmem:[%s3 + $0x98] sm:$0xff]
    %v143 = vld [vmem:[%s3 + $0xa0] sm:$0xff]
    %v144 = vld [vmem:[%s3 + $0xa8] sm:$0xff]
    %v145 = vld [vmem:[%s3 + $0xb0] sm:$0xff]
    %v146 = vld [vmem:[%s3 + $0xb8] sm:$0xff]
    %v147 = vld [vmem:[%s3 + $0xc0] sm:$0xff]
    %v148 = vld [vmem:[%s3 + $0xc8] sm:$0xff]
    %v149 = vld [vmem:[%s3 + $0xd0] sm:$0xff]
    %v150 = vld [vmem:[%s3 + $0xd8] sm:$0xff]
    %v151 = vld [vmem:[%s3 + $0xe0] sm:$0xff]
    %v152 = vld [vmem:[%s3 + $0xe8] sm:$0xff]
    %v153 = vld [vmem:[%s3 + $0xf0] sm:$0xff]
    %v154 = vld [vmem:[%s3 + $0xf8] sm:$0xff]
    %v155 = vmul.f32 %v123, 0.0
    %v156 = vmul.f32 %v124, 0.0
    %v157 = vmul.f32 %v125, 0.0
    %v158 = vmul.f32 %v126, 0.0
    %v159 = vmul.f32 %v127, 0.0
    %v160 = vmul.f32 %v128, 0.0
    %v161 = vmul.f32 %v129, 0.0
    %v162 = vmul.f32 %v130, 0.0
    %v163 = vmul.f32 %v131, 0.0
    %v164 = vmul.f32 %v132, 0.0
    %v165 = vmul.f32 %v133, 0.0
    %v166 = vmul.f32 %v134, 0.0
    %v167 = vmul.f32 %v135, 0.0
    %v168 = vmul.f32 %v136, 0.0
    %v169 = vmul.f32 %v137, 0.0
    %v170 = vmul.f32 %v138, 0.0
    %v171 = vmul.f32 %v139, 0.0
    %v172 = vmul.f32 %v140, 0.0
    %v173 = vmul.f32 %v141, 0.0
    %v174 = vmul.f32 %v142, 0.0
    %v175 = vmul.f32 %v143, 0.0
    %v176 = vmul.f32 %v144, 0.0
    %v177 = vmul.f32 %v145, 0.0
    %v178 = vmul.f32 %v146, 0.0
    %v179 = vmul.f32 %v147, 0.0
    %v180 = vmul.f32 %v148, 0.0
    %v181 = vmul.f32 %v149, 0.0
    %v182 = vmul.f32 %v150, 0.0
    %v183 = vmul.f32 %v151, 0.0
    %v184 = vmul.f32 %v152, 0.0
    %v185 = vmul.f32 %v153, 0.0
    %v186 = vmul.f32 %v154, 0.0
    %v187 = vadd.f32 %v155, %v156
    %v188 = vadd.f32 %v187, %v157
    %v189 = vadd.f32 %v188, %v158
    %v190 = vrot.slane %v189, 4
    %v191 = vadd.f32 %v189, %v190
    %v192 = vrot.slane %v191, 2
    %v193 = vadd.f32 %v191, %v192
    %v194 = vrot.slane %v193, 1
    %v195 = vadd.f32 %v193, %v194
    %v196 = vadd.f32 %v159, %v160
    %v197 = vadd.f32 %v196, %v161
    %v198 = vadd.f32 %v197, %v162
    %v199 = vrot.slane %v198, 4
    %v200 = vadd.f32 %v198, %v199
    %v201 = vrot.slane %v200, 2
    %v202 = vadd.f32 %v200, %v201
    %v203 = vrot.slane %v202, 1
    %v204 = vadd.f32 %v202, %v203
    %v205 = vadd.f32 %v163, %v164
    %v206 = vadd.f32 %v205, %v165
    %v207 = vadd.f32 %v206, %v166
    %v208 = vrot.slane %v207, 4
    %v209 = vadd.f32 %v207, %v208
    %v210 = vrot.slane %v209, 2
    %v211 = vadd.f32 %v209, %v210
    %v212 = vrot.slane %v211, 1
    %v213 = vadd.f32 %v211, %v212
    %v214 = vadd.f32 %v167, %v168
    %v215 = vadd.f32 %v214, %v169
    %v216 = vadd.f32 %v215, %v170
    %v217 = vrot.slane %v216, 4
    %v218 = vadd.f32 %v216, %v217
    %v219 = vrot.slane %v218, 2
    %v220 = vadd.f32 %v218, %v219
    %v221 = vrot.slane %v220, 1
    %v222 = vadd.f32 %v220, %v221
    %v223 = vadd.f32 %v171, %v172
    %v224 = vadd.f32 %v223, %v173
    %v225 = vadd.f32 %v224, %v174
    %v226 = vrot.slane %v225, 4
    %v227 = vadd.f32 %v225, %v226
    %v228 = vrot.slane %v227, 2
    %v229 = vadd.f32 %v227, %v228
    %v230 = vrot.slane %v229, 1
    %v231 = vadd.f32 %v229, %v230
    %v232 = vadd.f32 %v175, %v176
    %v233 = vadd.f32 %v232, %v177
    %v234 = vadd.f32 %v233, %v178
    %v235 = vrot.slane %v234, 4
    %v236 = vadd.f32 %v234, %v235
    %v237 = vrot.slane %v236, 2
    %v238 = vadd.f32 %v236, %v237
    %v239 = vrot.slane %v238, 1
    %v240 = vadd.f32 %v238, %v239
    %v241 = vadd.f32 %v179, %v180
    %v242 = vadd.f32 %v241, %v181
    %v243 = vadd.f32 %v242, %v182
    %v244 = vrot.slane %v243, 4
    %v245 = vadd.f32 %v243, %v244
    %v246 = vrot.slane %v245, 2
    %v247 = vadd.f32 %v245, %v246
    %v248 = vrot.slane %v247, 1
    %v249 = vadd.f32 %v247, %v248
    %v250 = vadd.f32 %v183, %v184
    %v251 = vadd.f32 %v250, %v185
    %v252 = vadd.f32 %v251, %v186
    %v253 = vrot.slane %v252, 4
    %v254 = vadd.f32 %v252, %v253
    %v255 = vrot.slane %v254, 2
    %v256 = vadd.f32 %v254, %v255
    %v257 = vrot.slane %v256, 1
    %v258 = vadd.f32 %v256, %v257
    %v260 = vrot.slane %v80, 1
    %v261 = vrot.slane %v80, 2
    %v262 = vrot.slane %v80, 3
    %v263 = vrot.slane %v80, 4
    %v264 = vrot.slane %v80, 5
    %v265 = vrot.slane %v80, 6
    %v266 = vrot.slane %v80, 7
    %v275 = vadd.f32 %v195, %v80
    %v276 = vadd.f32 %v204, %v260
    %v277 = vadd.f32 %v213, %v261
    %v278 = vadd.f32 %v222, %v262
    %v279 = vadd.f32 %v231, %v263
    %v280 = vadd.f32 %v240, %v264
    %v281 = vadd.f32 %v249, %v265
    %v282 = vadd.f32 %v258, %v266
    %v283 = vxor.u32 %v275, 2147483648
    %v284 = vxor.u32 %v276, 2147483648
    %v285 = vxor.u32 %v277, 2147483648
    %v286 = vxor.u32 %v278, 2147483648
    %v287 = vxor.u32 %v279, 2147483648
    %v288 = vxor.u32 %v280, 2147483648
    %v289 = vxor.u32 %v281, 2147483648
    %v290 = vxor.u32 %v282, 2147483648
    %v291 = vmul.f32 %v283, 1.442695
    %v292 = vpow.pop %v291
    %v293 = vmul.f32 %v284, 1.442695
    %v294 = vpow.pop %v293
    %v295 = vmul.f32 %v285, 1.442695
    %v296 = vpow.pop %v295
    %v297 = vmul.f32 %v286, 1.442695
    %v298 = vpow.pop %v297
    %v299 = vmul.f32 %v287, 1.442695
    %v300 = vpow.pop %v299
    %v301 = vmul.f32 %v288, 1.442695
    %v302 = vpow.pop %v301
    %v303 = vmul.f32 %v289, 1.442695
    %v304 = vpow.pop %v303
    %v305 = vmul.f32 %v290, 1.442695
    %v306 = vpow.pop %v305
    %v307 = vadd.f32 %v292, 1.0
    %v308 = vadd.f32 %v294, 1.0
    %v309 = vadd.f32 %v296, 1.0
    %v310 = vadd.f32 %v298, 1.0
    %v311 = vadd.f32 %v300, 1.0
    %v312 = vadd.f32 %v302, 1.0
    %v313 = vadd.f32 %v304, 1.0
    %v314 = vadd.f32 %v306, 1.0
    %v315 = vrcp.pop %v307
    %v316 = vmul.f32 1.0, %v315
    %v317 = vrcp.pop %v308
    %v318 = vmul.f32 1.0, %v317
    %v319 = vrcp.pop %v309
    %v320 = vmul.f32 1.0, %v319
    %v321 = vrcp.pop %v310
    %v322 = vmul.f32 1.0, %v321
    %v323 = vrcp.pop %v311
    %v324 = vmul.f32 1.0, %v323
    %v325 = vrcp.pop %v312
    %v326 = vmul.f32 1.0, %v325
    %v327 = vrcp.pop %v313
    %v328 = vmul.f32 1.0, %v327
    %v329 = vrcp.pop %v314
    %v330 = vmul.f32 1.0, %v329
    %v331 = vtanh.pop %v275
    %v332 = vtanh.pop %v276
    %v333 = vtanh.pop %v277
    %v334 = vtanh.pop %v278
    %v335 = vtanh.pop %v279
    %v336 = vtanh.pop %v280
    %v337 = vtanh.pop %v281
    %v338 = vtanh.pop %v282
    %v339 = vmul.f32 %v316, 0.0
    %v340 = vmul.f32 %v318, 0.0
    %v341 = vmul.f32 %v320, 0.0
    %v342 = vmul.f32 %v322, 0.0
    %v343 = vmul.f32 %v324, 0.0
    %v344 = vmul.f32 %v326, 0.0
    %v345 = vmul.f32 %v328, 0.0
    %v346 = vmul.f32 %v330, 0.0
    %355 = vrot.lane.b32.xlu0 %v331, 64
    %v356 = vpop.permute.xlu0 %355
    %357 = vrot.lane.b32.xlu0 %v332, 64
    %v358 = vpop.permute.xlu0 %357
    %359 = vrot.lane.b32.xlu0 %v333, 64
    %v360 = vpop.permute.xlu0 %359
    %361 = vrot.lane.b32.xlu0 %v334, 64
    %v362 = vpop.permute.xlu0 %361
    %363 = vrot.lane.b32.xlu0 %v335, 64
    %v364 = vpop.permute.xlu0 %363
    %365 = vrot.lane.b32.xlu0 %v336, 64
    %v366 = vpop.permute.xlu0 %365
    %367 = vrot.lane.b32.xlu0 %v337, 64
    %v368 = vpop.permute.xlu0 %367
    %369 = vrot.lane.b32.xlu0 %v338, 64
    %v370 = vpop.permute.xlu0 %369
    %v379 = vmul.f32 %v316, %v356
    %v380 = vmul.f32 %v318, %v358
    %v381 = vmul.f32 %v320, %v360
    %v382 = vmul.f32 %v322, %v362
    %v383 = vmul.f32 %v324, %v364
    %v384 = vmul.f32 %v326, %v366
    %v385 = vmul.f32 %v328, %v368
    %v386 = vmul.f32 %v330, %v370
    %395 = vrot.lane.b32.xlu0 %v379, 32
    %v396 = vpop.permute.xlu0 %395
    %397 = vrot.lane.b32.xlu0 %v380, 32
    %v398 = vpop.permute.xlu0 %397
    %399 = vrot.lane.b32.xlu0 %v381, 32
    %v400 = vpop.permute.xlu0 %399
    %401 = vrot.lane.b32.xlu0 %v382, 32
    %v402 = vpop.permute.xlu0 %401
    %403 = vrot.lane.b32.xlu0 %v383, 32
    %v404 = vpop.permute.xlu0 %403
    %405 = vrot.lane.b32.xlu0 %v384, 32
    %v406 = vpop.permute.xlu0 %405
    %407 = vrot.lane.b32.xlu0 %v385, 32
    %v408 = vpop.permute.xlu0 %407
    %409 = vrot.lane.b32.xlu0 %v386, 32
    %v410 = vpop.permute.xlu0 %409
    %v419 = vadd.f32 %v339, %v396
    %v420 = vadd.f32 %v340, %v398
    %v421 = vadd.f32 %v341, %v400
    %v422 = vadd.f32 %v342, %v402
    %v423 = vadd.f32 %v343, %v404
    %v424 = vadd.f32 %v344, %v406
    %v425 = vadd.f32 %v345, %v408
    %v426 = vadd.f32 %v346, %v410
    %v427 = vtanh.pop %v419
    %v428 = vtanh.pop %v420
    %v429 = vtanh.pop %v421
    %v430 = vtanh.pop %v422
    %v431 = vtanh.pop %v423
    %v432 = vtanh.pop %v424
    %v433 = vtanh.pop %v425
    %v434 = vtanh.pop %v426
    %443 = vrot.lane.b32.xlu0 %v427, 64
    %v444 = vpop.permute.xlu0 %443
    %445 = vrot.lane.b32.xlu0 %v428, 64
    %v446 = vpop.permute.xlu0 %445
    %447 = vrot.lane.b32.xlu0 %v429, 64
    %v448 = vpop.permute.xlu0 %447
    %449 = vrot.lane.b32.xlu0 %v430, 64
    %v450 = vpop.permute.xlu0 %449
    %451 = vrot.lane.b32.xlu0 %v431, 64
    %v452 = vpop.permute.xlu0 %451
    %453 = vrot.lane.b32.xlu0 %v432, 64
    %v454 = vpop.permute.xlu0 %453
    %455 = vrot.lane.b32.xlu0 %v433, 64
    %v456 = vpop.permute.xlu0 %455
    %457 = vrot.lane.b32.xlu0 %v434, 64
    %v458 = vpop.permute.xlu0 %457
    %v467 = vmul.f32 %v316, %v444
    %v468 = vmul.f32 %v318, %v446
    %v469 = vmul.f32 %v320, %v448
    %v470 = vmul.f32 %v322, %v450
    %v471 = vmul.f32 %v324, %v452
    %v472 = vmul.f32 %v326, %v454
    %v473 = vmul.f32 %v328, %v456
    %v474 = vmul.f32 %v330, %v458
    %v475 = vlaneseq
    %v476 = vshrl.u32 %v475, 7
    %v477 = vsub.s32 0, %v476
    %v478 = vrot.slane %v467, %v477
    %s480 = sor.u32 256, 96
    %481 = vbcast.lane.b32.xlu0 %v478, %s480
    %v482 = vpop.permute.xlu0 %481
    %s484 = sor.u32 256, 104
    %485 = vbcast.lane.b32.xlu0 %v478, %s484
    %v486 = vpop.permute.xlu0 %485
    %s488 = sor.u32 256, 112
    %489 = vbcast.lane.b32.xlu0 %v478, %s488
    %v490 = vpop.permute.xlu0 %489
    %s492 = sor.u32 256, 120
    %493 = vbcast.lane.b32.xlu0 %v478, %s492
    %v494 = vpop.permute.xlu0 %493
    %v495 = vlaneseq
    %v496 = vshrl.u32 %v495, 7
    %v497 = vsub.s32 0, %v496
    %v498 = vrot.slane %v468, %v497
    %s500 = sor.u32 256, 96
    %501 = vbcast.lane.b32.xlu0 %v498, %s500
    %v502 = vpop.permute.xlu0 %501
    %s504 = sor.u32 256, 104
    %505 = vbcast.lane.b32.xlu0 %v498, %s504
    %v506 = vpop.permute.xlu0 %505
    %s508 = sor.u32 256, 112
    %509 = vbcast.lane.b32.xlu0 %v498, %s508
    %v510 = vpop.permute.xlu0 %509
    %s512 = sor.u32 256, 120
    %513 = vbcast.lane.b32.xlu0 %v498, %s512
    %v514 = vpop.permute.xlu0 %513
    %v515 = vlaneseq
    %v516 = vshrl.u32 %v515, 7
    %v517 = vsub.s32 0, %v516
    %v518 = vrot.slane %v469, %v517
    %s520 = sor.u32 256, 96
    %521 = vbcast.lane.b32.xlu0 %v518, %s520
    %v522 = vpop.permute.xlu0 %521
    %s524 = sor.u32 256, 104
    %525 = vbcast.lane.b32.xlu0 %v518, %s524
    %v526 = vpop.permute.xlu0 %525
    %s528 = sor.u32 256, 112
    %529 = vbcast.lane.b32.xlu0 %v518, %s528
    %v530 = vpop.permute.xlu0 %529
    %s532 = sor.u32 256, 120
    %533 = vbcast.lane.b32.xlu0 %v518, %s532
    %v534 = vpop.permute.xlu0 %533
    %v535 = vlaneseq
    %v536 = vshrl.u32 %v535, 7
    %v537 = vsub.s32 0, %v536
    %v538 = vrot.slane %v470, %v537
    %s540 = sor.u32 256, 96
    %541 = vbcast.lane.b32.xlu0 %v538, %s540
    %v542 = vpop.permute.xlu0 %541
    %s544 = sor.u32 256, 104
    %545 = vbcast.lane.b32.xlu0 %v538, %s544
    %v546 = vpop.permute.xlu0 %545
    %s548 = sor.u32 256, 112
    %549 = vbcast.lane.b32.xlu0 %v538, %s548
    %v550 = vpop.permute.xlu0 %549
    %s552 = sor.u32 256, 120
    %553 = vbcast.lane.b32.xlu0 %v538, %s552
    %v554 = vpop.permute.xlu0 %553
    %v555 = vlaneseq
    %v556 = vshrl.u32 %v555, 7
    %v557 = vsub.s32 0, %v556
    %v558 = vrot.slane %v471, %v557
    %s560 = sor.u32 256, 96
    %561 = vbcast.lane.b32.xlu0 %v558, %s560
    %v562 = vpop.permute.xlu0 %561
    %s564 = sor.u32 256, 104
    %565 = vbcast.lane.b32.xlu0 %v558, %s564
    %v566 = vpop.permute.xlu0 %565
    %s568 = sor.u32 256, 112
    %569 = vbcast.lane.b32.xlu0 %v558, %s568
    %v570 = vpop.permute.xlu0 %569
    %s572 = sor.u32 256, 120
    %573 = vbcast.lane.b32.xlu0 %v558, %s572
    %v574 = vpop.permute.xlu0 %573
    %v575 = vlaneseq
    %v576 = vshrl.u32 %v575, 7
    %v577 = vsub.s32 0, %v576
    %v578 = vrot.slane %v472, %v577
    %s580 = sor.u32 256, 96
    %581 = vbcast.lane.b32.xlu0 %v578, %s580
    %v582 = vpop.permute.xlu0 %581
    %s584 = sor.u32 256, 104
    %585 = vbcast.lane.b32.xlu0 %v578, %s584
    %v586 = vpop.permute.xlu0 %585
    %s588 = sor.u32 256, 112
    %589 = vbcast.lane.b32.xlu0 %v578, %s588
    %v590 = vpop.permute.xlu0 %589
    %s592 = sor.u32 256, 120
    %593 = vbcast.lane.b32.xlu0 %v578, %s592
    %v594 = vpop.permute.xlu0 %593
    %v595 = vlaneseq
    %v596 = vshrl.u32 %v595, 7
    %v597 = vsub.s32 0, %v596
    %v598 = vrot.slane %v473, %v597
    %s600 = sor.u32 256, 96
    %601 = vbcast.lane.b32.xlu0 %v598, %s600
    %v602 = vpop.permute.xlu0 %601
    %s604 = sor.u32 256, 104
    %605 = vbcast.lane.b32.xlu0 %v598, %s604
    %v606 = vpop.permute.xlu0 %605
    %s608 = sor.u32 256, 112
    %609 = vbcast.lane.b32.xlu0 %v598, %s608
    %v610 = vpop.permute.xlu0 %609
    %s612 = sor.u32 256, 120
    %613 = vbcast.lane.b32.xlu0 %v598, %s612
    %v614 = vpop.permute.xlu0 %613
    %v615 = vlaneseq
    %v616 = vshrl.u32 %v615, 7
    %v617 = vsub.s32 0, %v616
    %v618 = vrot.slane %v474, %v617
    %s620 = sor.u32 256, 96
    %621 = vbcast.lane.b32.xlu0 %v618, %s620
    %v622 = vpop.permute.xlu0 %621
    %s624 = sor.u32 256, 104
    %625 = vbcast.lane.b32.xlu0 %v618, %s624
    %v626 = vpop.permute.xlu0 %625
    %s628 = sor.u32 256, 112
    %629 = vbcast.lane.b32.xlu0 %v618, %s628
    %v630 = vpop.permute.xlu0 %629
    %s632 = sor.u32 256, 120
    %633 = vbcast.lane.b32.xlu0 %v618, %s632
    %v634 = vpop.permute.xlu0 %633
    %v635 = vmul.f32 %v123, %v482
    %v636 = vmul.f32 %v124, %v486
    %v637 = vmul.f32 %v125, %v490
    %v638 = vmul.f32 %v126, %v494
    %v639 = vmul.f32 %v127, %v502
    %v640 = vmul.f32 %v128, %v506
    %v641 = vmul.f32 %v129, %v510
    %v642 = vmul.f32 %v130, %v514
    %v643 = vmul.f32 %v131, %v522
    %v644 = vmul.f32 %v132, %v526
    %v645 = vmul.f32 %v133, %v530
    %v646 = vmul.f32 %v134, %v534
    %v647 = vmul.f32 %v135, %v542
    %v648 = vmul.f32 %v136, %v546
    %v649 = vmul.f32 %v137, %v550
    %v650 = vmul.f32 %v138, %v554
    %v651 = vmul.f32 %v139, %v562
    %v652 = vmul.f32 %v140, %v566
    %v653 = vmul.f32 %v141, %v570
    %v654 = vmul.f32 %v142, %v574
    %v655 = vmul.f32 %v143, %v582
    %v656 = vmul.f32 %v144, %v586
    %v657 = vmul.f32 %v145, %v590
    %v658 = vmul.f32 %v146, %v594
    %v659 = vmul.f32 %v147, %v602
    %v660 = vmul.f32 %v148, %v606
    %v661 = vmul.f32 %v149, %v610
    %v662 = vmul.f32 %v150, %v614
    %v663 = vmul.f32 %v151, %v622
    %v664 = vmul.f32 %v152, %v626
    %v665 = vmul.f32 %v153, %v630
    %v666 = vmul.f32 %v154, %v634
    %v667 = vadd.f32 %v635, %v636
    %v668 = vadd.f32 %v667, %v637
    %v669 = vadd.f32 %v668, %v638
    %v670 = vrot.slane %v669, 4
    %v671 = vadd.f32 %v669, %v670
    %v672 = vrot.slane %v671, 2
    %v673 = vadd.f32 %v671, %v672
    %v674 = vrot.slane %v673, 1
    %v675 = vadd.f32 %v673, %v674
    %v676 = vadd.f32 %v639, %v640
    %v677 = vadd.f32 %v676, %v641
    %v678 = vadd.f32 %v677, %v642
    %v679 = vrot.slane %v678, 4
    %v680 = vadd.f32 %v678, %v679
    %v681 = vrot.slane %v680, 2
    %v682 = vadd.f32 %v680, %v681
    %v683 = vrot.slane %v682, 1
    %v684 = vadd.f32 %v682, %v683
    %v685 = vadd.f32 %v643, %v644
    %v686 = vadd.f32 %v685, %v645
    %v687 = vadd.f32 %v686, %v646
    %v688 = vrot.slane %v687, 4
    %v689 = vadd.f32 %v687, %v688
    %v690 = vrot.slane %v689, 2
    %v691 = vadd.f32 %v689, %v690
    %v692 = vrot.slane %v691, 1
    %v693 = vadd.f32 %v691, %v692
    %v694 = vadd.f32 %v647, %v648
    %v695 = vadd.f32 %v694, %v649
    %v696 = vadd.f32 %v695, %v650
    %v697 = vrot.slane %v696, 4
    %v698 = vadd.f32 %v696, %v697
    %v699 = vrot.slane %v698, 2
    %v700 = vadd.f32 %v698, %v699
    %v701 = vrot.slane %v700, 1
    %v702 = vadd.f32 %v700, %v701
    %v703 = vadd.f32 %v651, %v652
    %v704 = vadd.f32 %v703, %v653
    %v705 = vadd.f32 %v704, %v654
    %v706 = vrot.slane %v705, 4
    %v707 = vadd.f32 %v705, %v706
    %v708 = vrot.slane %v707, 2
    %v709 = vadd.f32 %v707, %v708
    %v710 = vrot.slane %v709, 1
    %v711 = vadd.f32 %v709, %v710
    %v712 = vadd.f32 %v655, %v656
    %v713 = vadd.f32 %v712, %v657
    %v714 = vadd.f32 %v713, %v658
    %v715 = vrot.slane %v714, 4
    %v716 = vadd.f32 %v714, %v715
    %v717 = vrot.slane %v716, 2
    %v718 = vadd.f32 %v716, %v717
    %v719 = vrot.slane %v718, 1
    %v720 = vadd.f32 %v718, %v719
    %v721 = vadd.f32 %v659, %v660
    %v722 = vadd.f32 %v721, %v661
    %v723 = vadd.f32 %v722, %v662
    %v724 = vrot.slane %v723, 4
    %v725 = vadd.f32 %v723, %v724
    %v726 = vrot.slane %v725, 2
    %v727 = vadd.f32 %v725, %v726
    %v728 = vrot.slane %v727, 1
    %v729 = vadd.f32 %v727, %v728
    %v730 = vadd.f32 %v663, %v664
    %v731 = vadd.f32 %v730, %v665
    %v732 = vadd.f32 %v731, %v666
    %v733 = vrot.slane %v732, 4
    %v734 = vadd.f32 %v732, %v733
    %v735 = vrot.slane %v734, 2
    %v736 = vadd.f32 %v734, %v735
    %v737 = vrot.slane %v736, 1
    %v738 = vadd.f32 %v736, %v737
    %v740 = vrot.slane %v86, 1
    %v741 = vrot.slane %v86, 2
    %v742 = vrot.slane %v86, 3
    %v743 = vrot.slane %v86, 4
    %v744 = vrot.slane %v86, 5
    %v745 = vrot.slane %v86, 6
    %v746 = vrot.slane %v86, 7
    %v755 = vadd.f32 %v675, %v86
    %v756 = vadd.f32 %v684, %v740
    %v757 = vadd.f32 %v693, %v741
    %v758 = vadd.f32 %v702, %v742
    %v759 = vadd.f32 %v711, %v743
    %v760 = vadd.f32 %v720, %v744
    %v761 = vadd.f32 %v729, %v745
    %v762 = vadd.f32 %v738, %v746
    %v763 = vxor.u32 %v755, 2147483648
    %v764 = vxor.u32 %v756, 2147483648
    %v765 = vxor.u32 %v757, 2147483648
    %v766 = vxor.u32 %v758, 2147483648
    %v767 = vxor.u32 %v759, 2147483648
    %v768 = vxor.u32 %v760, 2147483648
    %v769 = vxor.u32 %v761, 2147483648
    %v770 = vxor.u32 %v762, 2147483648
    %v771 = vmul.f32 %v763, 1.442695
    %v772 = vpow.pop %v771
    %v773 = vmul.f32 %v764, 1.442695
    %v774 = vpow.pop %v773
    %v775 = vmul.f32 %v765, 1.442695
    %v776 = vpow.pop %v775
    %v777 = vmul.f32 %v766, 1.442695
    %v778 = vpow.pop %v777
    %v779 = vmul.f32 %v767, 1.442695
    %v780 = vpow.pop %v779
    %v781 = vmul.f32 %v768, 1.442695
    %v782 = vpow.pop %v781
    %v783 = vmul.f32 %v769, 1.442695
    %v784 = vpow.pop %v783
    %v785 = vmul.f32 %v770, 1.442695
    %v786 = vpow.pop %v785
    %v787 = vadd.f32 %v772, 1.0
    %v788 = vadd.f32 %v774, 1.0
    %v789 = vadd.f32 %v776, 1.0
    %v790 = vadd.f32 %v778, 1.0
    %v791 = vadd.f32 %v780, 1.0
    %v792 = vadd.f32 %v782, 1.0
    %v793 = vadd.f32 %v784, 1.0
    %v794 = vadd.f32 %v786, 1.0
    %v795 = vrcp.pop %v787
    %v796 = vmul.f32 1.0, %v795
    %v797 = vrcp.pop %v788
    %v798 = vmul.f32 1.0, %v797
    %v799 = vrcp.pop %v789
    %v800 = vmul.f32 1.0, %v799
    %v801 = vrcp.pop %v790
    %v802 = vmul.f32 1.0, %v801
    %v803 = vrcp.pop %v791
    %v804 = vmul.f32 1.0, %v803
    %v805 = vrcp.pop %v792
    %v806 = vmul.f32 1.0, %v805
    %v807 = vrcp.pop %v793
    %v808 = vmul.f32 1.0, %v807
    %v809 = vrcp.pop %v794
    %v810 = vmul.f32 1.0, %v809
    %v811 = vtanh.pop %v755
    %v812 = vtanh.pop %v756
    %v813 = vtanh.pop %v757
    %v814 = vtanh.pop %v758
    %v815 = vtanh.pop %v759
    %v816 = vtanh.pop %v760
    %v817 = vtanh.pop %v761
    %v818 = vtanh.pop %v762
    %v819 = vmul.f32 %v796, %v419
    %v820 = vmul.f32 %v798, %v420
    %v821 = vmul.f32 %v800, %v421
    %v822 = vmul.f32 %v802, %v422
    %v823 = vmul.f32 %v804, %v423
    %v824 = vmul.f32 %v806, %v424
    %v825 = vmul.f32 %v808, %v425
    %v826 = vmul.f32 %v810, %v426
    %835 = vrot.lane.b32.xlu0 %v811, 64
    %v836 = vpop.permute.xlu0 %835
    %837 = vrot.lane.b32.xlu0 %v812, 64
    %v838 = vpop.permute.xlu0 %837
    %839 = vrot.lane.b32.xlu0 %v813, 64
    %v840 = vpop.permute.xlu0 %839
    %841 = vrot.lane.b32.xlu0 %v814, 64
    %v842 = vpop.permute.xlu0 %841
    %843 = vrot.lane.b32.xlu0 %v815, 64
    %v844 = vpop.permute.xlu0 %843
    %845 = vrot.lane.b32.xlu0 %v816, 64
    %v846 = vpop.permute.xlu0 %845
    %847 = vrot.lane.b32.xlu0 %v817, 64
    %v848 = vpop.permute.xlu0 %847
    %849 = vrot.lane.b32.xlu0 %v818, 64
    %v850 = vpop.permute.xlu0 %849
    %v859 = vmul.f32 %v796, %v836
    %v860 = vmul.f32 %v798, %v838
    %v861 = vmul.f32 %v800, %v840
    %v862 = vmul.f32 %v802, %v842
    %v863 = vmul.f32 %v804, %v844
    %v864 = vmul.f32 %v806, %v846
    %v865 = vmul.f32 %v808, %v848
    %v866 = vmul.f32 %v810, %v850
    %875 = vrot.lane.b32.xlu0 %v859, 32
    %v876 = vpop.permute.xlu0 %875
    %877 = vrot.lane.b32.xlu0 %v860, 32
    %v878 = vpop.permute.xlu0 %877
    %879 = vrot.lane.b32.xlu0 %v861, 32
    %v880 = vpop.permute.xlu0 %879
    %881 = vrot.lane.b32.xlu0 %v862, 32
    %v882 = vpop.permute.xlu0 %881
    %883 = vrot.lane.b32.xlu0 %v863, 32
    %v884 = vpop.permute.xlu0 %883
    %885 = vrot.lane.b32.xlu0 %v864, 32
    %v886 = vpop.permute.xlu0 %885
    %887 = vrot.lane.b32.xlu0 %v865, 32
    %v888 = vpop.permute.xlu0 %887
    %889 = vrot.lane.b32.xlu0 %v866, 32
    %v890 = vpop.permute.xlu0 %889
    %v899 = vadd.f32 %v819, %v876
    %v900 = vadd.f32 %v820, %v878
    %v901 = vadd.f32 %v821, %v880
    %v902 = vadd.f32 %v822, %v882
    %v903 = vadd.f32 %v823, %v884
    %v904 = vadd.f32 %v824, %v886
    %v905 = vadd.f32 %v825, %v888
    %v906 = vadd.f32 %v826, %v890
    %v907 = vtanh.pop %v899
    %v908 = vtanh.pop %v900
    %v909 = vtanh.pop %v901
    %v910 = vtanh.pop %v902
    %v911 = vtanh.pop %v903
    %v912 = vtanh.pop %v904
    %v913 = vtanh.pop %v905
    %v914 = vtanh.pop %v906
    %923 = vrot.lane.b32.xlu0 %v907, 64
    %v924 = vpop.permute.xlu0 %923
    %925 = vrot.lane.b32.xlu0 %v908, 64
    %v926 = vpop.permute.xlu0 %925
    %927 = vrot.lane.b32.xlu0 %v909, 64
    %v928 = vpop.permute.xlu0 %927
    %929 = vrot.lane.b32.xlu0 %v910, 64
    %v930 = vpop.permute.xlu0 %929
    %931 = vrot.lane.b32.xlu0 %v911, 64
    %v932 = vpop.permute.xlu0 %931
    %933 = vrot.lane.b32.xlu0 %v912, 64
    %v934 = vpop.permute.xlu0 %933
    %935 = vrot.lane.b32.xlu0 %v913, 64
    %v936 = vpop.permute.xlu0 %935
    %937 = vrot.lane.b32.xlu0 %v914, 64
    %v938 = vpop.permute.xlu0 %937
    %v947 = vmul.f32 %v796, %v924
    %v948 = vmul.f32 %v798, %v926
    %v949 = vmul.f32 %v800, %v928
    %v950 = vmul.f32 %v802, %v930
    %v951 = vmul.f32 %v804, %v932
    %v952 = vmul.f32 %v806, %v934
    %v953 = vmul.f32 %v808, %v936
    %v954 = vmul.f32 %v810, %v938
    %v955 = vlaneseq
    %v956 = vshrl.u32 %v955, 7
    %v957 = vsub.s32 0, %v956
    %v958 = vrot.slane %v947, %v957
    %s960 = sor.u32 256, 96
    %961 = vbcast.lane.b32.xlu0 %v958, %s960
    %v962 = vpop.permute.xlu0 %961
    %s964 = sor.u32 256, 104
    %965 = vbcast.lane.b32.xlu0 %v958, %s964
    %v966 = vpop.permute.xlu0 %965
    %s968 = sor.u32 256, 112
    %969 = vbcast.lane.b32.xlu0 %v958, %s968
    %v970 = vpop.permute.xlu0 %969
    %s972 = sor.u32 256, 120
    %973 = vbcast.lane.b32.xlu0 %v958, %s972
    %v974 = vpop.permute.xlu0 %973
    %v975 = vlaneseq
    %v976 = vshrl.u32 %v975, 7
    %v977 = vsub.s32 0, %v976
    %v978 = vrot.slane %v948, %v977
    %s980 = sor.u32 256, 96
    %981 = vbcast.lane.b32.xlu0 %v978, %s980
    %v982 = vpop.permute.xlu0 %981
    %s984 = sor.u32 256, 104
    %985 = vbcast.lane.b32.xlu0 %v978, %s984
    %v986 = vpop.permute.xlu0 %985
    %s988 = sor.u32 256, 112
    %989 = vbcast.lane.b32.xlu0 %v978, %s988
    %v990 = vpop.permute.xlu0 %989
    %s992 = sor.u32 256, 120
    %993 = vbcast.lane.b32.xlu0 %v978, %s992
    %v994 = vpop.permute.xlu0 %993
    %v995 = vlaneseq
    %v996 = vshrl.u32 %v995, 7
    %v997 = vsub.s32 0, %v996
    %v998 = vrot.slane %v949, %v997
    %s1000 = sor.u32 256, 96
    %1001 = vbcast.lane.b32.xlu0 %v998, %s1000
    %v1002 = vpop.permute.xlu0 %1001
    %s1004 = sor.u32 256, 104
    %1005 = vbcast.lane.b32.xlu0 %v998, %s1004
    %v1006 = vpop.permute.xlu0 %1005
    %s1008 = sor.u32 256, 112
    %1009 = vbcast.lane.b32.xlu0 %v998, %s1008
    %v1010 = vpop.permute.xlu0 %1009
    %s1012 = sor.u32 256, 120
    %1013 = vbcast.lane.b32.xlu0 %v998, %s1012
    %v1014 = vpop.permute.xlu0 %1013
    %v1015 = vlaneseq
    %v1016 = vshrl.u32 %v1015, 7
    %v1017 = vsub.s32 0, %v1016
    %v1018 = vrot.slane %v950, %v1017
    %s1020 = sor.u32 256, 96
    %1021 = vbcast.lane.b32.xlu0 %v1018, %s1020
    %v1022 = vpop.permute.xlu0 %1021
    %s1024 = sor.u32 256, 104
    %1025 = vbcast.lane.b32.xlu0 %v1018, %s1024
    %v1026 = vpop.permute.xlu0 %1025
    %s1028 = sor.u32 256, 112
    %1029 = vbcast.lane.b32.xlu0 %v1018, %s1028
    %v1030 = vpop.permute.xlu0 %1029
    %s1032 = sor.u32 256, 120
    %1033 = vbcast.lane.b32.xlu0 %v1018, %s1032
    %v1034 = vpop.permute.xlu0 %1033
    %v1035 = vlaneseq
    %v1036 = vshrl.u32 %v1035, 7
    %v1037 = vsub.s32 0, %v1036
    %v1038 = vrot.slane %v951, %v1037
    %s1040 = sor.u32 256, 96
    %1041 = vbcast.lane.b32.xlu0 %v1038, %s1040
    %v1042 = vpop.permute.xlu0 %1041
    %s1044 = sor.u32 256, 104
    %1045 = vbcast.lane.b32.xlu0 %v1038, %s1044
    %v1046 = vpop.permute.xlu0 %1045
    %s1048 = sor.u32 256, 112
    %1049 = vbcast.lane.b32.xlu0 %v1038, %s1048
    %v1050 = vpop.permute.xlu0 %1049
    %s1052 = sor.u32 256, 120
    %1053 = vbcast.lane.b32.xlu0 %v1038, %s1052
    %v1054 = vpop.permute.xlu0 %1053
    %v1055 = vlaneseq
    %v1056 = vshrl.u32 %v1055, 7
    %v1057 = vsub.s32 0, %v1056
    %v1058 = vrot.slane %v952, %v1057
    %s1060 = sor.u32 256, 96
    %1061 = vbcast.lane.b32.xlu0 %v1058, %s1060
    %v1062 = vpop.permute.xlu0 %1061
    %s1064 = sor.u32 256, 104
    %1065 = vbcast.lane.b32.xlu0 %v1058, %s1064
    %v1066 = vpop.permute.xlu0 %1065
    %s1068 = sor.u32 256, 112
    %1069 = vbcast.lane.b32.xlu0 %v1058, %s1068
    %v1070 = vpop.permute.xlu0 %1069
    %s1072 = sor.u32 256, 120
    %1073 = vbcast.lane.b32.xlu0 %v1058, %s1072
    %v1074 = vpop.permute.xlu0 %1073
    %v1075 = vlaneseq
    %v1076 = vshrl.u32 %v1075, 7
    %v1077 = vsub.s32 0, %v1076
    %v1078 = vrot.slane %v953, %v1077
    %s1080 = sor.u32 256, 96
    %1081 = vbcast.lane.b32.xlu0 %v1078, %s1080
    %v1082 = vpop.permute.xlu0 %1081
    %s1084 = sor.u32 256, 104
    %1085 = vbcast.lane.b32.xlu0 %v1078, %s1084
    %v1086 = vpop.permute.xlu0 %1085
    %s1088 = sor.u32 256, 112
    %1089 = vbcast.lane.b32.xlu0 %v1078, %s1088
    %v1090 = vpop.permute.xlu0 %1089
    %s1092 = sor.u32 256, 120
    %1093 = vbcast.lane.b32.xlu0 %v1078, %s1092
    %v1094 = vpop.permute.xlu0 %1093
    %v1095 = vlaneseq
    %v1096 = vshrl.u32 %v1095, 7
    %v1097 = vsub.s32 0, %v1096
    %v1098 = vrot.slane %v954, %v1097
    %s1100 = sor.u32 256, 96
    %1101 = vbcast.lane.b32.xlu0 %v1098, %s1100
    %v1102 = vpop.permute.xlu0 %1101
    %s1104 = sor.u32 256, 104
    %1105 = vbcast.lane.b32.xlu0 %v1098, %s1104
    %v1106 = vpop.permute.xlu0 %1105
    %s1108 = sor.u32 256, 112
    %1109 = vbcast.lane.b32.xlu0 %v1098, %s1108
    %v1110 = vpop.permute.xlu0 %1109
    %s1112 = sor.u32 256, 120
    %1113 = vbcast.lane.b32.xlu0 %v1098, %s1112
    %v1114 = vpop.permute.xlu0 %1113
    %v1115 = vmul.f32 %v123, %v962
    %v1116 = vmul.f32 %v124, %v966
    %v1117 = vmul.f32 %v125, %v970
    %v1118 = vmul.f32 %v126, %v974
    %v1119 = vmul.f32 %v127, %v982
    %v1120 = vmul.f32 %v128, %v986
    %v1121 = vmul.f32 %v129, %v990
    %v1122 = vmul.f32 %v130, %v994
    %v1123 = vmul.f32 %v131, %v1002
    %v1124 = vmul.f32 %v132, %v1006
    %v1125 = vmul.f32 %v133, %v1010
    %v1126 = vmul.f32 %v134, %v1014
    %v1127 = vmul.f32 %v135, %v1022
    %v1128 = vmul.f32 %v136, %v1026
    %v1129 = vmul.f32 %v137, %v1030
    %v1130 = vmul.f32 %v138, %v1034
    %v1131 = vmul.f32 %v139, %v1042
    %v1132 = vmul.f32 %v140, %v1046
    %v1133 = vmul.f32 %v141, %v1050
    %v1134 = vmul.f32 %v142, %v1054
    %v1135 = vmul.f32 %v143, %v1062
    %v1136 = vmul.f32 %v144, %v1066
    %v1137 = vmul.f32 %v145, %v1070
    %v1138 = vmul.f32 %v146, %v1074
    %v1139 = vmul.f32 %v147, %v1082
    %v1140 = vmul.f32 %v148, %v1086
    %v1141 = vmul.f32 %v149, %v1090
    %v1142 = vmul.f32 %v150, %v1094
    %v1143 = vmul.f32 %v151, %v1102
    %v1144 = vmul.f32 %v152, %v1106
    %v1145 = vmul.f32 %v153, %v1110
    %v1146 = vmul.f32 %v154, %v1114
    %v1147 = vadd.f32 %v1115, %v1116
    %v1148 = vadd.f32 %v1147, %v1117
    %v1149 = vadd.f32 %v1148, %v1118
    %v1150 = vrot.slane %v1149, 4
    %v1151 = vadd.f32 %v1149, %v1150
    %v1152 = vrot.slane %v1151, 2
    %v1153 = vadd.f32 %v1151, %v1152
    %v1154 = vrot.slane %v1153, 1
    %v1155 = vadd.f32 %v1153, %v1154
    %v1156 = vadd.f32 %v1119, %v1120
    %v1157 = vadd.f32 %v1156, %v1121
    %v1158 = vadd.f32 %v1157, %v1122
    %v1159 = vrot.slane %v1158, 4
    %v1160 = vadd.f32 %v1158, %v1159
    %v1161 = vrot.slane %v1160, 2
    %v1162 = vadd.f32 %v1160, %v1161
    %v1163 = vrot.slane %v1162, 1
    %v1164 = vadd.f32 %v1162, %v1163
    %v1165 = vadd.f32 %v1123, %v1124
    %v1166 = vadd.f32 %v1165, %v1125
    %v1167 = vadd.f32 %v1166, %v1126
    %v1168 = vrot.slane %v1167, 4
    %v1169 = vadd.f32 %v1167, %v1168
    %v1170 = vrot.slane %v1169, 2
    %v1171 = vadd.f32 %v1169, %v1170
    %v1172 = vrot.slane %v1171, 1
    %v1173 = vadd.f32 %v1171, %v1172
    %v1174 = vadd.f32 %v1127, %v1128
    %v1175 = vadd.f32 %v1174, %v1129
    %v1176 = vadd.f32 %v1175, %v1130
    %v1177 = vrot.slane %v1176, 4
    %v1178 = vadd.f32 %v1176, %v1177
    %v1179 = vrot.slane %v1178, 2
    %v1180 = vadd.f32 %v1178, %v1179
    %v1181 = vrot.slane %v1180, 1
    %v1182 = vadd.f32 %v1180, %v1181
    %v1183 = vadd.f32 %v1131, %v1132
    %v1184 = vadd.f32 %v1183, %v1133
    %v1185 = vadd.f32 %v1184, %v1134
    %v1186 = vrot.slane %v1185, 4
    %v1187 = vadd.f32 %v1185, %v1186
    %v1188 = vrot.slane %v1187, 2
    %v1189 = vadd.f32 %v1187, %v1188
    %v1190 = vrot.slane %v1189, 1
    %v1191 = vadd.f32 %v1189, %v1190
    %v1192 = vadd.f32 %v1135, %v1136
    %v1193 = vadd.f32 %v1192, %v1137
    %v1194 = vadd.f32 %v1193, %v1138
    %v1195 = vrot.slane %v1194, 4
    %v1196 = vadd.f32 %v1194, %v1195
    %v1197 = vrot.slane %v1196, 2
    %v1198 = vadd.f32 %v1196, %v1197
    %v1199 = vrot.slane %v1198, 1
    %v1200 = vadd.f32 %v1198, %v1199
    %v1201 = vadd.f32 %v1139, %v1140
    %v1202 = vadd.f32 %v1201, %v1141
    %v1203 = vadd.f32 %v1202, %v1142
    %v1204 = vrot.slane %v1203, 4
    %v1205 = vadd.f32 %v1203, %v1204
    %v1206 = vrot.slane %v1205, 2
    %v1207 = vadd.f32 %v1205, %v1206
    %v1208 = vrot.slane %v1207, 1
    %v1209 = vadd.f32 %v1207, %v1208
    %v1210 = vadd.f32 %v1143, %v1144
    %v1211 = vadd.f32 %v1210, %v1145
    %v1212 = vadd.f32 %v1211, %v1146
    %v1213 = vrot.slane %v1212, 4
    %v1214 = vadd.f32 %v1212, %v1213
    %v1215 = vrot.slane %v1214, 2
    %v1216 = vadd.f32 %v1214, %v1215
    %v1217 = vrot.slane %v1216, 1
    %v1218 = vadd.f32 %v1216, %v1217
    %v1220 = vrot.slane %v92, 1
    %v1221 = vrot.slane %v92, 2
    %v1222 = vrot.slane %v92, 3
    %v1223 = vrot.slane %v92, 4
    %v1224 = vrot.slane %v92, 5
    %v1225 = vrot.slane %v92, 6
    %v1226 = vrot.slane %v92, 7
    %v1235 = vadd.f32 %v1155, %v92
    %v1236 = vadd.f32 %v1164, %v1220
    %v1237 = vadd.f32 %v1173, %v1221
    %v1238 = vadd.f32 %v1182, %v1222
    %v1239 = vadd.f32 %v1191, %v1223
    %v1240 = vadd.f32 %v1200, %v1224
    %v1241 = vadd.f32 %v1209, %v1225
    %v1242 = vadd.f32 %v1218, %v1226
    %v1243 = vxor.u32 %v1235, 2147483648
    %v1244 = vxor.u32 %v1236, 2147483648
    %v1245 = vxor.u32 %v1237, 2147483648
    %v1246 = vxor.u32 %v1238, 2147483648
    %v1247 = vxor.u32 %v1239, 2147483648
    %v1248 = vxor.u32 %v1240, 2147483648
    %v1249 = vxor.u32 %v1241, 2147483648
    %v1250 = vxor.u32 %v1242, 2147483648
    %v1251 = vmul.f32 %v1243, 1.442695
    %v1252 = vpow.pop %v1251
    %v1253 = vmul.f32 %v1244, 1.442695
    %v1254 = vpow.pop %v1253
    %v1255 = vmul.f32 %v1245, 1.442695
    %v1256 = vpow.pop %v1255
    %v1257 = vmul.f32 %v1246, 1.442695
    %v1258 = vpow.pop %v1257
    %v1259 = vmul.f32 %v1247, 1.442695
    %v1260 = vpow.pop %v1259
    %v1261 = vmul.f32 %v1248, 1.442695
    %v1262 = vpow.pop %v1261
    %v1263 = vmul.f32 %v1249, 1.442695
    %v1264 = vpow.pop %v1263
    %v1265 = vmul.f32 %v1250, 1.442695
    %v1266 = vpow.pop %v1265
    %v1267 = vadd.f32 %v1252, 1.0
    %v1268 = vadd.f32 %v1254, 1.0
    %v1269 = vadd.f32 %v1256, 1.0
    %v1270 = vadd.f32 %v1258, 1.0
    %v1271 = vadd.f32 %v1260, 1.0
    %v1272 = vadd.f32 %v1262, 1.0
    %v1273 = vadd.f32 %v1264, 1.0
    %v1274 = vadd.f32 %v1266, 1.0
    %v1275 = vrcp.pop %v1267
    %v1276 = vmul.f32 1.0, %v1275
    %v1277 = vrcp.pop %v1268
    %v1278 = vmul.f32 1.0, %v1277
    %v1279 = vrcp.pop %v1269
    %v1280 = vmul.f32 1.0, %v1279
    %v1281 = vrcp.pop %v1270
    %v1282 = vmul.f32 1.0, %v1281
    %v1283 = vrcp.pop %v1271
    %v1284 = vmul.f32 1.0, %v1283
    %v1285 = vrcp.pop %v1272
    %v1286 = vmul.f32 1.0, %v1285
    %v1287 = vrcp.pop %v1273
    %v1288 = vmul.f32 1.0, %v1287
    %v1289 = vrcp.pop %v1274
    %v1290 = vmul.f32 1.0, %v1289
    %v1291 = vtanh.pop %v1235
    %v1292 = vtanh.pop %v1236
    %v1293 = vtanh.pop %v1237
    %v1294 = vtanh.pop %v1238
    %v1295 = vtanh.pop %v1239
    %v1296 = vtanh.pop %v1240
    %v1297 = vtanh.pop %v1241
    %v1298 = vtanh.pop %v1242
    %v1299 = vmul.f32 %v1276, %v899
    %v1300 = vmul.f32 %v1278, %v900
    %v1301 = vmul.f32 %v1280, %v901
    %v1302 = vmul.f32 %v1282, %v902
    %v1303 = vmul.f32 %v1284, %v903
    %v1304 = vmul.f32 %v1286, %v904
    %v1305 = vmul.f32 %v1288, %v905
    %v1306 = vmul.f32 %v1290, %v906
    %1315 = vrot.lane.b32.xlu0 %v1291, 64
    %v1316 = vpop.permute.xlu0 %1315
    %1317 = vrot.lane.b32.xlu0 %v1292, 64
    %v1318 = vpop.permute.xlu0 %1317
    %1319 = vrot.lane.b32.xlu0 %v1293, 64
    %v1320 = vpop.permute.xlu0 %1319
    %1321 = vrot.lane.b32.xlu0 %v1294, 64
    %v1322 = vpop.permute.xlu0 %1321
    %1323 = vrot.lane.b32.xlu0 %v1295, 64
    %v1324 = vpop.permute.xlu0 %1323
    %1325 = vrot.lane.b32.xlu0 %v1296, 64
    %v1326 = vpop.permute.xlu0 %1325
    %1327 = vrot.lane.b32.xlu0 %v1297, 64
    %v1328 = vpop.permute.xlu0 %1327
    %1329 = vrot.lane.b32.xlu0 %v1298, 64
    %v1330 = vpop.permute.xlu0 %1329
    %v1339 = vmul.f32 %v1276, %v1316
    %v1340 = vmul.f32 %v1278, %v1318
    %v1341 = vmul.f32 %v1280, %v1320
    %v1342 = vmul.f32 %v1282, %v1322
    %v1343 = vmul.f32 %v1284, %v1324
    %v1344 = vmul.f32 %v1286, %v1326
    %v1345 = vmul.f32 %v1288, %v1328
    %v1346 = vmul.f32 %v1290, %v1330
    %1355 = vrot.lane.b32.xlu0 %v1339, 32
    %v1356 = vpop.permute.xlu0 %1355
    %1357 = vrot.lane.b32.xlu0 %v1340, 32
    %v1358 = vpop.permute.xlu0 %1357
    %1359 = vrot.lane.b32.xlu0 %v1341, 32
    %v1360 = vpop.permute.xlu0 %1359
    %1361 = vrot.lane.b32.xlu0 %v1342, 32
    %v1362 = vpop.permute.xlu0 %1361
    %1363 = vrot.lane.b32.xlu0 %v1343, 32
    %v1364 = vpop.permute.xlu0 %1363
    %1365 = vrot.lane.b32.xlu0 %v1344, 32
    %v1366 = vpop.permute.xlu0 %1365
    %1367 = vrot.lane.b32.xlu0 %v1345, 32
    %v1368 = vpop.permute.xlu0 %1367
    %1369 = vrot.lane.b32.xlu0 %v1346, 32
    %v1370 = vpop.permute.xlu0 %1369
    %v1379 = vadd.f32 %v1299, %v1356
    %v1380 = vadd.f32 %v1300, %v1358
    %v1381 = vadd.f32 %v1301, %v1360
    %v1382 = vadd.f32 %v1302, %v1362
    %v1383 = vadd.f32 %v1303, %v1364
    %v1384 = vadd.f32 %v1304, %v1366
    %v1385 = vadd.f32 %v1305, %v1368
    %v1386 = vadd.f32 %v1306, %v1370
    %v1387 = vtanh.pop %v1379
    %v1388 = vtanh.pop %v1380
    %v1389 = vtanh.pop %v1381
    %v1390 = vtanh.pop %v1382
    %v1391 = vtanh.pop %v1383
    %v1392 = vtanh.pop %v1384
    %v1393 = vtanh.pop %v1385
    %v1394 = vtanh.pop %v1386
    %1403 = vrot.lane.b32.xlu0 %v1387, 64
    %v1404 = vpop.permute.xlu0 %1403
    %1405 = vrot.lane.b32.xlu0 %v1388, 64
    %v1406 = vpop.permute.xlu0 %1405
    %1407 = vrot.lane.b32.xlu0 %v1389, 64
    %v1408 = vpop.permute.xlu0 %1407
    %1409 = vrot.lane.b32.xlu0 %v1390, 64
    %v1410 = vpop.permute.xlu0 %1409
    %1411 = vrot.lane.b32.xlu0 %v1391, 64
    %v1412 = vpop.permute.xlu0 %1411
    %1413 = vrot.lane.b32.xlu0 %v1392, 64
    %v1414 = vpop.permute.xlu0 %1413
    %1415 = vrot.lane.b32.xlu0 %v1393, 64
    %v1416 = vpop.permute.xlu0 %1415
    %1417 = vrot.lane.b32.xlu0 %v1394, 64
    %v1418 = vpop.permute.xlu0 %1417
    %v1427 = vmul.f32 %v1276, %v1404
    %v1428 = vmul.f32 %v1278, %v1406
    %v1429 = vmul.f32 %v1280, %v1408
    %v1430 = vmul.f32 %v1282, %v1410
    %v1431 = vmul.f32 %v1284, %v1412
    %v1432 = vmul.f32 %v1286, %v1414
    %v1433 = vmul.f32 %v1288, %v1416
    %v1434 = vmul.f32 %v1290, %v1418
    %v1435 = vlaneseq
    %v1436 = vshrl.u32 %v1435, 7
    %v1437 = vsub.s32 0, %v1436
    %v1438 = vrot.slane %v1427, %v1437
    %s1440 = sor.u32 256, 96
    %1441 = vbcast.lane.b32.xlu0 %v1438, %s1440
    %v1442 = vpop.permute.xlu0 %1441
    %s1444 = sor.u32 256, 104
    %1445 = vbcast.lane.b32.xlu0 %v1438, %s1444
    %v1446 = vpop.permute.xlu0 %1445
    %s1448 = sor.u32 256, 112
    %1449 = vbcast.lane.b32.xlu0 %v1438, %s1448
    %v1450 = vpop.permute.xlu0 %1449
    %s1452 = sor.u32 256, 120
    %1453 = vbcast.lane.b32.xlu0 %v1438, %s1452
    %v1454 = vpop.permute.xlu0 %1453
    %v1455 = vlaneseq
    %v1456 = vshrl.u32 %v1455, 7
    %v1457 = vsub.s32 0, %v1456
    %v1458 = vrot.slane %v1428, %v1457
    %s1460 = sor.u32 256, 96
    %1461 = vbcast.lane.b32.xlu0 %v1458, %s1460
    %v1462 = vpop.permute.xlu0 %1461
    %s1464 = sor.u32 256, 104
    %1465 = vbcast.lane.b32.xlu0 %v1458, %s1464
    %v1466 = vpop.permute.xlu0 %1465
    %s1468 = sor.u32 256, 112
    %1469 = vbcast.lane.b32.xlu0 %v1458, %s1468
    %v1470 = vpop.permute.xlu0 %1469
    %s1472 = sor.u32 256, 120
    %1473 = vbcast.lane.b32.xlu0 %v1458, %s1472
    %v1474 = vpop.permute.xlu0 %1473
    %v1475 = vlaneseq
    %v1476 = vshrl.u32 %v1475, 7
    %v1477 = vsub.s32 0, %v1476
    %v1478 = vrot.slane %v1429, %v1477
    %s1480 = sor.u32 256, 96
    %1481 = vbcast.lane.b32.xlu0 %v1478, %s1480
    %v1482 = vpop.permute.xlu0 %1481
    %s1484 = sor.u32 256, 104
    %1485 = vbcast.lane.b32.xlu0 %v1478, %s1484
    %v1486 = vpop.permute.xlu0 %1485
    %s1488 = sor.u32 256, 112
    %1489 = vbcast.lane.b32.xlu0 %v1478, %s1488
    %v1490 = vpop.permute.xlu0 %1489
    %s1492 = sor.u32 256, 120
    %1493 = vbcast.lane.b32.xlu0 %v1478, %s1492
    %v1494 = vpop.permute.xlu0 %1493
    %v1495 = vlaneseq
    %v1496 = vshrl.u32 %v1495, 7
    %v1497 = vsub.s32 0, %v1496
    %v1498 = vrot.slane %v1430, %v1497
    %s1500 = sor.u32 256, 96
    %1501 = vbcast.lane.b32.xlu0 %v1498, %s1500
    %v1502 = vpop.permute.xlu0 %1501
    %s1504 = sor.u32 256, 104
    %1505 = vbcast.lane.b32.xlu0 %v1498, %s1504
    %v1506 = vpop.permute.xlu0 %1505
    %s1508 = sor.u32 256, 112
    %1509 = vbcast.lane.b32.xlu0 %v1498, %s1508
    %v1510 = vpop.permute.xlu0 %1509
    %s1512 = sor.u32 256, 120
    %1513 = vbcast.lane.b32.xlu0 %v1498, %s1512
    %v1514 = vpop.permute.xlu0 %1513
    %v1515 = vlaneseq
    %v1516 = vshrl.u32 %v1515, 7
    %v1517 = vsub.s32 0, %v1516
    %v1518 = vrot.slane %v1431, %v1517
    %s1520 = sor.u32 256, 96
    %1521 = vbcast.lane.b32.xlu0 %v1518, %s1520
    %v1522 = vpop.permute.xlu0 %1521
    %s1524 = sor.u32 256, 104
    %1525 = vbcast.lane.b32.xlu0 %v1518, %s1524
    %v1526 = vpop.permute.xlu0 %1525
    %s1528 = sor.u32 256, 112
    %1529 = vbcast.lane.b32.xlu0 %v1518, %s1528
    %v1530 = vpop.permute.xlu0 %1529
    %s1532 = sor.u32 256, 120
    %1533 = vbcast.lane.b32.xlu0 %v1518, %s1532
    %v1534 = vpop.permute.xlu0 %1533
    %v1535 = vlaneseq
    %v1536 = vshrl.u32 %v1535, 7
    %v1537 = vsub.s32 0, %v1536
    %v1538 = vrot.slane %v1432, %v1537
    %s1540 = sor.u32 256, 96
    %1541 = vbcast.lane.b32.xlu0 %v1538, %s1540
    %v1542 = vpop.permute.xlu0 %1541
    %s1544 = sor.u32 256, 104
    %1545 = vbcast.lane.b32.xlu0 %v1538, %s1544
    %v1546 = vpop.permute.xlu0 %1545
    %s1548 = sor.u32 256, 112
    %1549 = vbcast.lane.b32.xlu0 %v1538, %s1548
    %v1550 = vpop.permute.xlu0 %1549
    %s1552 = sor.u32 256, 120
    %1553 = vbcast.lane.b32.xlu0 %v1538, %s1552
    %v1554 = vpop.permute.xlu0 %1553
    %v1555 = vlaneseq
    %v1556 = vshrl.u32 %v1555, 7
    %v1557 = vsub.s32 0, %v1556
    %v1558 = vrot.slane %v1433, %v1557
    %s1560 = sor.u32 256, 96
    %1561 = vbcast.lane.b32.xlu0 %v1558, %s1560
    %v1562 = vpop.permute.xlu0 %1561
    %s1564 = sor.u32 256, 104
    %1565 = vbcast.lane.b32.xlu0 %v1558, %s1564
    %v1566 = vpop.permute.xlu0 %1565
    %s1568 = sor.u32 256, 112
    %1569 = vbcast.lane.b32.xlu0 %v1558, %s1568
    %v1570 = vpop.permute.xlu0 %1569
    %s1572 = sor.u32 256, 120
    %1573 = vbcast.lane.b32.xlu0 %v1558, %s1572
    %v1574 = vpop.permute.xlu0 %1573
    %v1575 = vlaneseq
    %v1576 = vshrl.u32 %v1575, 7
    %v1577 = vsub.s32 0, %v1576
    %v1578 = vrot.slane %v1434, %v1577
    %s1580 = sor.u32 256, 96
    %1581 = vbcast.lane.b32.xlu0 %v1578, %s1580
    %v1582 = vpop.permute.xlu0 %1581
    %s1584 = sor.u32 256, 104
    %1585 = vbcast.lane.b32.xlu0 %v1578, %s1584
    %v1586 = vpop.permute.xlu0 %1585
    %s1588 = sor.u32 256, 112
    %1589 = vbcast.lane.b32.xlu0 %v1578, %s1588
    %v1590 = vpop.permute.xlu0 %1589
    %s1592 = sor.u32 256, 120
    %1593 = vbcast.lane.b32.xlu0 %v1578, %s1592
    %v1594 = vpop.permute.xlu0 %1593
    %v1595 = vmul.f32 %v123, %v1442
    %v1596 = vmul.f32 %v124, %v1446
    %v1597 = vmul.f32 %v125, %v1450
    %v1598 = vmul.f32 %v126, %v1454
    %v1599 = vmul.f32 %v127, %v1462
    %v1600 = vmul.f32 %v128, %v1466
    %v1601 = vmul.f32 %v129, %v1470
    %v1602 = vmul.f32 %v130, %v1474
    %v1603 = vmul.f32 %v131, %v1482
    %v1604 = vmul.f32 %v132, %v1486
    %v1605 = vmul.f32 %v133, %v1490
    %v1606 = vmul.f32 %v134, %v1494
    %v1607 = vmul.f32 %v135, %v1502
    %v1608 = vmul.f32 %v136, %v1506
    %v1609 = vmul.f32 %v137, %v1510
    %v1610 = vmul.f32 %v138, %v1514
    %v1611 = vmul.f32 %v139, %v1522
    %v1612 = vmul.f32 %v140, %v1526
    %v1613 = vmul.f32 %v141, %v1530
    %v1614 = vmul.f32 %v142, %v1534
    %v1615 = vmul.f32 %v143, %v1542
    %v1616 = vmul.f32 %v144, %v1546
    %v1617 = vmul.f32 %v145, %v1550
    %v1618 = vmul.f32 %v146, %v1554
    %v1619 = vmul.f32 %v147, %v1562
    %v1620 = vmul.f32 %v148, %v1566
    %v1621 = vmul.f32 %v149, %v1570
    %v1622 = vmul.f32 %v150, %v1574
    %v1623 = vmul.f32 %v151, %v1582
    %v1624 = vmul.f32 %v152, %v1586
    %v1625 = vmul.f32 %v153, %v1590
    %v1626 = vmul.f32 %v154, %v1594
    %v1627 = vadd.f32 %v1595, %v1596
    %v1628 = vadd.f32 %v1627, %v1597
    %v1629 = vadd.f32 %v1628, %v1598
    %v1630 = vrot.slane %v1629, 4
    %v1631 = vadd.f32 %v1629, %v1630
    %v1632 = vrot.slane %v1631, 2
    %v1633 = vadd.f32 %v1631, %v1632
    %v1634 = vrot.slane %v1633, 1
    %v1635 = vadd.f32 %v1633, %v1634
    %v1636 = vadd.f32 %v1599, %v1600
    %v1637 = vadd.f32 %v1636, %v1601
    %v1638 = vadd.f32 %v1637, %v1602
    %v1639 = vrot.slane %v1638, 4
    %v1640 = vadd.f32 %v1638, %v1639
    %v1641 = vrot.slane %v1640, 2
    %v1642 = vadd.f32 %v1640, %v1641
    %v1643 = vrot.slane %v1642, 1
    %v1644 = vadd.f32 %v1642, %v1643
    %v1645 = vadd.f32 %v1603, %v1604
    %v1646 = vadd.f32 %v1645, %v1605
    %v1647 = vadd.f32 %v1646, %v1606
    %v1648 = vrot.slane %v1647, 4
    %v1649 = vadd.f32 %v1647, %v1648
    %v1650 = vrot.slane %v1649, 2
    %v1651 = vadd.f32 %v1649, %v1650
    %v1652 = vrot.slane %v1651, 1
    %v1653 = vadd.f32 %v1651, %v1652
    %v1654 = vadd.f32 %v1607, %v1608
    %v1655 = vadd.f32 %v1654, %v1609
    %v1656 = vadd.f32 %v1655, %v1610
    %v1657 = vrot.slane %v1656, 4
    %v1658 = vadd.f32 %v1656, %v1657
    %v1659 = vrot.slane %v1658, 2
    %v1660 = vadd.f32 %v1658, %v1659
    %v1661 = vrot.slane %v1660, 1
    %v1662 = vadd.f32 %v1660, %v1661
    %v1663 = vadd.f32 %v1611, %v1612
    %v1664 = vadd.f32 %v1663, %v1613
    %v1665 = vadd.f32 %v1664, %v1614
    %v1666 = vrot.slane %v1665, 4
    %v1667 = vadd.f32 %v1665, %v1666
    %v1668 = vrot.slane %v1667, 2
    %v1669 = vadd.f32 %v1667, %v1668
    %v1670 = vrot.slane %v1669, 1
    %v1671 = vadd.f32 %v1669, %v1670
    %v1672 = vadd.f32 %v1615, %v1616
    %v1673 = vadd.f32 %v1672, %v1617
    %v1674 = vadd.f32 %v1673, %v1618
    %v1675 = vrot.slane %v1674, 4
    %v1676 = vadd.f32 %v1674, %v1675
    %v1677 = vrot.slane %v1676, 2
    %v1678 = vadd.f32 %v1676, %v1677
    %v1679 = vrot.slane %v1678, 1
    %v1680 = vadd.f32 %v1678, %v1679
    %v1681 = vadd.f32 %v1619, %v1620
    %v1682 = vadd.f32 %v1681, %v1621
    %v1683 = vadd.f32 %v1682, %v1622
    %v1684 = vrot.slane %v1683, 4
    %v1685 = vadd.f32 %v1683, %v1684
    %v1686 = vrot.slane %v1685, 2
    %v1687 = vadd.f32 %v1685, %v1686
    %v1688 = vrot.slane %v1687, 1
    %v1689 = vadd.f32 %v1687, %v1688
    %v1690 = vadd.f32 %v1623, %v1624
    %v1691 = vadd.f32 %v1690, %v1625
    %v1692 = vadd.f32 %v1691, %v1626
    %v1693 = vrot.slane %v1692, 4
    %v1694 = vadd.f32 %v1692, %v1693
    %v1695 = vrot.slane %v1694, 2
    %v1696 = vadd.f32 %v1694, %v1695
    %v1697 = vrot.slane %v1696, 1
    %v1698 = vadd.f32 %v1696, %v1697
    %v1700 = vrot.slane %v98, 1
    %v1701 = vrot.slane %v98, 2
    %v1702 = vrot.slane %v98, 3
    %v1703 = vrot.slane %v98, 4
    %v1704 = vrot.slane %v98, 5
    %v1705 = vrot.slane %v98, 6
    %v1706 = vrot.slane %v98, 7
    %v1715 = vadd.f32 %v1635, %v98
    %v1716 = vadd.f32 %v1644, %v1700
    %v1717 = vadd.f32 %v1653, %v1701
    %v1718 = vadd.f32 %v1662, %v1702
    %v1719 = vadd.f32 %v1671, %v1703
    %v1720 = vadd.f32 %v1680, %v1704
    %v1721 = vadd.f32 %v1689, %v1705
    %v1722 = vadd.f32 %v1698, %v1706
    %v1723 = vxor.u32 %v1715, 2147483648
    %v1724 = vxor.u32 %v1716, 2147483648
    %v1725 = vxor.u32 %v1717, 2147483648
    %v1726 = vxor.u32 %v1718, 2147483648
    %v1727 = vxor.u32 %v1719, 2147483648
    %v1728 = vxor.u32 %v1720, 2147483648
    %v1729 = vxor.u32 %v1721, 2147483648
    %v1730 = vxor.u32 %v1722, 2147483648
    %v1731 = vmul.f32 %v1723, 1.442695
    %v1732 = vpow.pop %v1731
    %v1733 = vmul.f32 %v1724, 1.442695
    %v1734 = vpow.pop %v1733
    %v1735 = vmul.f32 %v1725, 1.442695
    %v1736 = vpow.pop %v1735
    %v1737 = vmul.f32 %v1726, 1.442695
    %v1738 = vpow.pop %v1737
    %v1739 = vmul.f32 %v1727, 1.442695
    %v1740 = vpow.pop %v1739
    %v1741 = vmul.f32 %v1728, 1.442695
    %v1742 = vpow.pop %v1741
    %v1743 = vmul.f32 %v1729, 1.442695
    %v1744 = vpow.pop %v1743
    %v1745 = vmul.f32 %v1730, 1.442695
    %v1746 = vpow.pop %v1745
    %v1747 = vadd.f32 %v1732, 1.0
    %v1748 = vadd.f32 %v1734, 1.0
    %v1749 = vadd.f32 %v1736, 1.0
    %v1750 = vadd.f32 %v1738, 1.0
    %v1751 = vadd.f32 %v1740, 1.0
    %v1752 = vadd.f32 %v1742, 1.0
    %v1753 = vadd.f32 %v1744, 1.0
    %v1754 = vadd.f32 %v1746, 1.0
    %v1755 = vrcp.pop %v1747
    %v1756 = vmul.f32 1.0, %v1755
    %v1757 = vrcp.pop %v1748
    %v1758 = vmul.f32 1.0, %v1757
    %v1759 = vrcp.pop %v1749
    %v1760 = vmul.f32 1.0, %v1759
    %v1761 = vrcp.pop %v1750
    %v1762 = vmul.f32 1.0, %v1761
    %v1763 = vrcp.pop %v1751
    %v1764 = vmul.f32 1.0, %v1763
    %v1765 = vrcp.pop %v1752
    %v1766 = vmul.f32 1.0, %v1765
    %v1767 = vrcp.pop %v1753
    %v1768 = vmul.f32 1.0, %v1767
    %v1769 = vrcp.pop %v1754
    %v1770 = vmul.f32 1.0, %v1769
    %v1771 = vtanh.pop %v1715
    %v1772 = vtanh.pop %v1716
    %v1773 = vtanh.pop %v1717
    %v1774 = vtanh.pop %v1718
    %v1775 = vtanh.pop %v1719
    %v1776 = vtanh.pop %v1720
    %v1777 = vtanh.pop %v1721
    %v1778 = vtanh.pop %v1722
    %v1779 = vmul.f32 %v1756, %v1379
    %v1780 = vmul.f32 %v1758, %v1380
    %v1781 = vmul.f32 %v1760, %v1381
    %v1782 = vmul.f32 %v1762, %v1382
    %v1783 = vmul.f32 %v1764, %v1383
    %v1784 = vmul.f32 %v1766, %v1384
    %v1785 = vmul.f32 %v1768, %v1385
    %v1786 = vmul.f32 %v1770, %v1386
    %1795 = vrot.lane.b32.xlu0 %v1771, 64
    %v1796 = vpop.permute.xlu0 %1795
    %1797 = vrot.lane.b32.xlu0 %v1772, 64
    %v1798 = vpop.permute.xlu0 %1797
    %1799 = vrot.lane.b32.xlu0 %v1773, 64
    %v1800 = vpop.permute.xlu0 %1799
    %1801 = vrot.lane.b32.xlu0 %v1774, 64
    %v1802 = vpop.permute.xlu0 %1801
    %1803 = vrot.lane.b32.xlu0 %v1775, 64
    %v1804 = vpop.permute.xlu0 %1803
    %1805 = vrot.lane.b32.xlu0 %v1776, 64
    %v1806 = vpop.permute.xlu0 %1805
    %1807 = vrot.lane.b32.xlu0 %v1777, 64
    %v1808 = vpop.permute.xlu0 %1807
    %1809 = vrot.lane.b32.xlu0 %v1778, 64
    %v1810 = vpop.permute.xlu0 %1809
    %v1819 = vmul.f32 %v1756, %v1796
    %v1820 = vmul.f32 %v1758, %v1798
    %v1821 = vmul.f32 %v1760, %v1800
    %v1822 = vmul.f32 %v1762, %v1802
    %v1823 = vmul.f32 %v1764, %v1804
    %v1824 = vmul.f32 %v1766, %v1806
    %v1825 = vmul.f32 %v1768, %v1808
    %v1826 = vmul.f32 %v1770, %v1810
    %1835 = vrot.lane.b32.xlu0 %v1819, 32
    %v1836 = vpop.permute.xlu0 %1835
    %1837 = vrot.lane.b32.xlu0 %v1820, 32
    %v1838 = vpop.permute.xlu0 %1837
    %1839 = vrot.lane.b32.xlu0 %v1821, 32
    %v1840 = vpop.permute.xlu0 %1839
    %1841 = vrot.lane.b32.xlu0 %v1822, 32
    %v1842 = vpop.permute.xlu0 %1841
    %1843 = vrot.lane.b32.xlu0 %v1823, 32
    %v1844 = vpop.permute.xlu0 %1843
    %1845 = vrot.lane.b32.xlu0 %v1824, 32
    %v1846 = vpop.permute.xlu0 %1845
    %1847 = vrot.lane.b32.xlu0 %v1825, 32
    %v1848 = vpop.permute.xlu0 %1847
    %1849 = vrot.lane.b32.xlu0 %v1826, 32
    %v1850 = vpop.permute.xlu0 %1849
    %v1859 = vadd.f32 %v1779, %v1836
    %v1860 = vadd.f32 %v1780, %v1838
    %v1861 = vadd.f32 %v1781, %v1840
    %v1862 = vadd.f32 %v1782, %v1842
    %v1863 = vadd.f32 %v1783, %v1844
    %v1864 = vadd.f32 %v1784, %v1846
    %v1865 = vadd.f32 %v1785, %v1848
    %v1866 = vadd.f32 %v1786, %v1850
    %v1867 = vtanh.pop %v1859
    %v1868 = vtanh.pop %v1860
    %v1869 = vtanh.pop %v1861
    %v1870 = vtanh.pop %v1862
    %v1871 = vtanh.pop %v1863
    %v1872 = vtanh.pop %v1864
    %v1873 = vtanh.pop %v1865
    %v1874 = vtanh.pop %v1866
    %1883 = vrot.lane.b32.xlu0 %v1867, 64
    %v1884 = vpop.permute.xlu0 %1883
    %1885 = vrot.lane.b32.xlu0 %v1868, 64
    %v1886 = vpop.permute.xlu0 %1885
    %1887 = vrot.lane.b32.xlu0 %v1869, 64
    %v1888 = vpop.permute.xlu0 %1887
    %1889 = vrot.lane.b32.xlu0 %v1870, 64
    %v1890 = vpop.permute.xlu0 %1889
    %1891 = vrot.lane.b32.xlu0 %v1871, 64
    %v1892 = vpop.permute.xlu0 %1891
    %1893 = vrot.lane.b32.xlu0 %v1872, 64
    %v1894 = vpop.permute.xlu0 %1893
    %1895 = vrot.lane.b32.xlu0 %v1873, 64
    %v1896 = vpop.permute.xlu0 %1895
    %1897 = vrot.lane.b32.xlu0 %v1874, 64
    %v1898 = vpop.permute.xlu0 %1897
    %v1907 = vmul.f32 %v1756, %v1884
    %v1908 = vmul.f32 %v1758, %v1886
    %v1909 = vmul.f32 %v1760, %v1888
    %v1910 = vmul.f32 %v1762, %v1890
    %v1911 = vmul.f32 %v1764, %v1892
    %v1912 = vmul.f32 %v1766, %v1894
    %v1913 = vmul.f32 %v1768, %v1896
    %v1914 = vmul.f32 %v1770, %v1898
    %v1915 = vlaneseq
    %v1916 = vshrl.u32 %v1915, 7
    %v1917 = vsub.s32 0, %v1916
    %v1918 = vrot.slane %v1907, %v1917
    %s1920 = sor.u32 256, 96
    %1921 = vbcast.lane.b32.xlu0 %v1918, %s1920
    %v1922 = vpop.permute.xlu0 %1921
    %s1924 = sor.u32 256, 104
    %1925 = vbcast.lane.b32.xlu0 %v1918, %s1924
    %v1926 = vpop.permute.xlu0 %1925
    %s1928 = sor.u32 256, 112
    %1929 = vbcast.lane.b32.xlu0 %v1918, %s1928
    %v1930 = vpop.permute.xlu0 %1929
    %s1932 = sor.u32 256, 120
    %1933 = vbcast.lane.b32.xlu0 %v1918, %s1932
    %v1934 = vpop.permute.xlu0 %1933
    %v1935 = vlaneseq
    %v1936 = vshrl.u32 %v1935, 7
    %v1937 = vsub.s32 0, %v1936
    %v1938 = vrot.slane %v1908, %v1937
    %s1940 = sor.u32 256, 96
    %1941 = vbcast.lane.b32.xlu0 %v1938, %s1940
    %v1942 = vpop.permute.xlu0 %1941
    %s1944 = sor.u32 256, 104
    %1945 = vbcast.lane.b32.xlu0 %v1938, %s1944
    %v1946 = vpop.permute.xlu0 %1945
    %s1948 = sor.u32 256, 112
    %1949 = vbcast.lane.b32.xlu0 %v1938, %s1948
    %v1950 = vpop.permute.xlu0 %1949
    %s1952 = sor.u32 256, 120
    %1953 = vbcast.lane.b32.xlu0 %v1938, %s1952
    %v1954 = vpop.permute.xlu0 %1953
    %v1955 = vlaneseq
    %v1956 = vshrl.u32 %v1955, 7
    %v1957 = vsub.s32 0, %v1956
    %v1958 = vrot.slane %v1909, %v1957
    %s1960 = sor.u32 256, 96
    %1961 = vbcast.lane.b32.xlu0 %v1958, %s1960
    %v1962 = vpop.permute.xlu0 %1961
    %s1964 = sor.u32 256, 104
    %1965 = vbcast.lane.b32.xlu0 %v1958, %s1964
    %v1966 = vpop.permute.xlu0 %1965
    %s1968 = sor.u32 256, 112
    %1969 = vbcast.lane.b32.xlu0 %v1958, %s1968
    %v1970 = vpop.permute.xlu0 %1969
    %s1972 = sor.u32 256, 120
    %1973 = vbcast.lane.b32.xlu0 %v1958, %s1972
    %v1974 = vpop.permute.xlu0 %1973
    %v1975 = vlaneseq
    %v1976 = vshrl.u32 %v1975, 7
    %v1977 = vsub.s32 0, %v1976
    %v1978 = vrot.slane %v1910, %v1977
    %s1980 = sor.u32 256, 96
    %1981 = vbcast.lane.b32.xlu0 %v1978, %s1980
    %v1982 = vpop.permute.xlu0 %1981
    %s1984 = sor.u32 256, 104
    %1985 = vbcast.lane.b32.xlu0 %v1978, %s1984
    %v1986 = vpop.permute.xlu0 %1985
    %s1988 = sor.u32 256, 112
    %1989 = vbcast.lane.b32.xlu0 %v1978, %s1988
    %v1990 = vpop.permute.xlu0 %1989
    %s1992 = sor.u32 256, 120
    %1993 = vbcast.lane.b32.xlu0 %v1978, %s1992
    %v1994 = vpop.permute.xlu0 %1993
    %v1995 = vlaneseq
    %v1996 = vshrl.u32 %v1995, 7
    %v1997 = vsub.s32 0, %v1996
    %v1998 = vrot.slane %v1911, %v1997
    %s2000 = sor.u32 256, 96
    %2001 = vbcast.lane.b32.xlu0 %v1998, %s2000
    %v2002 = vpop.permute.xlu0 %2001
    %s2004 = sor.u32 256, 104
    %2005 = vbcast.lane.b32.xlu0 %v1998, %s2004
    %v2006 = vpop.permute.xlu0 %2005
    %s2008 = sor.u32 256, 112
    %2009 = vbcast.lane.b32.xlu0 %v1998, %s2008
    %v2010 = vpop.permute.xlu0 %2009
    %s2012 = sor.u32 256, 120
    %2013 = vbcast.lane.b32.xlu0 %v1998, %s2012
    %v2014 = vpop.permute.xlu0 %2013
    %v2015 = vlaneseq
    %v2016 = vshrl.u32 %v2015, 7
    %v2017 = vsub.s32 0, %v2016
    %v2018 = vrot.slane %v1912, %v2017
    %s2020 = sor.u32 256, 96
    %2021 = vbcast.lane.b32.xlu0 %v2018, %s2020
    %v2022 = vpop.permute.xlu0 %2021
    %s2024 = sor.u32 256, 104
    %2025 = vbcast.lane.b32.xlu0 %v2018, %s2024
    %v2026 = vpop.permute.xlu0 %2025
    %s2028 = sor.u32 256, 112
    %2029 = vbcast.lane.b32.xlu0 %v2018, %s2028
    %v2030 = vpop.permute.xlu0 %2029
    %s2032 = sor.u32 256, 120
    %2033 = vbcast.lane.b32.xlu0 %v2018, %s2032
    %v2034 = vpop.permute.xlu0 %2033
    %v2035 = vlaneseq
    %v2036 = vshrl.u32 %v2035, 7
    %v2037 = vsub.s32 0, %v2036
    %v2038 = vrot.slane %v1913, %v2037
    %s2040 = sor.u32 256, 96
    %2041 = vbcast.lane.b32.xlu0 %v2038, %s2040
    %v2042 = vpop.permute.xlu0 %2041
    %s2044 = sor.u32 256, 104
    %2045 = vbcast.lane.b32.xlu0 %v2038, %s2044
    %v2046 = vpop.permute.xlu0 %2045
    %s2048 = sor.u32 256, 112
    %2049 = vbcast.lane.b32.xlu0 %v2038, %s2048
    %v2050 = vpop.permute.xlu0 %2049
    %s2052 = sor.u32 256, 120
    %2053 = vbcast.lane.b32.xlu0 %v2038, %s2052
    %v2054 = vpop.permute.xlu0 %2053
    %v2055 = vlaneseq
    %v2056 = vshrl.u32 %v2055, 7
    %v2057 = vsub.s32 0, %v2056
    %v2058 = vrot.slane %v1914, %v2057
    %s2060 = sor.u32 256, 96
    %2061 = vbcast.lane.b32.xlu0 %v2058, %s2060
    %v2062 = vpop.permute.xlu0 %2061
    %s2064 = sor.u32 256, 104
    %2065 = vbcast.lane.b32.xlu0 %v2058, %s2064
    %v2066 = vpop.permute.xlu0 %2065
    %s2068 = sor.u32 256, 112
    %2069 = vbcast.lane.b32.xlu0 %v2058, %s2068
    %v2070 = vpop.permute.xlu0 %2069
    %s2072 = sor.u32 256, 120
    %2073 = vbcast.lane.b32.xlu0 %v2058, %s2072
    %v2074 = vpop.permute.xlu0 %2073
    %v2075 = vmul.f32 %v123, %v1922
    %v2076 = vmul.f32 %v124, %v1926
    %v2077 = vmul.f32 %v125, %v1930
    %v2078 = vmul.f32 %v126, %v1934
    %v2079 = vmul.f32 %v127, %v1942
    %v2080 = vmul.f32 %v128, %v1946
    %v2081 = vmul.f32 %v129, %v1950
    %v2082 = vmul.f32 %v130, %v1954
    %v2083 = vmul.f32 %v131, %v1962
    %v2084 = vmul.f32 %v132, %v1966
    %v2085 = vmul.f32 %v133, %v1970
    %v2086 = vmul.f32 %v134, %v1974
    %v2087 = vmul.f32 %v135, %v1982
    %v2088 = vmul.f32 %v136, %v1986
    %v2089 = vmul.f32 %v137, %v1990
    %v2090 = vmul.f32 %v138, %v1994
    %v2091 = vmul.f32 %v139, %v2002
    %v2092 = vmul.f32 %v140, %v2006
    %v2093 = vmul.f32 %v141, %v2010
    %v2094 = vmul.f32 %v142, %v2014
    %v2095 = vmul.f32 %v143, %v2022
    %v2096 = vmul.f32 %v144, %v2026
    %v2097 = vmul.f32 %v145, %v2030
    %v2098 = vmul.f32 %v146, %v2034
    %v2099 = vmul.f32 %v147, %v2042
    %v2100 = vmul.f32 %v148, %v2046
    %v2101 = vmul.f32 %v149, %v2050
    %v2102 = vmul.f32 %v150, %v2054
    %v2103 = vmul.f32 %v151, %v2062
    %v2104 = vmul.f32 %v152, %v2066
    %v2105 = vmul.f32 %v153, %v2070
    %v2106 = vmul.f32 %v154, %v2074
    %v2107 = vadd.f32 %v2075, %v2076
    %v2108 = vadd.f32 %v2107, %v2077
    %v2109 = vadd.f32 %v2108, %v2078
    %v2110 = vrot.slane %v2109, 4
    %v2111 = vadd.f32 %v2109, %v2110
    %v2112 = vrot.slane %v2111, 2
    %v2113 = vadd.f32 %v2111, %v2112
    %v2114 = vrot.slane %v2113, 1
    %v2115 = vadd.f32 %v2113, %v2114
    %v2116 = vadd.f32 %v2079, %v2080
    %v2117 = vadd.f32 %v2116, %v2081
    %v2118 = vadd.f32 %v2117, %v2082
    %v2119 = vrot.slane %v2118, 4
    %v2120 = vadd.f32 %v2118, %v2119
    %v2121 = vrot.slane %v2120, 2
    %v2122 = vadd.f32 %v2120, %v2121
    %v2123 = vrot.slane %v2122, 1
    %v2124 = vadd.f32 %v2122, %v2123
    %v2125 = vadd.f32 %v2083, %v2084
    %v2126 = vadd.f32 %v2125, %v2085
    %v2127 = vadd.f32 %v2126, %v2086
    %v2128 = vrot.slane %v2127, 4
    %v2129 = vadd.f32 %v2127, %v2128
    %v2130 = vrot.slane %v2129, 2
    %v2131 = vadd.f32 %v2129, %v2130
    %v2132 = vrot.slane %v2131, 1
    %v2133 = vadd.f32 %v2131, %v2132
    %v2134 = vadd.f32 %v2087, %v2088
    %v2135 = vadd.f32 %v2134, %v2089
    %v2136 = vadd.f32 %v2135, %v2090
    %v2137 = vrot.slane %v2136, 4
    %v2138 = vadd.f32 %v2136, %v2137
    %v2139 = vrot.slane %v2138, 2
    %v2140 = vadd.f32 %v2138, %v2139
    %v2141 = vrot.slane %v2140, 1
    %v2142 = vadd.f32 %v2140, %v2141
    %v2143 = vadd.f32 %v2091, %v2092
    %v2144 = vadd.f32 %v2143, %v2093
    %v2145 = vadd.f32 %v2144, %v2094
    %v2146 = vrot.slane %v2145, 4
    %v2147 = vadd.f32 %v2145, %v2146
    %v2148 = vrot.slane %v2147, 2
    %v2149 = vadd.f32 %v2147, %v2148
    %v2150 = vrot.slane %v2149, 1
    %v2151 = vadd.f32 %v2149, %v2150
    %v2152 = vadd.f32 %v2095, %v2096
    %v2153 = vadd.f32 %v2152, %v2097
    %v2154 = vadd.f32 %v2153, %v2098
    %v2155 = vrot.slane %v2154, 4
    %v2156 = vadd.f32 %v2154, %v2155
    %v2157 = vrot.slane %v2156, 2
    %v2158 = vadd.f32 %v2156, %v2157
    %v2159 = vrot.slane %v2158, 1
    %v2160 = vadd.f32 %v2158, %v2159
    %v2161 = vadd.f32 %v2099, %v2100
    %v2162 = vadd.f32 %v2161, %v2101
    %v2163 = vadd.f32 %v2162, %v2102
    %v2164 = vrot.slane %v2163, 4
    %v2165 = vadd.f32 %v2163, %v2164
    %v2166 = vrot.slane %v2165, 2
    %v2167 = vadd.f32 %v2165, %v2166
    %v2168 = vrot.slane %v2167, 1
    %v2169 = vadd.f32 %v2167, %v2168
    %v2170 = vadd.f32 %v2103, %v2104
    %v2171 = vadd.f32 %v2170, %v2105
    %v2172 = vadd.f32 %v2171, %v2106
    %v2173 = vrot.slane %v2172, 4
    %v2174 = vadd.f32 %v2172, %v2173
    %v2175 = vrot.slane %v2174, 2
    %v2176 = vadd.f32 %v2174, %v2175
    %v2177 = vrot.slane %v2176, 1
    %v2178 = vadd.f32 %v2176, %v2177
    %v2180 = vrot.slane %v104, 1
    %v2181 = vrot.slane %v104, 2
    %v2182 = vrot.slane %v104, 3
    %v2183 = vrot.slane %v104, 4
    %v2184 = vrot.slane %v104, 5
    %v2185 = vrot.slane %v104, 6
    %v2186 = vrot.slane %v104, 7
    %v2195 = vadd.f32 %v2115, %v104
    %v2196 = vadd.f32 %v2124, %v2180
    %v2197 = vadd.f32 %v2133, %v2181
    %v2198 = vadd.f32 %v2142, %v2182
    %v2199 = vadd.f32 %v2151, %v2183
    %v2200 = vadd.f32 %v2160, %v2184
    %v2201 = vadd.f32 %v2169, %v2185
    %v2202 = vadd.f32 %v2178, %v2186
    %v2203 = vxor.u32 %v2195, 2147483648
    %v2204 = vxor.u32 %v2196, 2147483648
    %v2205 = vxor.u32 %v2197, 2147483648
    %v2206 = vxor.u32 %v2198, 2147483648
    %v2207 = vxor.u32 %v2199, 2147483648
    %v2208 = vxor.u32 %v2200, 2147483648
    %v2209 = vxor.u32 %v2201, 2147483648
    %v2210 = vxor.u32 %v2202, 2147483648
    %v2211 = vmul.f32 %v2203, 1.442695
    %v2212 = vpow.pop %v2211
    %v2213 = vmul.f32 %v2204, 1.442695
    %v2214 = vpow.pop %v2213
    %v2215 = vmul.f32 %v2205, 1.442695
    %v2216 = vpow.pop %v2215
    %v2217 = vmul.f32 %v2206, 1.442695
    %v2218 = vpow.pop %v2217
    %v2219 = vmul.f32 %v2207, 1.442695
    %v2220 = vpow.pop %v2219
    %v2221 = vmul.f32 %v2208, 1.442695
    %v2222 = vpow.pop %v2221
    %v2223 = vmul.f32 %v2209, 1.442695
    %v2224 = vpow.pop %v2223
    %v2225 = vmul.f32 %v2210, 1.442695
    %v2226 = vpow.pop %v2225
    %v2227 = vadd.f32 %v2212, 1.0
    %v2228 = vadd.f32 %v2214, 1.0
    %v2229 = vadd.f32 %v2216, 1.0
    %v2230 = vadd.f32 %v2218, 1.0
    %v2231 = vadd.f32 %v2220, 1.0
    %v2232 = vadd.f32 %v2222, 1.0
    %v2233 = vadd.f32 %v2224, 1.0
    %v2234 = vadd.f32 %v2226, 1.0
    %v2235 = vrcp.pop %v2227
    %v2236 = vmul.f32 1.0, %v2235
    %v2237 = vrcp.pop %v2228
    %v2238 = vmul.f32 1.0, %v2237
    %v2239 = vrcp.pop %v2229
    %v2240 = vmul.f32 1.0, %v2239
    %v2241 = vrcp.pop %v2230
    %v2242 = vmul.f32 1.0, %v2241
    %v2243 = vrcp.pop %v2231
    %v2244 = vmul.f32 1.0, %v2243
    %v2245 = vrcp.pop %v2232
    %v2246 = vmul.f32 1.0, %v2245
    %v2247 = vrcp.pop %v2233
    %v2248 = vmul.f32 1.0, %v2247
    %v2249 = vrcp.pop %v2234
    %v2250 = vmul.f32 1.0, %v2249
    %v2251 = vtanh.pop %v2195
    %v2252 = vtanh.pop %v2196
    %v2253 = vtanh.pop %v2197
    %v2254 = vtanh.pop %v2198
    %v2255 = vtanh.pop %v2199
    %v2256 = vtanh.pop %v2200
    %v2257 = vtanh.pop %v2201
    %v2258 = vtanh.pop %v2202
    %v2259 = vmul.f32 %v2236, %v1859
    %v2260 = vmul.f32 %v2238, %v1860
    %v2261 = vmul.f32 %v2240, %v1861
    %v2262 = vmul.f32 %v2242, %v1862
    %v2263 = vmul.f32 %v2244, %v1863
    %v2264 = vmul.f32 %v2246, %v1864
    %v2265 = vmul.f32 %v2248, %v1865
    %v2266 = vmul.f32 %v2250, %v1866
    %2275 = vrot.lane.b32.xlu0 %v2251, 64
    %v2276 = vpop.permute.xlu0 %2275
    %2277 = vrot.lane.b32.xlu0 %v2252, 64
    %v2278 = vpop.permute.xlu0 %2277
    %2279 = vrot.lane.b32.xlu0 %v2253, 64
    %v2280 = vpop.permute.xlu0 %2279
    %2281 = vrot.lane.b32.xlu0 %v2254, 64
    %v2282 = vpop.permute.xlu0 %2281
    %2283 = vrot.lane.b32.xlu0 %v2255, 64
    %v2284 = vpop.permute.xlu0 %2283
    %2285 = vrot.lane.b32.xlu0 %v2256, 64
    %v2286 = vpop.permute.xlu0 %2285
    %2287 = vrot.lane.b32.xlu0 %v2257, 64
    %v2288 = vpop.permute.xlu0 %2287
    %2289 = vrot.lane.b32.xlu0 %v2258, 64
    %v2290 = vpop.permute.xlu0 %2289
    %v2299 = vmul.f32 %v2236, %v2276
    %v2300 = vmul.f32 %v2238, %v2278
    %v2301 = vmul.f32 %v2240, %v2280
    %v2302 = vmul.f32 %v2242, %v2282
    %v2303 = vmul.f32 %v2244, %v2284
    %v2304 = vmul.f32 %v2246, %v2286
    %v2305 = vmul.f32 %v2248, %v2288
    %v2306 = vmul.f32 %v2250, %v2290
    %2315 = vrot.lane.b32.xlu0 %v2299, 32
    %v2316 = vpop.permute.xlu0 %2315
    %2317 = vrot.lane.b32.xlu0 %v2300, 32
    %v2318 = vpop.permute.xlu0 %2317
    %2319 = vrot.lane.b32.xlu0 %v2301, 32
    %v2320 = vpop.permute.xlu0 %2319
    %2321 = vrot.lane.b32.xlu0 %v2302, 32
    %v2322 = vpop.permute.xlu0 %2321
    %2323 = vrot.lane.b32.xlu0 %v2303, 32
    %v2324 = vpop.permute.xlu0 %2323
    %2325 = vrot.lane.b32.xlu0 %v2304, 32
    %v2326 = vpop.permute.xlu0 %2325
    %2327 = vrot.lane.b32.xlu0 %v2305, 32
    %v2328 = vpop.permute.xlu0 %2327
    %2329 = vrot.lane.b32.xlu0 %v2306, 32
    %v2330 = vpop.permute.xlu0 %2329
    %v2339 = vadd.f32 %v2259, %v2316
    %v2340 = vadd.f32 %v2260, %v2318
    %v2341 = vadd.f32 %v2261, %v2320
    %v2342 = vadd.f32 %v2262, %v2322
    %v2343 = vadd.f32 %v2263, %v2324
    %v2344 = vadd.f32 %v2264, %v2326
    %v2345 = vadd.f32 %v2265, %v2328
    %v2346 = vadd.f32 %v2266, %v2330
    %v2347 = vtanh.pop %v2339
    %v2348 = vtanh.pop %v2340
    %v2349 = vtanh.pop %v2341
    %v2350 = vtanh.pop %v2342
    %v2351 = vtanh.pop %v2343
    %v2352 = vtanh.pop %v2344
    %v2353 = vtanh.pop %v2345
    %v2354 = vtanh.pop %v2346
    %2363 = vrot.lane.b32.xlu0 %v2347, 64
    %v2364 = vpop.permute.xlu0 %2363
    %2365 = vrot.lane.b32.xlu0 %v2348, 64
    %v2366 = vpop.permute.xlu0 %2365
    %2367 = vrot.lane.b32.xlu0 %v2349, 64
    %v2368 = vpop.permute.xlu0 %2367
    %2369 = vrot.lane.b32.xlu0 %v2350, 64
    %v2370 = vpop.permute.xlu0 %2369
    %2371 = vrot.lane.b32.xlu0 %v2351, 64
    %v2372 = vpop.permute.xlu0 %2371
    %2373 = vrot.lane.b32.xlu0 %v2352, 64
    %v2374 = vpop.permute.xlu0 %2373
    %2375 = vrot.lane.b32.xlu0 %v2353, 64
    %v2376 = vpop.permute.xlu0 %2375
    %2377 = vrot.lane.b32.xlu0 %v2354, 64
    %v2378 = vpop.permute.xlu0 %2377
    %v2387 = vmul.f32 %v2236, %v2364
    %v2388 = vmul.f32 %v2238, %v2366
    %v2389 = vmul.f32 %v2240, %v2368
    %v2390 = vmul.f32 %v2242, %v2370
    %v2391 = vmul.f32 %v2244, %v2372
    %v2392 = vmul.f32 %v2246, %v2374
    %v2393 = vmul.f32 %v2248, %v2376
    %v2394 = vmul.f32 %v2250, %v2378
    %v2395 = vlaneseq
    %v2396 = vshrl.u32 %v2395, 7
    %v2397 = vsub.s32 0, %v2396
    %v2398 = vrot.slane %v2387, %v2397
    %s2400 = sor.u32 256, 96
    %2401 = vbcast.lane.b32.xlu0 %v2398, %s2400
    %v2402 = vpop.permute.xlu0 %2401
    %s2404 = sor.u32 256, 104
    %2405 = vbcast.lane.b32.xlu0 %v2398, %s2404
    %v2406 = vpop.permute.xlu0 %2405
    %s2408 = sor.u32 256, 112
    %2409 = vbcast.lane.b32.xlu0 %v2398, %s2408
    %v2410 = vpop.permute.xlu0 %2409
    %s2412 = sor.u32 256, 120
    %2413 = vbcast.lane.b32.xlu0 %v2398, %s2412
    %v2414 = vpop.permute.xlu0 %2413
    %v2415 = vlaneseq
    %v2416 = vshrl.u32 %v2415, 7
    %v2417 = vsub.s32 0, %v2416
    %v2418 = vrot.slane %v2388, %v2417
    %s2420 = sor.u32 256, 96
    %2421 = vbcast.lane.b32.xlu0 %v2418, %s2420
    %v2422 = vpop.permute.xlu0 %2421
    %s2424 = sor.u32 256, 104
    %2425 = vbcast.lane.b32.xlu0 %v2418, %s2424
    %v2426 = vpop.permute.xlu0 %2425
    %s2428 = sor.u32 256, 112
    %2429 = vbcast.lane.b32.xlu0 %v2418, %s2428
    %v2430 = vpop.permute.xlu0 %2429
    %s2432 = sor.u32 256, 120
    %2433 = vbcast.lane.b32.xlu0 %v2418, %s2432
    %v2434 = vpop.permute.xlu0 %2433
    %v2435 = vlaneseq
    %v2436 = vshrl.u32 %v2435, 7
    %v2437 = vsub.s32 0, %v2436
    %v2438 = vrot.slane %v2389, %v2437
    %s2440 = sor.u32 256, 96
    %2441 = vbcast.lane.b32.xlu0 %v2438, %s2440
    %v2442 = vpop.permute.xlu0 %2441
    %s2444 = sor.u32 256, 104
    %2445 = vbcast.lane.b32.xlu0 %v2438, %s2444
    %v2446 = vpop.permute.xlu0 %2445
    %s2448 = sor.u32 256, 112
    %2449 = vbcast.lane.b32.xlu0 %v2438, %s2448
    %v2450 = vpop.permute.xlu0 %2449
    %s2452 = sor.u32 256, 120
    %2453 = vbcast.lane.b32.xlu0 %v2438, %s2452
    %v2454 = vpop.permute.xlu0 %2453
    %v2455 = vlaneseq
    %v2456 = vshrl.u32 %v2455, 7
    %v2457 = vsub.s32 0, %v2456
    %v2458 = vrot.slane %v2390, %v2457
    %s2460 = sor.u32 256, 96
    %2461 = vbcast.lane.b32.xlu0 %v2458, %s2460
    %v2462 = vpop.permute.xlu0 %2461
    %s2464 = sor.u32 256, 104
    %2465 = vbcast.lane.b32.xlu0 %v2458, %s2464
    %v2466 = vpop.permute.xlu0 %2465
    %s2468 = sor.u32 256, 112
    %2469 = vbcast.lane.b32.xlu0 %v2458, %s2468
    %v2470 = vpop.permute.xlu0 %2469
    %s2472 = sor.u32 256, 120
    %2473 = vbcast.lane.b32.xlu0 %v2458, %s2472
    %v2474 = vpop.permute.xlu0 %2473
    %v2475 = vlaneseq
    %v2476 = vshrl.u32 %v2475, 7
    %v2477 = vsub.s32 0, %v2476
    %v2478 = vrot.slane %v2391, %v2477
    %s2480 = sor.u32 256, 96
    %2481 = vbcast.lane.b32.xlu0 %v2478, %s2480
    %v2482 = vpop.permute.xlu0 %2481
    %s2484 = sor.u32 256, 104
    %2485 = vbcast.lane.b32.xlu0 %v2478, %s2484
    %v2486 = vpop.permute.xlu0 %2485
    %s2488 = sor.u32 256, 112
    %2489 = vbcast.lane.b32.xlu0 %v2478, %s2488
    %v2490 = vpop.permute.xlu0 %2489
    %s2492 = sor.u32 256, 120
    %2493 = vbcast.lane.b32.xlu0 %v2478, %s2492
    %v2494 = vpop.permute.xlu0 %2493
    %v2495 = vlaneseq
    %v2496 = vshrl.u32 %v2495, 7
    %v2497 = vsub.s32 0, %v2496
    %v2498 = vrot.slane %v2392, %v2497
    %s2500 = sor.u32 256, 96
    %2501 = vbcast.lane.b32.xlu0 %v2498, %s2500
    %v2502 = vpop.permute.xlu0 %2501
    %s2504 = sor.u32 256, 104
    %2505 = vbcast.lane.b32.xlu0 %v2498, %s2504
    %v2506 = vpop.permute.xlu0 %2505
    %s2508 = sor.u32 256, 112
    %2509 = vbcast.lane.b32.xlu0 %v2498, %s2508
    %v2510 = vpop.permute.xlu0 %2509
    %s2512 = sor.u32 256, 120
    %2513 = vbcast.lane.b32.xlu0 %v2498, %s2512
    %v2514 = vpop.permute.xlu0 %2513
    %v2515 = vlaneseq
    %v2516 = vshrl.u32 %v2515, 7
    %v2517 = vsub.s32 0, %v2516
    %v2518 = vrot.slane %v2393, %v2517
    %s2520 = sor.u32 256, 96
    %2521 = vbcast.lane.b32.xlu0 %v2518, %s2520
    %v2522 = vpop.permute.xlu0 %2521
    %s2524 = sor.u32 256, 104
    %2525 = vbcast.lane.b32.xlu0 %v2518, %s2524
    %v2526 = vpop.permute.xlu0 %2525
    %s2528 = sor.u32 256, 112
    %2529 = vbcast.lane.b32.xlu0 %v2518, %s2528
    %v2530 = vpop.permute.xlu0 %2529
    %s2532 = sor.u32 256, 120
    %2533 = vbcast.lane.b32.xlu0 %v2518, %s2532
    %v2534 = vpop.permute.xlu0 %2533
    %v2535 = vlaneseq
    %v2536 = vshrl.u32 %v2535, 7
    %v2537 = vsub.s32 0, %v2536
    %v2538 = vrot.slane %v2394, %v2537
    %s2540 = sor.u32 256, 96
    %2541 = vbcast.lane.b32.xlu0 %v2538, %s2540
    %v2542 = vpop.permute.xlu0 %2541
    %s2544 = sor.u32 256, 104
    %2545 = vbcast.lane.b32.xlu0 %v2538, %s2544
    %v2546 = vpop.permute.xlu0 %2545
    %s2548 = sor.u32 256, 112
    %2549 = vbcast.lane.b32.xlu0 %v2538, %s2548
    %v2550 = vpop.permute.xlu0 %2549
    %s2552 = sor.u32 256, 120
    %2553 = vbcast.lane.b32.xlu0 %v2538, %s2552
    %v2554 = vpop.permute.xlu0 %2553
    %v2555 = vmul.f32 %v123, %v2402
    %v2556 = vmul.f32 %v124, %v2406
    %v2557 = vmul.f32 %v125, %v2410
    %v2558 = vmul.f32 %v126, %v2414
    %v2559 = vmul.f32 %v127, %v2422
    %v2560 = vmul.f32 %v128, %v2426
    %v2561 = vmul.f32 %v129, %v2430
    %v2562 = vmul.f32 %v130, %v2434
    %v2563 = vmul.f32 %v131, %v2442
    %v2564 = vmul.f32 %v132, %v2446
    %v2565 = vmul.f32 %v133, %v2450
    %v2566 = vmul.f32 %v134, %v2454
    %v2567 = vmul.f32 %v135, %v2462
    %v2568 = vmul.f32 %v136, %v2466
    %v2569 = vmul.f32 %v137, %v2470
    %v2570 = vmul.f32 %v138, %v2474
    %v2571 = vmul.f32 %v139, %v2482
    %v2572 = vmul.f32 %v140, %v2486
    %v2573 = vmul.f32 %v141, %v2490
    %v2574 = vmul.f32 %v142, %v2494
    %v2575 = vmul.f32 %v143, %v2502
    %v2576 = vmul.f32 %v144, %v2506
    %v2577 = vmul.f32 %v145, %v2510
    %v2578 = vmul.f32 %v146, %v2514
    %v2579 = vmul.f32 %v147, %v2522
    %v2580 = vmul.f32 %v148, %v2526
    %v2581 = vmul.f32 %v149, %v2530
    %v2582 = vmul.f32 %v150, %v2534
    %v2583 = vmul.f32 %v151, %v2542
    %v2584 = vmul.f32 %v152, %v2546
    %v2585 = vmul.f32 %v153, %v2550
    %v2586 = vmul.f32 %v154, %v2554
    %v2587 = vadd.f32 %v2555, %v2556
    %v2588 = vadd.f32 %v2587, %v2557
    %v2589 = vadd.f32 %v2588, %v2558
    %v2590 = vrot.slane %v2589, 4
    %v2591 = vadd.f32 %v2589, %v2590
    %v2592 = vrot.slane %v2591, 2
    %v2593 = vadd.f32 %v2591, %v2592
    %v2594 = vrot.slane %v2593, 1
    %v2595 = vadd.f32 %v2593, %v2594
    %v2596 = vadd.f32 %v2559, %v2560
    %v2597 = vadd.f32 %v2596, %v2561
    %v2598 = vadd.f32 %v2597, %v2562
    %v2599 = vrot.slane %v2598, 4
    %v2600 = vadd.f32 %v2598, %v2599
    %v2601 = vrot.slane %v2600, 2
    %v2602 = vadd.f32 %v2600, %v2601
    %v2603 = vrot.slane %v2602, 1
    %v2604 = vadd.f32 %v2602, %v2603
    %v2605 = vadd.f32 %v2563, %v2564
    %v2606 = vadd.f32 %v2605, %v2565
    %v2607 = vadd.f32 %v2606, %v2566
    %v2608 = vrot.slane %v2607, 4
    %v2609 = vadd.f32 %v2607, %v2608
    %v2610 = vrot.slane %v2609, 2
    %v2611 = vadd.f32 %v2609, %v2610
    %v2612 = vrot.slane %v2611, 1
    %v2613 = vadd.f32 %v2611, %v2612
    %v2614 = vadd.f32 %v2567, %v2568
    %v2615 = vadd.f32 %v2614, %v2569
    %v2616 = vadd.f32 %v2615, %v2570
    %v2617 = vrot.slane %v2616, 4
    %v2618 = vadd.f32 %v2616, %v2617
    %v2619 = vrot.slane %v2618, 2
    %v2620 = vadd.f32 %v2618, %v2619
    %v2621 = vrot.slane %v2620, 1
    %v2622 = vadd.f32 %v2620, %v2621
    %v2623 = vadd.f32 %v2571, %v2572
    %v2624 = vadd.f32 %v2623, %v2573
    %v2625 = vadd.f32 %v2624, %v2574
    %v2626 = vrot.slane %v2625, 4
    %v2627 = vadd.f32 %v2625, %v2626
    %v2628 = vrot.slane %v2627, 2
    %v2629 = vadd.f32 %v2627, %v2628
    %v2630 = vrot.slane %v2629, 1
    %v2631 = vadd.f32 %v2629, %v2630
    %v2632 = vadd.f32 %v2575, %v2576
    %v2633 = vadd.f32 %v2632, %v2577
    %v2634 = vadd.f32 %v2633, %v2578
    %v2635 = vrot.slane %v2634, 4
    %v2636 = vadd.f32 %v2634, %v2635
    %v2637 = vrot.slane %v2636, 2
    %v2638 = vadd.f32 %v2636, %v2637
    %v2639 = vrot.slane %v2638, 1
    %v2640 = vadd.f32 %v2638, %v2639
    %v2641 = vadd.f32 %v2579, %v2580
    %v2642 = vadd.f32 %v2641, %v2581
    %v2643 = vadd.f32 %v2642, %v2582
    %v2644 = vrot.slane %v2643, 4
    %v2645 = vadd.f32 %v2643, %v2644
    %v2646 = vrot.slane %v2645, 2
    %v2647 = vadd.f32 %v2645, %v2646
    %v2648 = vrot.slane %v2647, 1
    %v2649 = vadd.f32 %v2647, %v2648
    %v2650 = vadd.f32 %v2583, %v2584
    %v2651 = vadd.f32 %v2650, %v2585
    %v2652 = vadd.f32 %v2651, %v2586
    %v2653 = vrot.slane %v2652, 4
    %v2654 = vadd.f32 %v2652, %v2653
    %v2655 = vrot.slane %v2654, 2
    %v2656 = vadd.f32 %v2654, %v2655
    %v2657 = vrot.slane %v2656, 1
    %v2658 = vadd.f32 %v2656, %v2657
    %v2660 = vrot.slane %v110, 1
    %v2661 = vrot.slane %v110, 2
    %v2662 = vrot.slane %v110, 3
    %v2663 = vrot.slane %v110, 4
    %v2664 = vrot.slane %v110, 5
    %v2665 = vrot.slane %v110, 6
    %v2666 = vrot.slane %v110, 7
    %v2675 = vadd.f32 %v2595, %v110
    %v2676 = vadd.f32 %v2604, %v2660
    %v2677 = vadd.f32 %v2613, %v2661
    %v2678 = vadd.f32 %v2622, %v2662
    %v2679 = vadd.f32 %v2631, %v2663
    %v2680 = vadd.f32 %v2640, %v2664
    %v2681 = vadd.f32 %v2649, %v2665
    %v2682 = vadd.f32 %v2658, %v2666
    %v2683 = vxor.u32 %v2675, 2147483648
    %v2684 = vxor.u32 %v2676, 2147483648
    %v2685 = vxor.u32 %v2677, 2147483648
    %v2686 = vxor.u32 %v2678, 2147483648
    %v2687 = vxor.u32 %v2679, 2147483648
    %v2688 = vxor.u32 %v2680, 2147483648
    %v2689 = vxor.u32 %v2681, 2147483648
    %v2690 = vxor.u32 %v2682, 2147483648
    %v2691 = vmul.f32 %v2683, 1.442695
    %v2692 = vpow.pop %v2691
    %v2693 = vmul.f32 %v2684, 1.442695
    %v2694 = vpow.pop %v2693
    %v2695 = vmul.f32 %v2685, 1.442695
    %v2696 = vpow.pop %v2695
    %v2697 = vmul.f32 %v2686, 1.442695
    %v2698 = vpow.pop %v2697
    %v2699 = vmul.f32 %v2687, 1.442695
    %v2700 = vpow.pop %v2699
    %v2701 = vmul.f32 %v2688, 1.442695
    %v2702 = vpow.pop %v2701
    %v2703 = vmul.f32 %v2689, 1.442695
    %v2704 = vpow.pop %v2703
    %v2705 = vmul.f32 %v2690, 1.442695
    %v2706 = vpow.pop %v2705
    %v2707 = vadd.f32 %v2692, 1.0
    %v2708 = vadd.f32 %v2694, 1.0
    %v2709 = vadd.f32 %v2696, 1.0
    %v2710 = vadd.f32 %v2698, 1.0
    %v2711 = vadd.f32 %v2700, 1.0
    %v2712 = vadd.f32 %v2702, 1.0
    %v2713 = vadd.f32 %v2704, 1.0
    %v2714 = vadd.f32 %v2706, 1.0
    %v2715 = vrcp.pop %v2707
    %v2716 = vmul.f32 1.0, %v2715
    %v2717 = vrcp.pop %v2708
    %v2718 = vmul.f32 1.0, %v2717
    %v2719 = vrcp.pop %v2709
    %v2720 = vmul.f32 1.0, %v2719
    %v2721 = vrcp.pop %v2710
    %v2722 = vmul.f32 1.0, %v2721
    %v2723 = vrcp.pop %v2711
    %v2724 = vmul.f32 1.0, %v2723
    %v2725 = vrcp.pop %v2712
    %v2726 = vmul.f32 1.0, %v2725
    %v2727 = vrcp.pop %v2713
    %v2728 = vmul.f32 1.0, %v2727
    %v2729 = vrcp.pop %v2714
    %v2730 = vmul.f32 1.0, %v2729
    %v2731 = vtanh.pop %v2675
    %v2732 = vtanh.pop %v2676
    %v2733 = vtanh.pop %v2677
    %v2734 = vtanh.pop %v2678
    %v2735 = vtanh.pop %v2679
    %v2736 = vtanh.pop %v2680
    %v2737 = vtanh.pop %v2681
    %v2738 = vtanh.pop %v2682
    %v2739 = vmul.f32 %v2716, %v2339
    %v2740 = vmul.f32 %v2718, %v2340
    %v2741 = vmul.f32 %v2720, %v2341
    %v2742 = vmul.f32 %v2722, %v2342
    %v2743 = vmul.f32 %v2724, %v2343
    %v2744 = vmul.f32 %v2726, %v2344
    %v2745 = vmul.f32 %v2728, %v2345
    %v2746 = vmul.f32 %v2730, %v2346
    %2755 = vrot.lane.b32.xlu0 %v2731, 64
    %v2756 = vpop.permute.xlu0 %2755
    %2757 = vrot.lane.b32.xlu0 %v2732, 64
    %v2758 = vpop.permute.xlu0 %2757
    %2759 = vrot.lane.b32.xlu0 %v2733, 64
    %v2760 = vpop.permute.xlu0 %2759
    %2761 = vrot.lane.b32.xlu0 %v2734, 64
    %v2762 = vpop.permute.xlu0 %2761
    %2763 = vrot.lane.b32.xlu0 %v2735, 64
    %v2764 = vpop.permute.xlu0 %2763
    %2765 = vrot.lane.b32.xlu0 %v2736, 64
    %v2766 = vpop.permute.xlu0 %2765
    %2767 = vrot.lane.b32.xlu0 %v2737, 64
    %v2768 = vpop.permute.xlu0 %2767
    %2769 = vrot.lane.b32.xlu0 %v2738, 64
    %v2770 = vpop.permute.xlu0 %2769
    %v2779 = vmul.f32 %v2716, %v2756
    %v2780 = vmul.f32 %v2718, %v2758
    %v2781 = vmul.f32 %v2720, %v2760
    %v2782 = vmul.f32 %v2722, %v2762
    %v2783 = vmul.f32 %v2724, %v2764
    %v2784 = vmul.f32 %v2726, %v2766
    %v2785 = vmul.f32 %v2728, %v2768
    %v2786 = vmul.f32 %v2730, %v2770
    %2795 = vrot.lane.b32.xlu0 %v2779, 32
    %v2796 = vpop.permute.xlu0 %2795
    %2797 = vrot.lane.b32.xlu0 %v2780, 32
    %v2798 = vpop.permute.xlu0 %2797
    %2799 = vrot.lane.b32.xlu0 %v2781, 32
    %v2800 = vpop.permute.xlu0 %2799
    %2801 = vrot.lane.b32.xlu0 %v2782, 32
    %v2802 = vpop.permute.xlu0 %2801
    %2803 = vrot.lane.b32.xlu0 %v2783, 32
    %v2804 = vpop.permute.xlu0 %2803
    %2805 = vrot.lane.b32.xlu0 %v2784, 32
    %v2806 = vpop.permute.xlu0 %2805
    %2807 = vrot.lane.b32.xlu0 %v2785, 32
    %v2808 = vpop.permute.xlu0 %2807
    %2809 = vrot.lane.b32.xlu0 %v2786, 32
    %v2810 = vpop.permute.xlu0 %2809
    %v2819 = vadd.f32 %v2739, %v2796
    %v2820 = vadd.f32 %v2740, %v2798
    %v2821 = vadd.f32 %v2741, %v2800
    %v2822 = vadd.f32 %v2742, %v2802
    %v2823 = vadd.f32 %v2743, %v2804
    %v2824 = vadd.f32 %v2744, %v2806
    %v2825 = vadd.f32 %v2745, %v2808
    %v2826 = vadd.f32 %v2746, %v2810
    %v2827 = vtanh.pop %v2819
    %v2828 = vtanh.pop %v2820
    %v2829 = vtanh.pop %v2821
    %v2830 = vtanh.pop %v2822
    %v2831 = vtanh.pop %v2823
    %v2832 = vtanh.pop %v2824
    %v2833 = vtanh.pop %v2825
    %v2834 = vtanh.pop %v2826
    %2843 = vrot.lane.b32.xlu0 %v2827, 64
    %v2844 = vpop.permute.xlu0 %2843
    %2845 = vrot.lane.b32.xlu0 %v2828, 64
    %v2846 = vpop.permute.xlu0 %2845
    %2847 = vrot.lane.b32.xlu0 %v2829, 64
    %v2848 = vpop.permute.xlu0 %2847
    %2849 = vrot.lane.b32.xlu0 %v2830, 64
    %v2850 = vpop.permute.xlu0 %2849
    %2851 = vrot.lane.b32.xlu0 %v2831, 64
    %v2852 = vpop.permute.xlu0 %2851
    %2853 = vrot.lane.b32.xlu0 %v2832, 64
    %v2854 = vpop.permute.xlu0 %2853
    %2855 = vrot.lane.b32.xlu0 %v2833, 64
    %v2856 = vpop.permute.xlu0 %2855
    %2857 = vrot.lane.b32.xlu0 %v2834, 64
    %v2858 = vpop.permute.xlu0 %2857
    %v2867 = vmul.f32 %v2716, %v2844
    %v2868 = vmul.f32 %v2718, %v2846
    %v2869 = vmul.f32 %v2720, %v2848
    %v2870 = vmul.f32 %v2722, %v2850
    %v2871 = vmul.f32 %v2724, %v2852
    %v2872 = vmul.f32 %v2726, %v2854
    %v2873 = vmul.f32 %v2728, %v2856
    %v2874 = vmul.f32 %v2730, %v2858
    %v2875 = vlaneseq
    %v2876 = vshrl.u32 %v2875, 7
    %v2877 = vsub.s32 0, %v2876
    %v2878 = vrot.slane %v2867, %v2877
    %s2880 = sor.u32 256, 96
    %2881 = vbcast.lane.b32.xlu0 %v2878, %s2880
    %v2882 = vpop.permute.xlu0 %2881
    %s2884 = sor.u32 256, 104
    %2885 = vbcast.lane.b32.xlu0 %v2878, %s2884
    %v2886 = vpop.permute.xlu0 %2885
    %s2888 = sor.u32 256, 112
    %2889 = vbcast.lane.b32.xlu0 %v2878, %s2888
    %v2890 = vpop.permute.xlu0 %2889
    %s2892 = sor.u32 256, 120
    %2893 = vbcast.lane.b32.xlu0 %v2878, %s2892
    %v2894 = vpop.permute.xlu0 %2893
    %v2895 = vlaneseq
    %v2896 = vshrl.u32 %v2895, 7
    %v2897 = vsub.s32 0, %v2896
    %v2898 = vrot.slane %v2868, %v2897
    %s2900 = sor.u32 256, 96
    %2901 = vbcast.lane.b32.xlu0 %v2898, %s2900
    %v2902 = vpop.permute.xlu0 %2901
    %s2904 = sor.u32 256, 104
    %2905 = vbcast.lane.b32.xlu0 %v2898, %s2904
    %v2906 = vpop.permute.xlu0 %2905
    %s2908 = sor.u32 256, 112
    %2909 = vbcast.lane.b32.xlu0 %v2898, %s2908
    %v2910 = vpop.permute.xlu0 %2909
    %s2912 = sor.u32 256, 120
    %2913 = vbcast.lane.b32.xlu0 %v2898, %s2912
    %v2914 = vpop.permute.xlu0 %2913
    %v2915 = vlaneseq
    %v2916 = vshrl.u32 %v2915, 7
    %v2917 = vsub.s32 0, %v2916
    %v2918 = vrot.slane %v2869, %v2917
    %s2920 = sor.u32 256, 96
    %2921 = vbcast.lane.b32.xlu0 %v2918, %s2920
    %v2922 = vpop.permute.xlu0 %2921
    %s2924 = sor.u32 256, 104
    %2925 = vbcast.lane.b32.xlu0 %v2918, %s2924
    %v2926 = vpop.permute.xlu0 %2925
    %s2928 = sor.u32 256, 112
    %2929 = vbcast.lane.b32.xlu0 %v2918, %s2928
    %v2930 = vpop.permute.xlu0 %2929
    %s2932 = sor.u32 256, 120
    %2933 = vbcast.lane.b32.xlu0 %v2918, %s2932
    %v2934 = vpop.permute.xlu0 %2933
    %v2935 = vlaneseq
    %v2936 = vshrl.u32 %v2935, 7
    %v2937 = vsub.s32 0, %v2936
    %v2938 = vrot.slane %v2870, %v2937
    %s2940 = sor.u32 256, 96
    %2941 = vbcast.lane.b32.xlu0 %v2938, %s2940
    %v2942 = vpop.permute.xlu0 %2941
    %s2944 = sor.u32 256, 104
    %2945 = vbcast.lane.b32.xlu0 %v2938, %s2944
    %v2946 = vpop.permute.xlu0 %2945
    %s2948 = sor.u32 256, 112
    %2949 = vbcast.lane.b32.xlu0 %v2938, %s2948
    %v2950 = vpop.permute.xlu0 %2949
    %s2952 = sor.u32 256, 120
    %2953 = vbcast.lane.b32.xlu0 %v2938, %s2952
    %v2954 = vpop.permute.xlu0 %2953
    %v2955 = vlaneseq
    %v2956 = vshrl.u32 %v2955, 7
    %v2957 = vsub.s32 0, %v2956
    %v2958 = vrot.slane %v2871, %v2957
    %s2960 = sor.u32 256, 96
    %2961 = vbcast.lane.b32.xlu0 %v2958, %s2960
    %v2962 = vpop.permute.xlu0 %2961
    %s2964 = sor.u32 256, 104
    %2965 = vbcast.lane.b32.xlu0 %v2958, %s2964
    %v2966 = vpop.permute.xlu0 %2965
    %s2968 = sor.u32 256, 112
    %2969 = vbcast.lane.b32.xlu0 %v2958, %s2968
    %v2970 = vpop.permute.xlu0 %2969
    %s2972 = sor.u32 256, 120
    %2973 = vbcast.lane.b32.xlu0 %v2958, %s2972
    %v2974 = vpop.permute.xlu0 %2973
    %v2975 = vlaneseq
    %v2976 = vshrl.u32 %v2975, 7
    %v2977 = vsub.s32 0, %v2976
    %v2978 = vrot.slane %v2872, %v2977
    %s2980 = sor.u32 256, 96
    %2981 = vbcast.lane.b32.xlu0 %v2978, %s2980
    %v2982 = vpop.permute.xlu0 %2981
    %s2984 = sor.u32 256, 104
    %2985 = vbcast.lane.b32.xlu0 %v2978, %s2984
    %v2986 = vpop.permute.xlu0 %2985
    %s2988 = sor.u32 256, 112
    %2989 = vbcast.lane.b32.xlu0 %v2978, %s2988
    %v2990 = vpop.permute.xlu0 %2989
    %s2992 = sor.u32 256, 120
    %2993 = vbcast.lane.b32.xlu0 %v2978, %s2992
    %v2994 = vpop.permute.xlu0 %2993
    %v2995 = vlaneseq
    %v2996 = vshrl.u32 %v2995, 7
    %v2997 = vsub.s32 0, %v2996
    %v2998 = vrot.slane %v2873, %v2997
    %s3000 = sor.u32 256, 96
    %3001 = vbcast.lane.b32.xlu0 %v2998, %s3000
    %v3002 = vpop.permute.xlu0 %3001
    %s3004 = sor.u32 256, 104
    %3005 = vbcast.lane.b32.xlu0 %v2998, %s3004
    %v3006 = vpop.permute.xlu0 %3005
    %s3008 = sor.u32 256, 112
    %3009 = vbcast.lane.b32.xlu0 %v2998, %s3008
    %v3010 = vpop.permute.xlu0 %3009
    %s3012 = sor.u32 256, 120
    %3013 = vbcast.lane.b32.xlu0 %v2998, %s3012
    %v3014 = vpop.permute.xlu0 %3013
    %v3015 = vlaneseq
    %v3016 = vshrl.u32 %v3015, 7
    %v3017 = vsub.s32 0, %v3016
    %v3018 = vrot.slane %v2874, %v3017
    %s3020 = sor.u32 256, 96
    %3021 = vbcast.lane.b32.xlu0 %v3018, %s3020
    %v3022 = vpop.permute.xlu0 %3021
    %s3024 = sor.u32 256, 104
    %3025 = vbcast.lane.b32.xlu0 %v3018, %s3024
    %v3026 = vpop.permute.xlu0 %3025
    %s3028 = sor.u32 256, 112
    %3029 = vbcast.lane.b32.xlu0 %v3018, %s3028
    %v3030 = vpop.permute.xlu0 %3029
    %s3032 = sor.u32 256, 120
    %3033 = vbcast.lane.b32.xlu0 %v3018, %s3032
    %v3034 = vpop.permute.xlu0 %3033
    %v3035 = vmul.f32 %v123, %v2882
    %v3036 = vmul.f32 %v124, %v2886
    %v3037 = vmul.f32 %v125, %v2890
    %v3038 = vmul.f32 %v126, %v2894
    %v3039 = vmul.f32 %v127, %v2902
    %v3040 = vmul.f32 %v128, %v2906
    %v3041 = vmul.f32 %v129, %v2910
    %v3042 = vmul.f32 %v130, %v2914
    %v3043 = vmul.f32 %v131, %v2922
    %v3044 = vmul.f32 %v132, %v2926
    %v3045 = vmul.f32 %v133, %v2930
    %v3046 = vmul.f32 %v134, %v2934
    %v3047 = vmul.f32 %v135, %v2942
    %v3048 = vmul.f32 %v136, %v2946
    %v3049 = vmul.f32 %v137, %v2950
    %v3050 = vmul.f32 %v138, %v2954
    %v3051 = vmul.f32 %v139, %v2962
    %v3052 = vmul.f32 %v140, %v2966
    %v3053 = vmul.f32 %v141, %v2970
    %v3054 = vmul.f32 %v142, %v2974
    %v3055 = vmul.f32 %v143, %v2982
    %v3056 = vmul.f32 %v144, %v2986
    %v3057 = vmul.f32 %v145, %v2990
    %v3058 = vmul.f32 %v146, %v2994
    %v3059 = vmul.f32 %v147, %v3002
    %v3060 = vmul.f32 %v148, %v3006
    %v3061 = vmul.f32 %v149, %v3010
    %v3062 = vmul.f32 %v150, %v3014
    %v3063 = vmul.f32 %v151, %v3022
    %v3064 = vmul.f32 %v152, %v3026
    %v3065 = vmul.f32 %v153, %v3030
    %v3066 = vmul.f32 %v154, %v3034
    %v3067 = vadd.f32 %v3035, %v3036
    %v3068 = vadd.f32 %v3067, %v3037
    %v3069 = vadd.f32 %v3068, %v3038
    %v3070 = vrot.slane %v3069, 4
    %v3071 = vadd.f32 %v3069, %v3070
    %v3072 = vrot.slane %v3071, 2
    %v3073 = vadd.f32 %v3071, %v3072
    %v3074 = vrot.slane %v3073, 1
    %v3075 = vadd.f32 %v3073, %v3074
    %v3076 = vadd.f32 %v3039, %v3040
    %v3077 = vadd.f32 %v3076, %v3041
    %v3078 = vadd.f32 %v3077, %v3042
    %v3079 = vrot.slane %v3078, 4
    %v3080 = vadd.f32 %v3078, %v3079
    %v3081 = vrot.slane %v3080, 2
    %v3082 = vadd.f32 %v3080, %v3081
    %v3083 = vrot.slane %v3082, 1
    %v3084 = vadd.f32 %v3082, %v3083
    %v3085 = vadd.f32 %v3043, %v3044
    %v3086 = vadd.f32 %v3085, %v3045
    %v3087 = vadd.f32 %v3086, %v3046
    %v3088 = vrot.slane %v3087, 4
    %v3089 = vadd.f32 %v3087, %v3088
    %v3090 = vrot.slane %v3089, 2
    %v3091 = vadd.f32 %v3089, %v3090
    %v3092 = vrot.slane %v3091, 1
    %v3093 = vadd.f32 %v3091, %v3092
    %v3094 = vadd.f32 %v3047, %v3048
    %v3095 = vadd.f32 %v3094, %v3049
    %v3096 = vadd.f32 %v3095, %v3050
    %v3097 = vrot.slane %v3096, 4
    %v3098 = vadd.f32 %v3096, %v3097
    %v3099 = vrot.slane %v3098, 2
    %v3100 = vadd.f32 %v3098, %v3099
    %v3101 = vrot.slane %v3100, 1
    %v3102 = vadd.f32 %v3100, %v3101
    %v3103 = vadd.f32 %v3051, %v3052
    %v3104 = vadd.f32 %v3103, %v3053
    %v3105 = vadd.f32 %v3104, %v3054
    %v3106 = vrot.slane %v3105, 4
    %v3107 = vadd.f32 %v3105, %v3106
    %v3108 = vrot.slane %v3107, 2
    %v3109 = vadd.f32 %v3107, %v3108
    %v3110 = vrot.slane %v3109, 1
    %v3111 = vadd.f32 %v3109, %v3110
    %v3112 = vadd.f32 %v3055, %v3056
    %v3113 = vadd.f32 %v3112, %v3057
    %v3114 = vadd.f32 %v3113, %v3058
    %v3115 = vrot.slane %v3114, 4
    %v3116 = vadd.f32 %v3114, %v3115
    %v3117 = vrot.slane %v3116, 2
    %v3118 = vadd.f32 %v3116, %v3117
    %v3119 = vrot.slane %v3118, 1
    %v3120 = vadd.f32 %v3118, %v3119
    %v3121 = vadd.f32 %v3059, %v3060
    %v3122 = vadd.f32 %v3121, %v3061
    %v3123 = vadd.f32 %v3122, %v3062
    %v3124 = vrot.slane %v3123, 4
    %v3125 = vadd.f32 %v3123, %v3124
    %v3126 = vrot.slane %v3125, 2
    %v3127 = vadd.f32 %v3125, %v3126
    %v3128 = vrot.slane %v3127, 1
    %v3129 = vadd.f32 %v3127, %v3128
    %v3130 = vadd.f32 %v3063, %v3064
    %v3131 = vadd.f32 %v3130, %v3065
    %v3132 = vadd.f32 %v3131, %v3066
    %v3133 = vrot.slane %v3132, 4
    %v3134 = vadd.f32 %v3132, %v3133
    %v3135 = vrot.slane %v3134, 2
    %v3136 = vadd.f32 %v3134, %v3135
    %v3137 = vrot.slane %v3136, 1
    %v3138 = vadd.f32 %v3136, %v3137
    %v3140 = vrot.slane %v116, 1
    %v3141 = vrot.slane %v116, 2
    %v3142 = vrot.slane %v116, 3
    %v3143 = vrot.slane %v116, 4
    %v3144 = vrot.slane %v116, 5
    %v3145 = vrot.slane %v116, 6
    %v3146 = vrot.slane %v116, 7
    %v3155 = vadd.f32 %v3075, %v116
    %v3156 = vadd.f32 %v3084, %v3140
    %v3157 = vadd.f32 %v3093, %v3141
    %v3158 = vadd.f32 %v3102, %v3142
    %v3159 = vadd.f32 %v3111, %v3143
    %v3160 = vadd.f32 %v3120, %v3144
    %v3161 = vadd.f32 %v3129, %v3145
    %v3162 = vadd.f32 %v3138, %v3146
    %v3163 = vxor.u32 %v3155, 2147483648
    %v3164 = vxor.u32 %v3156, 2147483648
    %v3165 = vxor.u32 %v3157, 2147483648
    %v3166 = vxor.u32 %v3158, 2147483648
    %v3167 = vxor.u32 %v3159, 2147483648
    %v3168 = vxor.u32 %v3160, 2147483648
    %v3169 = vxor.u32 %v3161, 2147483648
    %v3170 = vxor.u32 %v3162, 2147483648
    %v3171 = vmul.f32 %v3163, 1.442695
    %v3172 = vpow.pop %v3171
    %v3173 = vmul.f32 %v3164, 1.442695
    %v3174 = vpow.pop %v3173
    %v3175 = vmul.f32 %v3165, 1.442695
    %v3176 = vpow.pop %v3175
    %v3177 = vmul.f32 %v3166, 1.442695
    %v3178 = vpow.pop %v3177
    %v3179 = vmul.f32 %v3167, 1.442695
    %v3180 = vpow.pop %v3179
    %v3181 = vmul.f32 %v3168, 1.442695
    %v3182 = vpow.pop %v3181
    %v3183 = vmul.f32 %v3169, 1.442695
    %v3184 = vpow.pop %v3183
    %v3185 = vmul.f32 %v3170, 1.442695
    %v3186 = vpow.pop %v3185
    %v3187 = vadd.f32 %v3172, 1.0
    %v3188 = vadd.f32 %v3174, 1.0
    %v3189 = vadd.f32 %v3176, 1.0
    %v3190 = vadd.f32 %v3178, 1.0
    %v3191 = vadd.f32 %v3180, 1.0
    %v3192 = vadd.f32 %v3182, 1.0
    %v3193 = vadd.f32 %v3184, 1.0
    %v3194 = vadd.f32 %v3186, 1.0
    %v3195 = vrcp.pop %v3187
    %v3196 = vmul.f32 1.0, %v3195
    %v3197 = vrcp.pop %v3188
    %v3198 = vmul.f32 1.0, %v3197
    %v3199 = vrcp.pop %v3189
    %v3200 = vmul.f32 1.0, %v3199
    %v3201 = vrcp.pop %v3190
    %v3202 = vmul.f32 1.0, %v3201
    %v3203 = vrcp.pop %v3191
    %v3204 = vmul.f32 1.0, %v3203
    %v3205 = vrcp.pop %v3192
    %v3206 = vmul.f32 1.0, %v3205
    %v3207 = vrcp.pop %v3193
    %v3208 = vmul.f32 1.0, %v3207
    %v3209 = vrcp.pop %v3194
    %v3210 = vmul.f32 1.0, %v3209
    %v3211 = vtanh.pop %v3155
    %v3212 = vtanh.pop %v3156
    %v3213 = vtanh.pop %v3157
    %v3214 = vtanh.pop %v3158
    %v3215 = vtanh.pop %v3159
    %v3216 = vtanh.pop %v3160
    %v3217 = vtanh.pop %v3161
    %v3218 = vtanh.pop %v3162
    %v3219 = vmul.f32 %v3196, %v2819
    %v3220 = vmul.f32 %v3198, %v2820
    %v3221 = vmul.f32 %v3200, %v2821
    %v3222 = vmul.f32 %v3202, %v2822
    %v3223 = vmul.f32 %v3204, %v2823
    %v3224 = vmul.f32 %v3206, %v2824
    %v3225 = vmul.f32 %v3208, %v2825
    %v3226 = vmul.f32 %v3210, %v2826
    %3235 = vrot.lane.b32.xlu0 %v3211, 64
    %v3236 = vpop.permute.xlu0 %3235
    %3237 = vrot.lane.b32.xlu0 %v3212, 64
    %v3238 = vpop.permute.xlu0 %3237
    %3239 = vrot.lane.b32.xlu0 %v3213, 64
    %v3240 = vpop.permute.xlu0 %3239
    %3241 = vrot.lane.b32.xlu0 %v3214, 64
    %v3242 = vpop.permute.xlu0 %3241
    %3243 = vrot.lane.b32.xlu0 %v3215, 64
    %v3244 = vpop.permute.xlu0 %3243
    %3245 = vrot.lane.b32.xlu0 %v3216, 64
    %v3246 = vpop.permute.xlu0 %3245
    %3247 = vrot.lane.b32.xlu0 %v3217, 64
    %v3248 = vpop.permute.xlu0 %3247
    %3249 = vrot.lane.b32.xlu0 %v3218, 64
    %v3250 = vpop.permute.xlu0 %3249
    %v3259 = vmul.f32 %v3196, %v3236
    %v3260 = vmul.f32 %v3198, %v3238
    %v3261 = vmul.f32 %v3200, %v3240
    %v3262 = vmul.f32 %v3202, %v3242
    %v3263 = vmul.f32 %v3204, %v3244
    %v3264 = vmul.f32 %v3206, %v3246
    %v3265 = vmul.f32 %v3208, %v3248
    %v3266 = vmul.f32 %v3210, %v3250
    %3275 = vrot.lane.b32.xlu0 %v3259, 32
    %v3276 = vpop.permute.xlu0 %3275
    %3277 = vrot.lane.b32.xlu0 %v3260, 32
    %v3278 = vpop.permute.xlu0 %3277
    %3279 = vrot.lane.b32.xlu0 %v3261, 32
    %v3280 = vpop.permute.xlu0 %3279
    %3281 = vrot.lane.b32.xlu0 %v3262, 32
    %v3282 = vpop.permute.xlu0 %3281
    %3283 = vrot.lane.b32.xlu0 %v3263, 32
    %v3284 = vpop.permute.xlu0 %3283
    %3285 = vrot.lane.b32.xlu0 %v3264, 32
    %v3286 = vpop.permute.xlu0 %3285
    %3287 = vrot.lane.b32.xlu0 %v3265, 32
    %v3288 = vpop.permute.xlu0 %3287
    %3289 = vrot.lane.b32.xlu0 %v3266, 32
    %v3290 = vpop.permute.xlu0 %3289
    %v3299 = vadd.f32 %v3219, %v3276
    %v3300 = vadd.f32 %v3220, %v3278
    %v3301 = vadd.f32 %v3221, %v3280
    %v3302 = vadd.f32 %v3222, %v3282
    %v3303 = vadd.f32 %v3223, %v3284
    %v3304 = vadd.f32 %v3224, %v3286
    %v3305 = vadd.f32 %v3225, %v3288
    %v3306 = vadd.f32 %v3226, %v3290
    %v3307 = vtanh.pop %v3299
    %v3308 = vtanh.pop %v3300
    %v3309 = vtanh.pop %v3301
    %v3310 = vtanh.pop %v3302
    %v3311 = vtanh.pop %v3303
    %v3312 = vtanh.pop %v3304
    %v3313 = vtanh.pop %v3305
    %v3314 = vtanh.pop %v3306
    %3323 = vrot.lane.b32.xlu0 %v3307, 64
    %v3324 = vpop.permute.xlu0 %3323
    %3325 = vrot.lane.b32.xlu0 %v3308, 64
    %v3326 = vpop.permute.xlu0 %3325
    %3327 = vrot.lane.b32.xlu0 %v3309, 64
    %v3328 = vpop.permute.xlu0 %3327
    %3329 = vrot.lane.b32.xlu0 %v3310, 64
    %v3330 = vpop.permute.xlu0 %3329
    %3331 = vrot.lane.b32.xlu0 %v3311, 64
    %v3332 = vpop.permute.xlu0 %3331
    %3333 = vrot.lane.b32.xlu0 %v3312, 64
    %v3334 = vpop.permute.xlu0 %3333
    %3335 = vrot.lane.b32.xlu0 %v3313, 64
    %v3336 = vpop.permute.xlu0 %3335
    %3337 = vrot.lane.b32.xlu0 %v3314, 64
    %v3338 = vpop.permute.xlu0 %3337
    %v3347 = vmul.f32 %v3196, %v3324
    %v3348 = vmul.f32 %v3198, %v3326
    %v3349 = vmul.f32 %v3200, %v3328
    %v3350 = vmul.f32 %v3202, %v3330
    %v3351 = vmul.f32 %v3204, %v3332
    %v3352 = vmul.f32 %v3206, %v3334
    %v3353 = vmul.f32 %v3208, %v3336
    %v3354 = vmul.f32 %v3210, %v3338
    %v3355 = vlaneseq
    %v3356 = vshrl.u32 %v3355, 7
    %v3357 = vsub.s32 0, %v3356
    %v3358 = vrot.slane %v3347, %v3357
    %s3360 = sor.u32 256, 96
    %3361 = vbcast.lane.b32.xlu0 %v3358, %s3360
    %v3362 = vpop.permute.xlu0 %3361
    %s3364 = sor.u32 256, 104
    %3365 = vbcast.lane.b32.xlu0 %v3358, %s3364
    %v3366 = vpop.permute.xlu0 %3365
    %s3368 = sor.u32 256, 112
    %3369 = vbcast.lane.b32.xlu0 %v3358, %s3368
    %v3370 = vpop.permute.xlu0 %3369
    %s3372 = sor.u32 256, 120
    %3373 = vbcast.lane.b32.xlu0 %v3358, %s3372
    %v3374 = vpop.permute.xlu0 %3373
    %v3375 = vlaneseq
    %v3376 = vshrl.u32 %v3375, 7
    %v3377 = vsub.s32 0, %v3376
    %v3378 = vrot.slane %v3348, %v3377
    %s3380 = sor.u32 256, 96
    %3381 = vbcast.lane.b32.xlu0 %v3378, %s3380
    %v3382 = vpop.permute.xlu0 %3381
    %s3384 = sor.u32 256, 104
    %3385 = vbcast.lane.b32.xlu0 %v3378, %s3384
    %v3386 = vpop.permute.xlu0 %3385
    %s3388 = sor.u32 256, 112
    %3389 = vbcast.lane.b32.xlu0 %v3378, %s3388
    %v3390 = vpop.permute.xlu0 %3389
    %s3392 = sor.u32 256, 120
    %3393 = vbcast.lane.b32.xlu0 %v3378, %s3392
    %v3394 = vpop.permute.xlu0 %3393
    %v3395 = vlaneseq
    %v3396 = vshrl.u32 %v3395, 7
    %v3397 = vsub.s32 0, %v3396
    %v3398 = vrot.slane %v3349, %v3397
    %s3400 = sor.u32 256, 96
    %3401 = vbcast.lane.b32.xlu0 %v3398, %s3400
    %v3402 = vpop.permute.xlu0 %3401
    %s3404 = sor.u32 256, 104
    %3405 = vbcast.lane.b32.xlu0 %v3398, %s3404
    %v3406 = vpop.permute.xlu0 %3405
    %s3408 = sor.u32 256, 112
    %3409 = vbcast.lane.b32.xlu0 %v3398, %s3408
    %v3410 = vpop.permute.xlu0 %3409
    %s3412 = sor.u32 256, 120
    %3413 = vbcast.lane.b32.xlu0 %v3398, %s3412
    %v3414 = vpop.permute.xlu0 %3413
    %v3415 = vlaneseq
    %v3416 = vshrl.u32 %v3415, 7
    %v3417 = vsub.s32 0, %v3416
    %v3418 = vrot.slane %v3350, %v3417
    %s3420 = sor.u32 256, 96
    %3421 = vbcast.lane.b32.xlu0 %v3418, %s3420
    %v3422 = vpop.permute.xlu0 %3421
    %s3424 = sor.u32 256, 104
    %3425 = vbcast.lane.b32.xlu0 %v3418, %s3424
    %v3426 = vpop.permute.xlu0 %3425
    %s3428 = sor.u32 256, 112
    %3429 = vbcast.lane.b32.xlu0 %v3418, %s3428
    %v3430 = vpop.permute.xlu0 %3429
    %s3432 = sor.u32 256, 120
    %3433 = vbcast.lane.b32.xlu0 %v3418, %s3432
    %v3434 = vpop.permute.xlu0 %3433
    %v3435 = vlaneseq
    %v3436 = vshrl.u32 %v3435, 7
    %v3437 = vsub.s32 0, %v3436
    %v3438 = vrot.slane %v3351, %v3437
    %s3440 = sor.u32 256, 96
    %3441 = vbcast.lane.b32.xlu0 %v3438, %s3440
    %v3442 = vpop.permute.xlu0 %3441
    %s3444 = sor.u32 256, 104
    %3445 = vbcast.lane.b32.xlu0 %v3438, %s3444
    %v3446 = vpop.permute.xlu0 %3445
    %s3448 = sor.u32 256, 112
    %3449 = vbcast.lane.b32.xlu0 %v3438, %s3448
    %v3450 = vpop.permute.xlu0 %3449
    %s3452 = sor.u32 256, 120
    %3453 = vbcast.lane.b32.xlu0 %v3438, %s3452
    %v3454 = vpop.permute.xlu0 %3453
    %v3455 = vlaneseq
    %v3456 = vshrl.u32 %v3455, 7
    %v3457 = vsub.s32 0, %v3456
    %v3458 = vrot.slane %v3352, %v3457
    %s3460 = sor.u32 256, 96
    %3461 = vbcast.lane.b32.xlu0 %v3458, %s3460
    %v3462 = vpop.permute.xlu0 %3461
    %s3464 = sor.u32 256, 104
    %3465 = vbcast.lane.b32.xlu0 %v3458, %s3464
    %v3466 = vpop.permute.xlu0 %3465
    %s3468 = sor.u32 256, 112
    %3469 = vbcast.lane.b32.xlu0 %v3458, %s3468
    %v3470 = vpop.permute.xlu0 %3469
    %s3472 = sor.u32 256, 120
    %3473 = vbcast.lane.b32.xlu0 %v3458, %s3472
    %v3474 = vpop.permute.xlu0 %3473
    %v3475 = vlaneseq
    %v3476 = vshrl.u32 %v3475, 7
    %v3477 = vsub.s32 0, %v3476
    %v3478 = vrot.slane %v3353, %v3477
    %s3480 = sor.u32 256, 96
    %3481 = vbcast.lane.b32.xlu0 %v3478, %s3480
    %v3482 = vpop.permute.xlu0 %3481
    %s3484 = sor.u32 256, 104
    %3485 = vbcast.lane.b32.xlu0 %v3478, %s3484
    %v3486 = vpop.permute.xlu0 %3485
    %s3488 = sor.u32 256, 112
    %3489 = vbcast.lane.b32.xlu0 %v3478, %s3488
    %v3490 = vpop.permute.xlu0 %3489
    %s3492 = sor.u32 256, 120
    %3493 = vbcast.lane.b32.xlu0 %v3478, %s3492
    %v3494 = vpop.permute.xlu0 %3493
    %v3495 = vlaneseq
    %v3496 = vshrl.u32 %v3495, 7
    %v3497 = vsub.s32 0, %v3496
    %v3498 = vrot.slane %v3354, %v3497
    %s3500 = sor.u32 256, 96
    %3501 = vbcast.lane.b32.xlu0 %v3498, %s3500
    %v3502 = vpop.permute.xlu0 %3501
    %s3504 = sor.u32 256, 104
    %3505 = vbcast.lane.b32.xlu0 %v3498, %s3504
    %v3506 = vpop.permute.xlu0 %3505
    %s3508 = sor.u32 256, 112
    %3509 = vbcast.lane.b32.xlu0 %v3498, %s3508
    %v3510 = vpop.permute.xlu0 %3509
    %s3512 = sor.u32 256, 120
    %3513 = vbcast.lane.b32.xlu0 %v3498, %s3512
    %v3514 = vpop.permute.xlu0 %3513
    %v3515 = vmul.f32 %v123, %v3362
    %v3516 = vmul.f32 %v124, %v3366
    %v3517 = vmul.f32 %v125, %v3370
    %v3518 = vmul.f32 %v126, %v3374
    %v3519 = vmul.f32 %v127, %v3382
    %v3520 = vmul.f32 %v128, %v3386
    %v3521 = vmul.f32 %v129, %v3390
    %v3522 = vmul.f32 %v130, %v3394
    %v3523 = vmul.f32 %v131, %v3402
    %v3524 = vmul.f32 %v132, %v3406
    %v3525 = vmul.f32 %v133, %v3410
    %v3526 = vmul.f32 %v134, %v3414
    %v3527 = vmul.f32 %v135, %v3422
    %v3528 = vmul.f32 %v136, %v3426
    %v3529 = vmul.f32 %v137, %v3430
    %v3530 = vmul.f32 %v138, %v3434
    %v3531 = vmul.f32 %v139, %v3442
    %v3532 = vmul.f32 %v140, %v3446
    %v3533 = vmul.f32 %v141, %v3450
    %v3534 = vmul.f32 %v142, %v3454
    %v3535 = vmul.f32 %v143, %v3462
    %v3536 = vmul.f32 %v144, %v3466
    %v3537 = vmul.f32 %v145, %v3470
    %v3538 = vmul.f32 %v146, %v3474
    %v3539 = vmul.f32 %v147, %v3482
    %v3540 = vmul.f32 %v148, %v3486
    %v3541 = vmul.f32 %v149, %v3490
    %v3542 = vmul.f32 %v150, %v3494
    %v3543 = vmul.f32 %v151, %v3502
    %v3544 = vmul.f32 %v152, %v3506
    %v3545 = vmul.f32 %v153, %v3510
    %v3546 = vmul.f32 %v154, %v3514
    %v3547 = vadd.f32 %v3515, %v3516
    %v3548 = vadd.f32 %v3547, %v3517
    %v3549 = vadd.f32 %v3548, %v3518
    %v3550 = vrot.slane %v3549, 4
    %v3551 = vadd.f32 %v3549, %v3550
    %v3552 = vrot.slane %v3551, 2
    %v3553 = vadd.f32 %v3551, %v3552
    %v3554 = vrot.slane %v3553, 1
    %v3555 = vadd.f32 %v3553, %v3554
    %v3556 = vadd.f32 %v3519, %v3520
    %v3557 = vadd.f32 %v3556, %v3521
    %v3558 = vadd.f32 %v3557, %v3522
    %v3559 = vrot.slane %v3558, 4
    %v3560 = vadd.f32 %v3558, %v3559
    %v3561 = vrot.slane %v3560, 2
    %v3562 = vadd.f32 %v3560, %v3561
    %v3563 = vrot.slane %v3562, 1
    %v3564 = vadd.f32 %v3562, %v3563
    %v3565 = vadd.f32 %v3523, %v3524
    %v3566 = vadd.f32 %v3565, %v3525
    %v3567 = vadd.f32 %v3566, %v3526
    %v3568 = vrot.slane %v3567, 4
    %v3569 = vadd.f32 %v3567, %v3568
    %v3570 = vrot.slane %v3569, 2
    %v3571 = vadd.f32 %v3569, %v3570
    %v3572 = vrot.slane %v3571, 1
    %v3573 = vadd.f32 %v3571, %v3572
    %v3574 = vadd.f32 %v3527, %v3528
    %v3575 = vadd.f32 %v3574, %v3529
    %v3576 = vadd.f32 %v3575, %v3530
    %v3577 = vrot.slane %v3576, 4
    %v3578 = vadd.f32 %v3576, %v3577
    %v3579 = vrot.slane %v3578, 2
    %v3580 = vadd.f32 %v3578, %v3579
    %v3581 = vrot.slane %v3580, 1
    %v3582 = vadd.f32 %v3580, %v3581
    %v3583 = vadd.f32 %v3531, %v3532
    %v3584 = vadd.f32 %v3583, %v3533
    %v3585 = vadd.f32 %v3584, %v3534
    %v3586 = vrot.slane %v3585, 4
    %v3587 = vadd.f32 %v3585, %v3586
    %v3588 = vrot.slane %v3587, 2
    %v3589 = vadd.f32 %v3587, %v3588
    %v3590 = vrot.slane %v3589, 1
    %v3591 = vadd.f32 %v3589, %v3590
    %v3592 = vadd.f32 %v3535, %v3536
    %v3593 = vadd.f32 %v3592, %v3537
    %v3594 = vadd.f32 %v3593, %v3538
    %v3595 = vrot.slane %v3594, 4
    %v3596 = vadd.f32 %v3594, %v3595
    %v3597 = vrot.slane %v3596, 2
    %v3598 = vadd.f32 %v3596, %v3597
    %v3599 = vrot.slane %v3598, 1
    %v3600 = vadd.f32 %v3598, %v3599
    %v3601 = vadd.f32 %v3539, %v3540
    %v3602 = vadd.f32 %v3601, %v3541
    %v3603 = vadd.f32 %v3602, %v3542
    %v3604 = vrot.slane %v3603, 4
    %v3605 = vadd.f32 %v3603, %v3604
    %v3606 = vrot.slane %v3605, 2
    %v3607 = vadd.f32 %v3605, %v3606
    %v3608 = vrot.slane %v3607, 1
    %v3609 = vadd.f32 %v3607, %v3608
    %v3610 = vadd.f32 %v3543, %v3544
    %v3611 = vadd.f32 %v3610, %v3545
    %v3612 = vadd.f32 %v3611, %v3546
    %v3613 = vrot.slane %v3612, 4
    %v3614 = vadd.f32 %v3612, %v3613
    %v3615 = vrot.slane %v3614, 2
    %v3616 = vadd.f32 %v3614, %v3615
    %v3617 = vrot.slane %v3616, 1
    %v3618 = vadd.f32 %v3616, %v3617
    %v3620 = vrot.slane %v122, 1
    %v3621 = vrot.slane %v122, 2
    %v3622 = vrot.slane %v122, 3
    %v3623 = vrot.slane %v122, 4
    %v3624 = vrot.slane %v122, 5
    %v3625 = vrot.slane %v122, 6
    %v3626 = vrot.slane %v122, 7
    %v3635 = vadd.f32 %v3555, %v122
    %v3636 = vadd.f32 %v3564, %v3620
    %v3637 = vadd.f32 %v3573, %v3621
    %v3638 = vadd.f32 %v3582, %v3622
    %v3639 = vadd.f32 %v3591, %v3623
    %v3640 = vadd.f32 %v3600, %v3624
    %v3641 = vadd.f32 %v3609, %v3625
    %v3642 = vadd.f32 %v3618, %v3626
    %v3643 = vxor.u32 %v3635, 2147483648
    %v3644 = vxor.u32 %v3636, 2147483648
    %v3645 = vxor.u32 %v3637, 2147483648
    %v3646 = vxor.u32 %v3638, 2147483648
    %v3647 = vxor.u32 %v3639, 2147483648
    %v3648 = vxor.u32 %v3640, 2147483648
    %v3649 = vxor.u32 %v3641, 2147483648
    %v3650 = vxor.u32 %v3642, 2147483648
    %v3651 = vmul.f32 %v3643, 1.442695
    %v3652 = vpow.pop %v3651
    %v3653 = vmul.f32 %v3644, 1.442695
    %v3654 = vpow.pop %v3653
    %v3655 = vmul.f32 %v3645, 1.442695
    %v3656 = vpow.pop %v3655
    %v3657 = vmul.f32 %v3646, 1.442695
    %v3658 = vpow.pop %v3657
    %v3659 = vmul.f32 %v3647, 1.442695
    %v3660 = vpow.pop %v3659
    %v3661 = vmul.f32 %v3648, 1.442695
    %v3662 = vpow.pop %v3661
    %v3663 = vmul.f32 %v3649, 1.442695
    %v3664 = vpow.pop %v3663
    %v3665 = vmul.f32 %v3650, 1.442695
    %v3666 = vpow.pop %v3665
    %v3667 = vadd.f32 %v3652, 1.0
    %v3668 = vadd.f32 %v3654, 1.0
    %v3669 = vadd.f32 %v3656, 1.0
    %v3670 = vadd.f32 %v3658, 1.0
    %v3671 = vadd.f32 %v3660, 1.0
    %v3672 = vadd.f32 %v3662, 1.0
    %v3673 = vadd.f32 %v3664, 1.0
    %v3674 = vadd.f32 %v3666, 1.0
    %v3675 = vrcp.pop %v3667
    %v3676 = vmul.f32 1.0, %v3675
    %v3677 = vrcp.pop %v3668
    %v3678 = vmul.f32 1.0, %v3677
    %v3679 = vrcp.pop %v3669
    %v3680 = vmul.f32 1.0, %v3679
    %v3681 = vrcp.pop %v3670
    %v3682 = vmul.f32 1.0, %v3681
    %v3683 = vrcp.pop %v3671
    %v3684 = vmul.f32 1.0, %v3683
    %v3685 = vrcp.pop %v3672
    %v3686 = vmul.f32 1.0, %v3685
    %v3687 = vrcp.pop %v3673
    %v3688 = vmul.f32 1.0, %v3687
    %v3689 = vrcp.pop %v3674
    %v3690 = vmul.f32 1.0, %v3689
    %v3691 = vtanh.pop %v3635
    %v3692 = vtanh.pop %v3636
    %v3693 = vtanh.pop %v3637
    %v3694 = vtanh.pop %v3638
    %v3695 = vtanh.pop %v3639
    %v3696 = vtanh.pop %v3640
    %v3697 = vtanh.pop %v3641
    %v3698 = vtanh.pop %v3642
    %v3699 = vmul.f32 %v3676, %v3299
    %v3700 = vmul.f32 %v3678, %v3300
    %v3701 = vmul.f32 %v3680, %v3301
    %v3702 = vmul.f32 %v3682, %v3302
    %v3703 = vmul.f32 %v3684, %v3303
    %v3704 = vmul.f32 %v3686, %v3304
    %v3705 = vmul.f32 %v3688, %v3305
    %v3706 = vmul.f32 %v3690, %v3306
    %3715 = vrot.lane.b32.xlu0 %v3691, 64
    %v3716 = vpop.permute.xlu0 %3715
    %3717 = vrot.lane.b32.xlu0 %v3692, 64
    %v3718 = vpop.permute.xlu0 %3717
    %3719 = vrot.lane.b32.xlu0 %v3693, 64
    %v3720 = vpop.permute.xlu0 %3719
    %3721 = vrot.lane.b32.xlu0 %v3694, 64
    %v3722 = vpop.permute.xlu0 %3721
    %3723 = vrot.lane.b32.xlu0 %v3695, 64
    %v3724 = vpop.permute.xlu0 %3723
    %3725 = vrot.lane.b32.xlu0 %v3696, 64
    %v3726 = vpop.permute.xlu0 %3725
    %3727 = vrot.lane.b32.xlu0 %v3697, 64
    %v3728 = vpop.permute.xlu0 %3727
    %3729 = vrot.lane.b32.xlu0 %v3698, 64
    %v3730 = vpop.permute.xlu0 %3729
    %v3739 = vmul.f32 %v3676, %v3716
    %v3740 = vmul.f32 %v3678, %v3718
    %v3741 = vmul.f32 %v3680, %v3720
    %v3742 = vmul.f32 %v3682, %v3722
    %v3743 = vmul.f32 %v3684, %v3724
    %v3744 = vmul.f32 %v3686, %v3726
    %v3745 = vmul.f32 %v3688, %v3728
    %v3746 = vmul.f32 %v3690, %v3730
    %3755 = vrot.lane.b32.xlu0 %v3739, 32
    %v3756 = vpop.permute.xlu0 %3755
    %3757 = vrot.lane.b32.xlu0 %v3740, 32
    %v3758 = vpop.permute.xlu0 %3757
    %3759 = vrot.lane.b32.xlu0 %v3741, 32
    %v3760 = vpop.permute.xlu0 %3759
    %3761 = vrot.lane.b32.xlu0 %v3742, 32
    %v3762 = vpop.permute.xlu0 %3761
    %3763 = vrot.lane.b32.xlu0 %v3743, 32
    %v3764 = vpop.permute.xlu0 %3763
    %3765 = vrot.lane.b32.xlu0 %v3744, 32
    %v3766 = vpop.permute.xlu0 %3765
    %3767 = vrot.lane.b32.xlu0 %v3745, 32
    %v3768 = vpop.permute.xlu0 %3767
    %3769 = vrot.lane.b32.xlu0 %v3746, 32
    %v3770 = vpop.permute.xlu0 %3769
    %v3779 = vadd.f32 %v3699, %v3756
    %v3780 = vadd.f32 %v3700, %v3758
    %v3781 = vadd.f32 %v3701, %v3760
    %v3782 = vadd.f32 %v3702, %v3762
    %v3783 = vadd.f32 %v3703, %v3764
    %v3784 = vadd.f32 %v3704, %v3766
    %v3785 = vadd.f32 %v3705, %v3768
    %v3786 = vadd.f32 %v3706, %v3770
    %v3787 = vtanh.pop %v3779
    %v3788 = vtanh.pop %v3780
    %v3789 = vtanh.pop %v3781
    %v3790 = vtanh.pop %v3782
    %v3791 = vtanh.pop %v3783
    %v3792 = vtanh.pop %v3784
    %v3793 = vtanh.pop %v3785
    %v3794 = vtanh.pop %v3786
    %3803 = vrot.lane.b32.xlu0 %v3787, 64
    %v3804 = vpop.permute.xlu0 %3803
    %3805 = vrot.lane.b32.xlu0 %v3788, 64
    %v3806 = vpop.permute.xlu0 %3805
    %3807 = vrot.lane.b32.xlu0 %v3789, 64
    %v3808 = vpop.permute.xlu0 %3807
    %3809 = vrot.lane.b32.xlu0 %v3790, 64
    %v3810 = vpop.permute.xlu0 %3809
    %3811 = vrot.lane.b32.xlu0 %v3791, 64
    %v3812 = vpop.permute.xlu0 %3811
    %3813 = vrot.lane.b32.xlu0 %v3792, 64
    %v3814 = vpop.permute.xlu0 %3813
    %3815 = vrot.lane.b32.xlu0 %v3793, 64
    %v3816 = vpop.permute.xlu0 %3815
    %3817 = vrot.lane.b32.xlu0 %v3794, 64
    %v3818 = vpop.permute.xlu0 %3817
    %v3827 = vmul.f32 %v3676, %v3804
    %v3828 = vmul.f32 %v3678, %v3806
    %v3829 = vmul.f32 %v3680, %v3808
    %v3830 = vmul.f32 %v3682, %v3810
    %v3831 = vmul.f32 %v3684, %v3812
    %v3832 = vmul.f32 %v3686, %v3814
    %v3833 = vmul.f32 %v3688, %v3816
    %v3834 = vmul.f32 %v3690, %v3818
    %v3843 = vrot.slane %v468, 7
    %vm3844 = vcmask 1041409
    %v3845 = vsel %vm3844, %v3843, %v467
    %v3846 = vrot.slane %v469, 6
    %vm3847 = vcmask 1042434
    %v3848 = vsel %vm3847, %v3846, %v3845
    %v3849 = vrot.slane %v470, 5
    %vm3850 = vcmask 1043459
    %v3851 = vsel %vm3850, %v3849, %v3848
    %v3852 = vrot.slane %v471, 4
    %vm3853 = vcmask 1044484
    %v3854 = vsel %vm3853, %v3852, %v3851
    %v3855 = vrot.slane %v472, 3
    %vm3856 = vcmask 1045509
    %v3857 = vsel %vm3856, %v3855, %v3854
    %v3858 = vrot.slane %v473, 2
    %vm3859 = vcmask 1046534
    %v3860 = vsel %vm3859, %v3858, %v3857
    %v3861 = vrot.slane %v474, 1
    %vm3862 = vcmask 1047559
    %v3863 = vsel %vm3862, %v3861, %v3860
    %3864 = vrot.lane.b32.xlu0 %v3863, 32
    %v3865 = vpop.permute.xlu0 %3864
    %v3875 = vrot.slane %v948, 7
    %v3876 = vsel %vm3844, %v3875, %v947
    %v3877 = vrot.slane %v949, 6
    %v3878 = vsel %vm3847, %v3877, %v3876
    %v3879 = vrot.slane %v950, 5
    %v3880 = vsel %vm3850, %v3879, %v3878
    %v3881 = vrot.slane %v951, 4
    %v3882 = vsel %vm3853, %v3881, %v3880
    %v3883 = vrot.slane %v952, 3
    %v3884 = vsel %vm3856, %v3883, %v3882
    %v3885 = vrot.slane %v953, 2
    %v3886 = vsel %vm3859, %v3885, %v3884
    %v3887 = vrot.slane %v954, 1
    %v3888 = vsel %vm3862, %v3887, %v3886
    %3889 = vrot.lane.b32.xlu0 %v3888, 64
    %v3890 = vpop.permute.xlu0 %3889
    %v3900 = vrot.slane %v1428, 7
    %v3901 = vsel %vm3844, %v3900, %v1427
    %v3902 = vrot.slane %v1429, 6
    %v3903 = vsel %vm3847, %v3902, %v3901
    %v3904 = vrot.slane %v1430, 5
    %v3905 = vsel %vm3850, %v3904, %v3903
    %v3906 = vrot.slane %v1431, 4
    %v3907 = vsel %vm3853, %v3906, %v3905
    %v3908 = vrot.slane %v1432, 3
    %v3909 = vsel %vm3856, %v3908, %v3907
    %v3910 = vrot.slane %v1433, 2
    %v3911 = vsel %vm3859, %v3910, %v3909
    %v3912 = vrot.slane %v1434, 1
    %v3913 = vsel %vm3862, %v3912, %v3911
    %3914 = vrot.lane.b32.xlu0 %v3913, 96
    %v3915 = vpop.permute.xlu0 %3914
    %v3925 = vrot.slane %v1908, 7
    %v3926 = vsel %vm3844, %v3925, %v1907
    %v3927 = vrot.slane %v1909, 6
    %v3928 = vsel %vm3847, %v3927, %v3926
    %v3929 = vrot.slane %v1910, 5
    %v3930 = vsel %vm3850, %v3929, %v3928
    %v3931 = vrot.slane %v1911, 4
    %v3932 = vsel %vm3853, %v3931, %v3930
    %v3933 = vrot.slane %v1912, 3
    %v3934 = vsel %vm3856, %v3933, %v3932
    %v3935 = vrot.slane %v1913, 2
    %v3936 = vsel %vm3859, %v3935, %v3934
    %v3937 = vrot.slane %v1914, 1
    %v3938 = vsel %vm3862, %v3937, %v3936
    %v3948 = vrot.slane %v2388, 7
    %v3949 = vsel %vm3844, %v3948, %v2387
    %v3950 = vrot.slane %v2389, 6
    %v3951 = vsel %vm3847, %v3950, %v3949
    %v3952 = vrot.slane %v2390, 5
    %v3953 = vsel %vm3850, %v3952, %v3951
    %v3954 = vrot.slane %v2391, 4
    %v3955 = vsel %vm3853, %v3954, %v3953
    %v3956 = vrot.slane %v2392, 3
    %v3957 = vsel %vm3856, %v3956, %v3955
    %v3958 = vrot.slane %v2393, 2
    %v3959 = vsel %vm3859, %v3958, %v3957
    %v3960 = vrot.slane %v2394, 1
    %v3961 = vsel %vm3862, %v3960, %v3959
    %3962 = vrot.lane.b32.xlu0 %v3961, 32
    %v3963 = vpop.permute.xlu0 %3962
    %v3973 = vrot.slane %v2868, 7
    %v3974 = vsel %vm3844, %v3973, %v2867
    %v3975 = vrot.slane %v2869, 6
    %v3976 = vsel %vm3847, %v3975, %v3974
    %v3977 = vrot.slane %v2870, 5
    %v3978 = vsel %vm3850, %v3977, %v3976
    %v3979 = vrot.slane %v2871, 4
    %v3980 = vsel %vm3853, %v3979, %v3978
    %v3981 = vrot.slane %v2872, 3
    %v3982 = vsel %vm3856, %v3981, %v3980
    %v3983 = vrot.slane %v2873, 2
    %v3984 = vsel %vm3859, %v3983, %v3982
    %v3985 = vrot.slane %v2874, 1
    %v3986 = vsel %vm3862, %v3985, %v3984
    %3987 = vrot.lane.b32.xlu0 %v3986, 64
    %v3988 = vpop.permute.xlu0 %3987
    %v3998 = vrot.slane %v3348, 7
    %v3999 = vsel %vm3844, %v3998, %v3347
    %v4000 = vrot.slane %v3349, 6
    %v4001 = vsel %vm3847, %v4000, %v3999
    %v4002 = vrot.slane %v3350, 5
    %v4003 = vsel %vm3850, %v4002, %v4001
    %v4004 = vrot.slane %v3351, 4
    %v4005 = vsel %vm3853, %v4004, %v4003
    %v4006 = vrot.slane %v3352, 3
    %v4007 = vsel %vm3856, %v4006, %v4005
    %v4008 = vrot.slane %v3353, 2
    %v4009 = vsel %vm3859, %v4008, %v4007
    %v4010 = vrot.slane %v3354, 1
    %v4011 = vsel %vm3862, %v4010, %v4009
    %4012 = vrot.lane.b32.xlu0 %v4011, 96
    %v4013 = vpop.permute.xlu0 %4012
    %v4023 = vrot.slane %v3828, 7
    %v4024 = vsel %vm3844, %v4023, %v3827
    %v4025 = vrot.slane %v3829, 6
    %v4026 = vsel %vm3847, %v4025, %v4024
    %v4027 = vrot.slane %v3830, 5
    %v4028 = vsel %vm3850, %v4027, %v4026
    %v4029 = vrot.slane %v3831, 4
    %v4030 = vsel %vm3853, %v4029, %v4028
    %v4031 = vrot.slane %v3832, 3
    %v4032 = vsel %vm3856, %v4031, %v4030
    %v4033 = vrot.slane %v3833, 2
    %v4034 = vsel %vm3859, %v4033, %v4032
    %v4035 = vrot.slane %v3834, 1
    %v4036 = vsel %vm3862, %v4035, %v4034
    %vm4038 = vcmask 261120
    %v4039 = vsel %vm4038, %v3865, %v3890
    %vm4040 = vcmask 523264
    %v4041 = vsel %vm4040, %v4039, %v3915
    %vm4042 = vcmask 785408
    %v4043 = vsel %vm4042, %v4041, %v3938
    %v4044 = vsel %vm4038, %v3963, %v3988
    %v4045 = vsel %vm4040, %v4044, %v4013
    %v4046 = vsel %vm4042, %v4045, %v4036
    %v4047 = vld [vmem:[#allocation6] sm:$0xff]
    %vm4048 = vcmask 64512
    %v4050 = vsel %vm4048, %v4047, 0
    %4052 = vmatprep.subr.mxu0 0.0
    %4053 = vmatpush1.msra.mxu0 0.0
    %4054 = vmatprep.subr.mxu0 0.0
    %4055 = vmatpush1.msra.mxu0 0.0
    %4056 = vmatprep.subr.mxu0 0.0
    %4057 = vmatpush1.msra.mxu0 0.0
    %4058 = vmatprep.subr.mxu0 0.0
    %4059 = vmatpush1.msra.mxu0 0.0
    %4060 = vmatprep.subr.mxu0 0.0
    %4061 = vmatpush1.msra.mxu0 0.0
    %4062 = vmatprep.subr.mxu0 0.0
    %4063 = vmatpush1.msra.mxu0 0.0
    %4064 = vmatprep.subr.mxu0 0.0
    %4065 = vmatpush1.msra.mxu0 0.0
    %4066 = vmatprep.subr.mxu0 0.0
    %4067 = vmatpush1.msra.mxu0 0.0
    %4068 = vmatprep.subr.mxu0 0.0
    %4069 = vmatpush1.msra.mxu0 0.0
    %4070 = vmatprep.subr.mxu0 0.0
    %4071 = vmatpush1.msra.mxu0 0.0
    %4072 = vmatprep.subr.mxu0 0.0
    %4073 = vmatpush1.msra.mxu0 0.0
    %4074 = vmatprep.subr.mxu0 0.0
    %4075 = vmatpush1.msra.mxu0 0.0
    %4076 = vmatprep.subr.mxu0 0.0
    %4077 = vmatpush1.msra.mxu0 0.0
    %4078 = vmatprep.subr.mxu0 0.0
    %4079 = vmatpush1.msra.mxu0 0.0
    %4080 = vmatprep.subr.mxu0 0.0
    %4081 = vmatpush1.msra.mxu0 0.0
    %4082 = vmatprep.subr.mxu0 %v4046
    %4083 = vmatpush1.msra.mxu0 %v4043
    %4084 = vmatprep.subr.mxu0 0.0
    %4085 = vmatpush2.msra.mxu0 0.0
    %4086 = vmatprep.subr.mxu0 0.0
    %4087 = vmatpush2.msra.mxu0 0.0
    %4088 = vmatprep.subr.mxu0 0.0
    %4089 = vmatpush2.msra.mxu0 0.0
    %4090 = vmatprep.subr.mxu0 0.0
    %4091 = vmatpush2.msra.mxu0 0.0
    %4092 = vmatprep.subr.mxu0 0.0
    %4093 = vmatpush2.msra.mxu0 0.0
    %4094 = vmatprep.subr.mxu0 0.0
    %4095 = vmatpush2.msra.mxu0 0.0
    %4096 = vmatprep.subr.mxu0 0.0
    %4097 = vmatpush2.msra.mxu0 0.0
    %4098 = vmatprep.subr.mxu0 0.0
    %4099 = vmatpush2.msra.mxu0 0.0
    %4100 = vmatprep.subr.mxu0 0.0
    %4101 = vmatpush2.msra.mxu0 0.0
    %4102 = vmatprep.subr.mxu0 0.0
    %4103 = vmatpush2.msra.mxu0 0.0
    %4104 = vmatprep.subr.mxu0 0.0
    %4105 = vmatpush2.msra.mxu0 0.0
    %4106 = vmatprep.subr.mxu0 0.0
    %4107 = vmatpush2.msra.mxu0 0.0
    %4108 = vmatprep.subr.mxu0 0.0
    %4109 = vmatpush2.msra.mxu0 0.0
    %4110 = vmatprep.subr.mxu0 0.0
    %4111 = vmatpush2.msra.mxu0 0.0
    %4112 = vmatprep.subr.mxu0 0.0
    %4113 = vmatpush2.msra.mxu0 0.0
    %4114 = vmatprep.subr.mxu0 0.0
    %4115 = vmatpush2.msra.mxu0 0.0
    %4116 = vmatprep.mubr.f32.mxu0 0.0
    %4117 = vmatmul.mubr.f32.gmra.mxu0 %v4050
    %v4118 = vpop.f32.mrf.mxu0
    %v4119 = vadd.f32 0.0, %v4118
    %v4120 = vpop.f32.mrf.mxu0
    %v4121 = vadd.f32 0.0, %v4120
    %4122 = vdwg.mxu0
    %v4123 = vld [vmem:[%s6] ss:$2 sm:$0x3]
    %v4125 = vlaneseq
    %v4126 = vshrl.u32 %v4125, 7
    %v4127 = vsub.s32 0, %v4126
    %v4128 = vrot.slane %v4123, %v4127
    %v4129 = vlaneseq
    %v4130 = vshrl.u32 %v4129, 7
    %v4131 = vsub.s32 1, %v4130
    %v4132 = vrot.slane %v4123, %v4131
    %v4135 = vld [vmem:[#allocation8] sm:$0xff]
    %v4136 = vld [vmem:[#allocation8 + $0x8] sm:$0xff]
    %v4137 = vld [vmem:[#allocation8 + $0x10] sm:$0xff]
    %v4138 = vld [vmem:[#allocation8 + $0x18] sm:$0xff]
    %v4139 = vld [vmem:[#allocation8 + $0x20] sm:$0xff]
    %v4140 = vld [vmem:[#allocation8 + $0x28] sm:$0xff]
    %v4141 = vld [vmem:[#allocation8 + $0x30] sm:$0xff]
    %v4142 = vld [vmem:[#allocation8 + $0x38] sm:$0xff]
    %v4143 = vld [vmem:[#allocation8 + $0x40] sm:$0xff]
    %v4144 = vld [vmem:[#allocation8 + $0x48] sm:$0xff]
    %v4145 = vld [vmem:[#allocation8 + $0x50] sm:$0xff]
    %v4146 = vld [vmem:[#allocation8 + $0x58] sm:$0xff]
    %v4147 = vld [vmem:[#allocation8 + $0x60] sm:$0xff]
    %v4148 = vld [vmem:[#allocation8 + $0x68] sm:$0xff]
    %v4149 = vld [vmem:[#allocation8 + $0x70] sm:$0xff]
    %v4150 = vld [vmem:[#allocation8 + $0x78] sm:$0xff]
    %v4151 = vld [vmem:[#allocation8 + $0x80] sm:$0xff]
    %v4152 = vld [vmem:[#allocation8 + $0x88] sm:$0xff]
    %v4153 = vld [vmem:[#allocation8 + $0x90] sm:$0xff]
    %v4154 = vld [vmem:[#allocation8 + $0x98] sm:$0xff]
    %v4155 = vld [vmem:[#allocation8 + $0xa0] sm:$0xff]
    %v4156 = vld [vmem:[#allocation8 + $0xa8] sm:$0xff]
    %v4157 = vld [vmem:[#allocation8 + $0xb0] sm:$0xff]
    %v4158 = vld [vmem:[#allocation8 + $0xb8] sm:$0xff]
    %v4159 = vld [vmem:[#allocation8 + $0xc0] sm:$0xff]
    %v4160 = vld [vmem:[#allocation8 + $0xc8] sm:$0xff]
    %v4161 = vld [vmem:[#allocation8 + $0xd0] sm:$0xff]
    %v4162 = vld [vmem:[#allocation8 + $0xd8] sm:$0xff]
    %v4163 = vld [vmem:[#allocation8 + $0xe0] sm:$0xff]
    %v4164 = vld [vmem:[#allocation8 + $0xe8] sm:$0xff]
    %v4165 = vld [vmem:[#allocation8 + $0xf0] sm:$0xff]
    %v4166 = vld [vmem:[#allocation8 + $0xf8] sm:$0xff]
    %v4167 = vld [vmem:[#allocation8 + $0x100] sm:$0xff]
    %v4168 = vld [vmem:[#allocation8 + $0x108] sm:$0xff]
    %v4169 = vld [vmem:[#allocation8 + $0x110] sm:$0xff]
    %v4170 = vld [vmem:[#allocation8 + $0x118] sm:$0xff]
    %v4171 = vld [vmem:[#allocation8 + $0x120] sm:$0xff]
    %v4172 = vld [vmem:[#allocation8 + $0x128] sm:$0xff]
    %v4173 = vld [vmem:[#allocation8 + $0x130] sm:$0xff]
    %v4174 = vld [vmem:[#allocation8 + $0x138] sm:$0xff]
    %v4175 = vld [vmem:[#allocation8 + $0x140] sm:$0xff]
    %v4176 = vld [vmem:[#allocation8 + $0x148] sm:$0xff]
    %v4177 = vld [vmem:[#allocation8 + $0x150] sm:$0xff]
    %v4178 = vld [vmem:[#allocation8 + $0x158] sm:$0xff]
    %v4179 = vld [vmem:[#allocation8 + $0x160] sm:$0xff]
    %v4180 = vld [vmem:[#allocation8 + $0x168] sm:$0xff]
    %v4181 = vld [vmem:[#allocation8 + $0x170] sm:$0xff]
    %v4182 = vld [vmem:[#allocation8 + $0x178] sm:$0xff]
    %v4183 = vld [vmem:[#allocation8 + $0x180] sm:$0xff]
    %v4184 = vld [vmem:[#allocation8 + $0x188] sm:$0xff]
    %v4185 = vld [vmem:[#allocation8 + $0x190] sm:$0xff]
    %v4186 = vld [vmem:[#allocation8 + $0x198] sm:$0xff]
    %v4187 = vld [vmem:[#allocation8 + $0x1a0] sm:$0xff]
    %v4188 = vld [vmem:[#allocation8 + $0x1a8] sm:$0xff]
    %v4189 = vld [vmem:[#allocation8 + $0x1b0] sm:$0xff]
    %v4190 = vld [vmem:[#allocation8 + $0x1b8] sm:$0xff]
    %v4191 = vld [vmem:[#allocation8 + $0x1c0] sm:$0xff]
    %v4192 = vld [vmem:[#allocation8 + $0x1c8] sm:$0xff]
    %v4193 = vld [vmem:[#allocation8 + $0x1d0] sm:$0xff]
    %v4194 = vld [vmem:[#allocation8 + $0x1d8] sm:$0xff]
    %v4195 = vld [vmem:[#allocation8 + $0x1e0] sm:$0xff]
    %v4196 = vld [vmem:[#allocation8 + $0x1e8] sm:$0xff]
    %v4197 = vld [vmem:[#allocation8 + $0x1f0] sm:$0xff]
    %v4198 = vld [vmem:[#allocation8 + $0x1f8] sm:$0xff]
    %4199 = vmatprep.subr.mxu0 %v4166
    %4200 = vmatpush1.msra.mxu0 %v4165
    %4201 = vmatprep.subr.mxu0 %v4164
    %4202 = vmatpush1.msra.mxu0 %v4163
    %4203 = vmatprep.subr.mxu0 %v4162
    %4204 = vmatpush1.msra.mxu0 %v4161
    %4205 = vmatprep.subr.mxu0 %v4160
    %4206 = vmatpush1.msra.mxu0 %v4159
    %4207 = vmatprep.subr.mxu0 %v4158
    %4208 = vmatpush1.msra.mxu0 %v4157
    %4209 = vmatprep.subr.mxu0 %v4156
    %4210 = vmatpush1.msra.mxu0 %v4155
    %4211 = vmatprep.subr.mxu0 %v4154
    %4212 = vmatpush1.msra.mxu0 %v4153
    %4213 = vmatprep.subr.mxu0 %v4152
    %4214 = vmatpush1.msra.mxu0 %v4151
    %4215 = vmatprep.subr.mxu0 %v4150
    %4216 = vmatpush1.msra.mxu0 %v4149
    %4217 = vmatprep.subr.mxu0 %v4148
    %4218 = vmatpush1.msra.mxu0 %v4147
    %4219 = vmatprep.subr.mxu0 %v4146
    %4220 = vmatpush1.msra.mxu0 %v4145
    %4221 = vmatprep.subr.mxu0 %v4144
    %4222 = vmatpush1.msra.mxu0 %v4143
    %4223 = vmatprep.subr.mxu0 %v4142
    %4224 = vmatpush1.msra.mxu0 %v4141
    %4225 = vmatprep.subr.mxu0 %v4140
    %4226 = vmatpush1.msra.mxu0 %v4139
    %4227 = vmatprep.subr.mxu0 %v4138
    %4228 = vmatpush1.msra.mxu0 %v4137
    %4229 = vmatprep.subr.mxu0 %v4136
    %4230 = vmatpush1.msra.mxu0 %v4135
    %4231 = vmatprep.subr.mxu0 %v4198
    %4232 = vmatpush2.msra.mxu0 %v4197
    %4233 = vmatprep.subr.mxu0 %v4196
    %4234 = vmatpush2.msra.mxu0 %v4195
    %4235 = vmatprep.subr.mxu0 %v4194
    %4236 = vmatpush2.msra.mxu0 %v4193
    %4237 = vmatprep.subr.mxu0 %v4192
    %4238 = vmatpush2.msra.mxu0 %v4191
    %4239 = vmatprep.subr.mxu0 %v4190
    %4240 = vmatpush2.msra.mxu0 %v4189
    %4241 = vmatprep.subr.mxu0 %v4188
    %4242 = vmatpush2.msra.mxu0 %v4187
    %4243 = vmatprep.subr.mxu0 %v4186
    %4244 = vmatpush2.msra.mxu0 %v4185
    %4245 = vmatprep.subr.mxu0 %v4184
    %4246 = vmatpush2.msra.mxu0 %v4183
    %4247 = vmatprep.subr.mxu0 %v4182
    %4248 = vmatpush2.msra.mxu0 %v4181
    %4249 = vmatprep.subr.mxu0 %v4180
    %4250 = vmatpush2.msra.mxu0 %v4179
    %4251 = vmatprep.subr.mxu0 %v4178
    %4252 = vmatpush2.msra.mxu0 %v4177
    %4253 = vmatprep.subr.mxu0 %v4176
    %4254 = vmatpush2.msra.mxu0 %v4175
    %4255 = vmatprep.subr.mxu0 %v4174
    %4256 = vmatpush2.msra.mxu0 %v4173
    %4257 = vmatprep.subr.mxu0 %v4172
    %4258 = vmatpush2.msra.mxu0 %v4171
    %4259 = vmatprep.subr.mxu0 %v4170
    %4260 = vmatpush2.msra.mxu0 %v4169
    %4261 = vmatprep.subr.mxu0 %v4168
    %4262 = vmatpush2.msra.mxu0 %v4167
    %4263 = vmatprep.mubr.f32.mxu0 %v4121
    %4264 = vmatmul.mubr.f32.gmra.mxu0 %v4119
    %v4265 = vpop.f32.mrf.mxu0
    %v4266 = vadd.f32 %v4128, %v4265
    %v4267 = vpop.f32.mrf.mxu0
    %v4268 = vadd.f32 %v4132, %v4267
    %4269 = vdwg.mxu0
    %v4270 = vmax.f32 %v4266, 0.0
    %v4271 = vmax.f32 %v4268, 0.0
    %4272 = vmatprep.subr.mxu0 0.0
    %4273 = vmatpush1.msra.mxu0 0.0
    %4274 = vmatprep.subr.mxu0 0.0
    %4275 = vmatpush1.msra.mxu0 0.0
    %4276 = vmatprep.subr.mxu0 0.0
    %4277 = vmatpush1.msra.mxu0 0.0
    %4278 = vmatprep.subr.mxu0 0.0
    %4279 = vmatpush1.msra.mxu0 0.0
    %4280 = vmatprep.subr.mxu0 0.0
    %4281 = vmatpush1.msra.mxu0 0.0
    %4282 = vmatprep.subr.mxu0 0.0
    %4283 = vmatpush1.msra.mxu0 0.0
    %4284 = vmatprep.subr.mxu0 0.0
    %4285 = vmatpush1.msra.mxu0 0.0
    %4286 = vmatprep.subr.mxu0 0.0
    %4287 = vmatpush1.msra.mxu0 0.0
    %4288 = vmatprep.subr.mxu0 0.0
    %4289 = vmatpush1.msra.mxu0 0.0
    %4290 = vmatprep.subr.mxu0 0.0
    %4291 = vmatpush1.msra.mxu0 0.0
    %4292 = vmatprep.subr.mxu0 0.0
    %4293 = vmatpush1.msra.mxu0 0.0
    %4294 = vmatprep.subr.mxu0 0.0
    %4295 = vmatpush1.msra.mxu0 0.0
    %4296 = vmatprep.subr.mxu0 0.0
    %4297 = vmatpush1.msra.mxu0 0.0
    %4298 = vmatprep.subr.mxu0 0.0
    %4299 = vmatpush1.msra.mxu0 0.0
    %4300 = vmatprep.subr.mxu0 0.0
    %4301 = vmatpush1.msra.mxu0 0.0
    %4302 = vmatprep.subr.mxu0 %v4271
    %4303 = vmatpush1.msra.mxu0 %v4270
    %4304 = vmatprep.subr.mxu0 0.0
    %4305 = vmatpush2.msra.mxu0 0.0
    %4306 = vmatprep.subr.mxu0 0.0
    %4307 = vmatpush2.msra.mxu0 0.0
    %4308 = vmatprep.subr.mxu0 0.0
    %4309 = vmatpush2.msra.mxu0 0.0
    %4310 = vmatprep.subr.mxu0 0.0
    %4311 = vmatpush2.msra.mxu0 0.0
    %4312 = vmatprep.subr.mxu0 0.0
    %4313 = vmatpush2.msra.mxu0 0.0
    %4314 = vmatprep.subr.mxu0 0.0
    %4315 = vmatpush2.msra.mxu0 0.0
    %4316 = vmatprep.subr.mxu0 0.0
    %4317 = vmatpush2.msra.mxu0 0.0
    %4318 = vmatprep.subr.mxu0 0.0
    %4319 = vmatpush2.msra.mxu0 0.0
    %4320 = vmatprep.subr.mxu0 0.0
    %4321 = vmatpush2.msra.mxu0 0.0
    %4322 = vmatprep.subr.mxu0 0.0
    %4323 = vmatpush2.msra.mxu0 0.0
    %4324 = vmatprep.subr.mxu0 0.0
    %4325 = vmatpush2.msra.mxu0 0.0
    %4326 = vmatprep.subr.mxu0 0.0
    %4327 = vmatpush2.msra.mxu0 0.0
    %4328 = vmatprep.subr.mxu0 0.0
    %4329 = vmatpush2.msra.mxu0 0.0
    %4330 = vmatprep.subr.mxu0 0.0
    %4331 = vmatpush2.msra.mxu0 0.0
    %4332 = vmatprep.subr.mxu0 0.0
    %4333 = vmatpush2.msra.mxu0 0.0
    %4334 = vmatprep.subr.mxu0 0.0
    %4335 = vmatpush2.msra.mxu0 0.0
    %4336 = vmatprep.mubr.f32.mxu0 0.0
    %4337 = vmatmul.mubr.f32.gmra.mxu0 %v4050
    %v4338 = vpop.f32.mrf.mxu0
    %v4339 = vadd.f32 0.0, %v4338
    %v4340 = vpop.f32.mrf.mxu0
    %v4341 = vadd.f32 0.0, %v4340
    %4342 = vdwg.mxu0
    %s4343 = scalar_lea.vmem %s6, 1
    %v4344 = vld [vmem:[%s4343] ss:$2 sm:$0x3]
    %v4346 = vlaneseq
    %v4347 = vshrl.u32 %v4346, 7
    %v4348 = vsub.s32 0, %v4347
    %v4349 = vrot.slane %v4344, %v4348
    %v4350 = vlaneseq
    %v4351 = vshrl.u32 %v4350, 7
    %v4352 = vsub.s32 1, %v4351
    %v4353 = vrot.slane %v4344, %v4352
    %s4356 = scalar_lea.vmem [#allocation8], 512
    %v4357 = vld [vmem:[%s4356] sm:$0xff]
    %v4358 = vld [vmem:[%s4356 + $0x8] sm:$0xff]
    %v4359 = vld [vmem:[%s4356 + $0x10] sm:$0xff]
    %v4360 = vld [vmem:[%s4356 + $0x18] sm:$0xff]
    %v4361 = vld [vmem:[%s4356 + $0x20] sm:$0xff]
    %v4362 = vld [vmem:[%s4356 + $0x28] sm:$0xff]
    %v4363 = vld [vmem:[%s4356 + $0x30] sm:$0xff]
    %v4364 = vld [vmem:[%s4356 + $0x38] sm:$0xff]
    %v4365 = vld [vmem:[%s4356 + $0x40] sm:$0xff]
    %v4366 = vld [vmem:[%s4356 + $0x48] sm:$0xff]
    %v4367 = vld [vmem:[%s4356 + $0x50] sm:$0xff]
    %v4368 = vld [vmem:[%s4356 + $0x58] sm:$0xff]
    %v4369 = vld [vmem:[%s4356 + $0x60] sm:$0xff]
    %v4370 = vld [vmem:[%s4356 + $0x68] sm:$0xff]
    %v4371 = vld [vmem:[%s4356 + $0x70] sm:$0xff]
    %v4372 = vld [vmem:[%s4356 + $0x78] sm:$0xff]
    %v4373 = vld [vmem:[%s4356 + $0x80] sm:$0xff]
    %v4374 = vld [vmem:[%s4356 + $0x88] sm:$0xff]
    %v4375 = vld [vmem:[%s4356 + $0x90] sm:$0xff]
    %v4376 = vld [vmem:[%s4356 + $0x98] sm:$0xff]
    %v4377 = vld [vmem:[%s4356 + $0xa0] sm:$0xff]
    %v4378 = vld [vmem:[%s4356 + $0xa8] sm:$0xff]
    %v4379 = vld [vmem:[%s4356 + $0xb0] sm:$0xff]
    %v4380 = vld [vmem:[%s4356 + $0xb8] sm:$0xff]
    %v4381 = vld [vmem:[%s4356 + $0xc0] sm:$0xff]
    %v4382 = vld [vmem:[%s4356 + $0xc8] sm:$0xff]
    %v4383 = vld [vmem:[%s4356 + $0xd0] sm:$0xff]
    %v4384 = vld [vmem:[%s4356 + $0xd8] sm:$0xff]
    %v4385 = vld [vmem:[%s4356 + $0xe0] sm:$0xff]
    %v4386 = vld [vmem:[%s4356 + $0xe8] sm:$0xff]
    %v4387 = vld [vmem:[%s4356 + $0xf0] sm:$0xff]
    %v4388 = vld [vmem:[%s4356 + $0xf8] sm:$0xff]
    %v4389 = vld [vmem:[%s4356 + $0x100] sm:$0xff]
    %v4390 = vld [vmem:[%s4356 + $0x108] sm:$0xff]
    %v4391 = vld [vmem:[%s4356 + $0x110] sm:$0xff]
    %v4392 = vld [vmem:[%s4356 + $0x118] sm:$0xff]
    %v4393 = vld [vmem:[%s4356 + $0x120] sm:$0xff]
    %v4394 = vld [vmem:[%s4356 + $0x128] sm:$0xff]
    %v4395 = vld [vmem:[%s4356 + $0x130] sm:$0xff]
    %v4396 = vld [vmem:[%s4356 + $0x138] sm:$0xff]
    %v4397 = vld [vmem:[%s4356 + $0x140] sm:$0xff]
    %v4398 = vld [vmem:[%s4356 + $0x148] sm:$0xff]
    %v4399 = vld [vmem:[%s4356 + $0x150] sm:$0xff]
    %v4400 = vld [vmem:[%s4356 + $0x158] sm:$0xff]
    %v4401 = vld [vmem:[%s4356 + $0x160] sm:$0xff]
    %v4402 = vld [vmem:[%s4356 + $0x168] sm:$0xff]
    %v4403 = vld [vmem:[%s4356 + $0x170] sm:$0xff]
    %v4404 = vld [vmem:[%s4356 + $0x178] sm:$0xff]
    %v4405 = vld [vmem:[%s4356 + $0x180] sm:$0xff]
    %v4406 = vld [vmem:[%s4356 + $0x188] sm:$0xff]
    %v4407 = vld [vmem:[%s4356 + $0x190] sm:$0xff]
    %v4408 = vld [vmem:[%s4356 + $0x198] sm:$0xff]
    %v4409 = vld [vmem:[%s4356 + $0x1a0] sm:$0xff]
    %v4410 = vld [vmem:[%s4356 + $0x1a8] sm:$0xff]
    %v4411 = vld [vmem:[%s4356 + $0x1b0] sm:$0xff]
    %v4412 = vld [vmem:[%s4356 + $0x1b8] sm:$0xff]
    %v4413 = vld [vmem:[%s4356 + $0x1c0] sm:$0xff]
    %v4414 = vld [vmem:[%s4356 + $0x1c8] sm:$0xff]
    %v4415 = vld [vmem:[%s4356 + $0x1d0] sm:$0xff]
    %v4416 = vld [vmem:[%s4356 + $0x1d8] sm:$0xff]
    %v4417 = vld [vmem:[%s4356 + $0x1e0] sm:$0xff]
    %v4418 = vld [vmem:[%s4356 + $0x1e8] sm:$0xff]
    %v4419 = vld [vmem:[%s4356 + $0x1f0] sm:$0xff]
    %v4420 = vld [vmem:[%s4356 + $0x1f8] sm:$0xff]
    %4421 = vmatprep.subr.mxu0 %v4388
    %4422 = vmatpush1.msra.mxu0 %v4387
    %4423 = vmatprep.subr.mxu0 %v4386
    %4424 = vmatpush1.msra.mxu0 %v4385
    %4425 = vmatprep.subr.mxu0 %v4384
    %4426 = vmatpush1.msra.mxu0 %v4383
    %4427 = vmatprep.subr.mxu0 %v4382
    %4428 = vmatpush1.msra.mxu0 %v4381
    %4429 = vmatprep.subr.mxu0 %v4380
    %4430 = vmatpush1.msra.mxu0 %v4379
    %4431 = vmatprep.subr.mxu0 %v4378
    %4432 = vmatpush1.msra.mxu0 %v4377
    %4433 = vmatprep.subr.mxu0 %v4376
    %4434 = vmatpush1.msra.mxu0 %v4375
    %4435 = vmatprep.subr.mxu0 %v4374
    %4436 = vmatpush1.msra.mxu0 %v4373
    %4437 = vmatprep.subr.mxu0 %v4372
    %4438 = vmatpush1.msra.mxu0 %v4371
    %4439 = vmatprep.subr.mxu0 %v4370
    %4440 = vmatpush1.msra.mxu0 %v4369
    %4441 = vmatprep.subr.mxu0 %v4368
    %4442 = vmatpush1.msra.mxu0 %v4367
    %4443 = vmatprep.subr.mxu0 %v4366
    %4444 = vmatpush1.msra.mxu0 %v4365
    %4445 = vmatprep.subr.mxu0 %v4364
    %4446 = vmatpush1.msra.mxu0 %v4363
    %4447 = vmatprep.subr.mxu0 %v4362
    %4448 = vmatpush1.msra.mxu0 %v4361
    %4449 = vmatprep.subr.mxu0 %v4360
    %4450 = vmatpush1.msra.mxu0 %v4359
    %4451 = vmatprep.subr.mxu0 %v4358
    %4452 = vmatpush1.msra.mxu0 %v4357
    %4453 = vmatprep.subr.mxu0 %v4420
    %4454 = vmatpush2.msra.mxu0 %v4419
    %4455 = vmatprep.subr.mxu0 %v4418
    %4456 = vmatpush2.msra.mxu0 %v4417
    %4457 = vmatprep.subr.mxu0 %v4416
    %4458 = vmatpush2.msra.mxu0 %v4415
    %4459 = vmatprep.subr.mxu0 %v4414
    %4460 = vmatpush2.msra.mxu0 %v4413
    %4461 = vmatprep.subr.mxu0 %v4412
    %4462 = vmatpush2.msra.mxu0 %v4411
    %4463 = vmatprep.subr.mxu0 %v4410
    %4464 = vmatpush2.msra.mxu0 %v4409
    %4465 = vmatprep.subr.mxu0 %v4408
    %4466 = vmatpush2.msra.mxu0 %v4407
    %4467 = vmatprep.subr.mxu0 %v4406
    %4468 = vmatpush2.msra.mxu0 %v4405
    %4469 = vmatprep.subr.mxu0 %v4404
    %4470 = vmatpush2.msra.mxu0 %v4403
    %4471 = vmatprep.subr.mxu0 %v4402
    %4472 = vmatpush2.msra.mxu0 %v4401
    %4473 = vmatprep.subr.mxu0 %v4400
    %4474 = vmatpush2.msra.mxu0 %v4399
    %4475 = vmatprep.subr.mxu0 %v4398
    %4476 = vmatpush2.msra.mxu0 %v4397
    %4477 = vmatprep.subr.mxu0 %v4396
    %4478 = vmatpush2.msra.mxu0 %v4395
    %4479 = vmatprep.subr.mxu0 %v4394
    %4480 = vmatpush2.msra.mxu0 %v4393
    %4481 = vmatprep.subr.mxu0 %v4392
    %4482 = vmatpush2.msra.mxu0 %v4391
    %4483 = vmatprep.subr.mxu0 %v4390
    %4484 = vmatpush2.msra.mxu0 %v4389
    %4485 = vmatprep.mubr.f32.mxu0 %v4341
    %4486 = vmatmul.mubr.f32.gmra.mxu0 %v4339
    %v4487 = vpop.f32.mrf.mxu0
    %v4488 = vadd.f32 %v4349, %v4487
    %v4489 = vpop.f32.mrf.mxu0
    %v4490 = vadd.f32 %v4353, %v4489
    %4491 = vdwg.mxu0
    %v4492 = vmax.f32 %v4488, 0.0
    %v4493 = vmax.f32 %v4490, 0.0
    %4494 = vmatprep.subr.mxu0 0.0
    %4495 = vmatpush1.msra.mxu0 0.0
    %4496 = vmatprep.subr.mxu0 0.0
    %4497 = vmatpush1.msra.mxu0 0.0
    %4498 = vmatprep.subr.mxu0 0.0
    %4499 = vmatpush1.msra.mxu0 0.0
    %4500 = vmatprep.subr.mxu0 0.0
    %4501 = vmatpush1.msra.mxu0 0.0
    %4502 = vmatprep.subr.mxu0 0.0
    %4503 = vmatpush1.msra.mxu0 0.0
    %4504 = vmatprep.subr.mxu0 0.0
    %4505 = vmatpush1.msra.mxu0 0.0
    %4506 = vmatprep.subr.mxu0 0.0
    %4507 = vmatpush1.msra.mxu0 0.0
    %4508 = vmatprep.subr.mxu0 0.0
    %4509 = vmatpush1.msra.mxu0 0.0
    %4510 = vmatprep.subr.mxu0 0.0
    %4511 = vmatpush1.msra.mxu0 0.0
    %4512 = vmatprep.subr.mxu0 0.0
    %4513 = vmatpush1.msra.mxu0 0.0
    %4514 = vmatprep.subr.mxu0 0.0
    %4515 = vmatpush1.msra.mxu0 0.0
    %4516 = vmatprep.subr.mxu0 0.0
    %4517 = vmatpush1.msra.mxu0 0.0
    %4518 = vmatprep.subr.mxu0 0.0
    %4519 = vmatpush1.msra.mxu0 0.0
    %4520 = vmatprep.subr.mxu0 0.0
    %4521 = vmatpush1.msra.mxu0 0.0
    %4522 = vmatprep.subr.mxu0 0.0
    %4523 = vmatpush1.msra.mxu0 0.0
    %4524 = vmatprep.subr.mxu0 %v4493
    %4525 = vmatpush1.msra.mxu0 %v4492
    %4526 = vmatprep.subr.mxu0 0.0
    %4527 = vmatpush2.msra.mxu0 0.0
    %4528 = vmatprep.subr.mxu0 0.0
    %4529 = vmatpush2.msra.mxu0 0.0
    %4530 = vmatprep.subr.mxu0 0.0
    %4531 = vmatpush2.msra.mxu0 0.0
    %4532 = vmatprep.subr.mxu0 0.0
    %4533 = vmatpush2.msra.mxu0 0.0
    %4534 = vmatprep.subr.mxu0 0.0
    %4535 = vmatpush2.msra.mxu0 0.0
    %4536 = vmatprep.subr.mxu0 0.0
    %4537 = vmatpush2.msra.mxu0 0.0
    %4538 = vmatprep.subr.mxu0 0.0
    %4539 = vmatpush2.msra.mxu0 0.0
    %4540 = vmatprep.subr.mxu0 0.0
    %4541 = vmatpush2.msra.mxu0 0.0
    %4542 = vmatprep.subr.mxu0 0.0
    %4543 = vmatpush2.msra.mxu0 0.0
    %4544 = vmatprep.subr.mxu0 0.0
    %4545 = vmatpush2.msra.mxu0 0.0
    %4546 = vmatprep.subr.mxu0 0.0
    %4547 = vmatpush2.msra.mxu0 0.0
    %4548 = vmatprep.subr.mxu0 0.0
    %4549 = vmatpush2.msra.mxu0 0.0
    %4550 = vmatprep.subr.mxu0 0.0
    %4551 = vmatpush2.msra.mxu0 0.0
    %4552 = vmatprep.subr.mxu0 0.0
    %4553 = vmatpush2.msra.mxu0 0.0
    %4554 = vmatprep.subr.mxu0 0.0
    %4555 = vmatpush2.msra.mxu0 0.0
    %4556 = vmatprep.subr.mxu0 0.0
    %4557 = vmatpush2.msra.mxu0 0.0
    %4558 = vmatprep.mubr.f32.mxu0 0.0
    %4559 = vmatmul.mubr.f32.gmra.mxu0 %v4050
    %v4560 = vpop.f32.mrf.mxu0
    %v4561 = vadd.f32 0.0, %v4560
    %v4562 = vpop.f32.mrf.mxu0
    %v4563 = vadd.f32 0.0, %v4562
    %4564 = vdwg.mxu0
    %v4565 = vld [vmem:[%s7] sm:$0xff]
    %v4566 = vld [vmem:[%s7 + $0x8] sm:$0xff]
    %v4567 = vld [vmem:[%s7 + $0x10] sm:$0xff]
    %v4568 = vld [vmem:[%s7 + $0x18] sm:$0xff]
    %v4569 = vld [vmem:[%s7 + $0x20] sm:$0xff]
    %v4570 = vld [vmem:[%s7 + $0x28] sm:$0xff]
    %v4571 = vld [vmem:[%s7 + $0x30] sm:$0xff]
    %v4572 = vld [vmem:[%s7 + $0x38] sm:$0xff]
    %v4573 = vld [vmem:[%s7 + $0x40] sm:$0xff]
    %v4574 = vld [vmem:[%s7 + $0x48] sm:$0xff]
    %v4575 = vld [vmem:[%s7 + $0x50] sm:$0xff]
    %v4576 = vld [vmem:[%s7 + $0x58] sm:$0xff]
    %v4577 = vld [vmem:[%s7 + $0x60] sm:$0xff]
    %v4578 = vld [vmem:[%s7 + $0x68] sm:$0xff]
    %v4579 = vld [vmem:[%s7 + $0x70] sm:$0xff]
    %v4580 = vld [vmem:[%s7 + $0x78] sm:$0xff]
    %v4581 = vld [vmem:[%s7 + $0x80] sm:$0xff]
    %v4582 = vld [vmem:[%s7 + $0x88] sm:$0xff]
    %v4583 = vld [vmem:[%s7 + $0x90] sm:$0xff]
    %v4584 = vld [vmem:[%s7 + $0x98] sm:$0xff]
    %v4585 = vld [vmem:[%s7 + $0xa0] sm:$0xff]
    %v4586 = vld [vmem:[%s7 + $0xa8] sm:$0xff]
    %v4587 = vld [vmem:[%s7 + $0xb0] sm:$0xff]
    %v4588 = vld [vmem:[%s7 + $0xb8] sm:$0xff]
    %v4589 = vld [vmem:[%s7 + $0xc0] sm:$0xff]
    %v4590 = vld [vmem:[%s7 + $0xc8] sm:$0xff]
    %v4591 = vld [vmem:[%s7 + $0xd0] sm:$0xff]
    %v4592 = vld [vmem:[%s7 + $0xd8] sm:$0xff]
    %v4593 = vld [vmem:[%s7 + $0xe0] sm:$0xff]
    %v4594 = vld [vmem:[%s7 + $0xe8] sm:$0xff]
    %v4595 = vld [vmem:[%s7 + $0xf0] sm:$0xff]
    %v4596 = vld [vmem:[%s7 + $0xf8] sm:$0xff]
    %s4597 = sld [smem:[#allocation2]]
    %v4598 = vstv %s4597
    %4599 = vmatprep.subr.mxu0 0.0
    %4600 = vmatpush1.msra.mxu0 %v4580
    %4601 = vmatprep.subr.mxu0 0.0
    %4602 = vmatpush1.msra.mxu0 %v4579
    %4603 = vmatprep.subr.mxu0 0.0
    %4604 = vmatpush1.msra.mxu0 %v4578
    %4605 = vmatprep.subr.mxu0 0.0
    %4606 = vmatpush1.msra.mxu0 %v4577
    %4607 = vmatprep.subr.mxu0 0.0
    %4608 = vmatpush1.msra.mxu0 %v4576
    %4609 = vmatprep.subr.mxu0 0.0
    %4610 = vmatpush1.msra.mxu0 %v4575
    %4611 = vmatprep.subr.mxu0 0.0
    %4612 = vmatpush1.msra.mxu0 %v4574
    %4613 = vmatprep.subr.mxu0 0.0
    %4614 = vmatpush1.msra.mxu0 %v4573
    %4615 = vmatprep.subr.mxu0 0.0
    %4616 = vmatpush1.msra.mxu0 %v4572
    %4617 = vmatprep.subr.mxu0 0.0
    %4618 = vmatpush1.msra.mxu0 %v4571
    %4619 = vmatprep.subr.mxu0 0.0
    %4620 = vmatpush1.msra.mxu0 %v4570
    %4621 = vmatprep.subr.mxu0 0.0
    %4622 = vmatpush1.msra.mxu0 %v4569
    %4623 = vmatprep.subr.mxu0 0.0
    %4624 = vmatpush1.msra.mxu0 %v4568
    %4625 = vmatprep.subr.mxu0 0.0
    %4626 = vmatpush1.msra.mxu0 %v4567
    %4627 = vmatprep.subr.mxu0 0.0
    %4628 = vmatpush1.msra.mxu0 %v4566
    %4629 = vmatprep.subr.mxu0 0.0
    %4630 = vmatpush1.msra.mxu0 %v4565
    %4631 = vmatprep.subr.mxu0 0.0
    %4632 = vmatpush2.msra.mxu0 %v4596
    %4633 = vmatprep.subr.mxu0 0.0
    %4634 = vmatpush2.msra.mxu0 %v4595
    %4635 = vmatprep.subr.mxu0 0.0
    %4636 = vmatpush2.msra.mxu0 %v4594
    %4637 = vmatprep.subr.mxu0 0.0
    %4638 = vmatpush2.msra.mxu0 %v4593
    %4639 = vmatprep.subr.mxu0 0.0
    %4640 = vmatpush2.msra.mxu0 %v4592
    %4641 = vmatprep.subr.mxu0 0.0
    %4642 = vmatpush2.msra.mxu0 %v4591
    %4643 = vmatprep.subr.mxu0 0.0
    %4644 = vmatpush2.msra.mxu0 %v4590
    %4645 = vmatprep.subr.mxu0 0.0
    %4646 = vmatpush2.msra.mxu0 %v4589
    %4647 = vmatprep.subr.mxu0 0.0
    %4648 = vmatpush2.msra.mxu0 %v4588
    %4649 = vmatprep.subr.mxu0 0.0
    %4650 = vmatpush2.msra.mxu0 %v4587
    %4651 = vmatprep.subr.mxu0 0.0
    %4652 = vmatpush2.msra.mxu0 %v4586
    %4653 = vmatprep.subr.mxu0 0.0
    %4654 = vmatpush2.msra.mxu0 %v4585
    %4655 = vmatprep.subr.mxu0 0.0
    %4656 = vmatpush2.msra.mxu0 %v4584
    %4657 = vmatprep.subr.mxu0 0.0
    %4658 = vmatpush2.msra.mxu0 %v4583
    %4659 = vmatprep.subr.mxu0 0.0
    %4660 = vmatpush2.msra.mxu0 %v4582
    %4661 = vmatprep.subr.mxu0 0.0
    %4662 = vmatpush2.msra.mxu0 %v4581
    %4663 = vmatprep.mubr.f32.mxu0 %v4563
    %4664 = vmatmul.mubr.f32.gmra.mxu0 %v4561
    %v4665 = vpop.f32.mrf.mxu0
    %v4666 = vadd.f32 %v4598, %v4665
    %v4667 = vpop.f32.mrf.mxu0
    %4668 = vdwg.mxu0
    %4669 = vst.msk [vmem:[#allocation9] sm:$0xff] %vm4048, %v4666
    // Predicated region
    $region50: #{tpu_custom_call.1} parent=1 // pred_check
      _
    $region51: #{tpu_custom_call.1} parent=1 // pred_check_branch
      %4671 = sbr.rel (0) target = $region53
    $region52: #{tpu_custom_call.1} parent=1 // pred_region
      %s4673 = ssub.s32 128, 128
      %4674 = vsyncadd [#allocation5], %s4673
      %s4676 = sshll.u32 [#allocation9], 4
      %s4677 = int_to_ptr.vmem [resolvable:$true] %s4676
      %4679 = dma.vmem_to_hbm [thread:$0]  %s4677, 128, %s9, [#allocation5]
    $region53: #{tpu_custom_call.1} parent=1 // pred_fallthru
      _
    // Predicated region
    $region54: #{tpu_custom_call.1} parent=1 // pred_check
      _
    $region55: #{tpu_custom_call.1} parent=1 // pred_check_branch
      %4681 = sbr.rel (0) target = $region57
    $region56: #{tpu_custom_call.1} parent=1 // pred_region
      %4682 = dma.done [#allocation5], 128
    $region57: #{tpu_custom_call.1} parent=1 // pred_fallthru
      _
    %4683 = vsyncpa [#allocation4], 1
    %4684 = vsyncpa [#allocation7], 1
    %4685 = vsyncpa [#allocation5], 1

</llo_original>
